<compile_context>
chip_gen: v7x
topology: tpu7x:2x2x1
jax: 0.10.0
libtpu: 0.0.40
codegen_flags: <defaults>
</compile_context>

<pallas_src>
import functools

import jax
import jax.numpy as jnp
import numpy as np
from jax.experimental import pallas as pl
from jax.experimental.pallas import tpu as pltpu

_HEAD_PAD = 128            # head axis padded to one full lane register
_MIB = 1024 * 1024


def _round_up(n, m):
    return ((n + m - 1) // m) * m


# --------------------------------------------------------------------------------------
# Kernel 1: LayerNorm + pooled single-query multi-head attention -> context (bt, E)
# --------------------------------------------------------------------------------------
def _attn_pool_kernel(s_valid, x_ref, lnw_ref, lnb_ref, wvs_ref, bvs_ref, expand_ref,
                      ctx_ref):
    f32 = jnp.float32
    bt, s_pad, e = x_ref.shape
    hp = expand_ref.shape[0]
    cdt = wvs_ref.dtype                      # matmul operand dtype (f32 or bf16)

    # ---- LayerNorm(eps=1e-6) over the embed dim, statistics in f32 ----
    x = x_ref[...].astype(f32)
    mu = jnp.mean(x, axis=-1, keepdims=True)
    var = jnp.mean(jnp.square(x - mu), axis=-1, keepdims=True)
    xn = (x - mu) * jax.lax.rsqrt(var + 1e-6)
    xn = xn * lnw_ref[...] + lnb_ref[...]                        # (bt, s_pad, e)

    # ---- One fused matmul produces the V rows AND all per-head attention scores ----
    #   vs[:, :e] = V      = xn @ Wv^T + bv
    #   vs[:, e:] = scores = xn @ (Wk^T @ qdiag) + bk @ qdiag    (K projection folded away)
    xn2 = xn.reshape(bt * s_pad, e).astype(cdt)                  # layout no-op (s_pad % 8 == 0)
    vs = jnp.dot(xn2, wvs_ref[...], preferred_element_type=f32) + bvs_ref[...]
    v2 = vs[:, :e]                                               # (bt*s_pad, e)
    s3 = vs[:, e:].reshape(bt, s_pad, hp)                        # (bt, s_pad, hp)

    # ---- Mask padded key rows (LayerNorm of zero padding gives ln_b -> non-zero scores) ----
    if s_pad != s_valid:
        kidx = jax.lax.broadcasted_iota(jnp.int32, (1, s_pad, hp), 1)
        s3 = jnp.where(kidx < s_valid, s3, -1e30)

    # ---- Softmax over the key axis; divide goes to the EUP via approx reciprocal ----
    m = jnp.max(s3, axis=1, keepdims=True)
    p = jnp.exp(s3 - m)
    l = jnp.sum(p, axis=1, keepdims=True)
    p = p * pl.reciprocal(l, approx=True)                        # (bt, s_pad, hp)

    # ---- Expand head weights back to embed lanes, weight V, reduce over keys ----
    p_exp = jnp.dot(p.reshape(bt * s_pad, hp).astype(cdt), expand_ref[...],
                    preferred_element_type=f32)                  # (bt*s_pad, e)
    ctx = jnp.sum((p_exp * v2).reshape(bt, s_pad, e), axis=1)    # (bt, e)
    ctx_ref[...] = ctx.astype(ctx_ref.dtype)


# --------------------------------------------------------------------------------------
# Kernel 2: attention out-projection + MLP, run once over all batch rows.
# --------------------------------------------------------------------------------------
def _out_mlp_kernel(ctx_ref, wo_ref, bo_ref, w1_ref, b1_ref, w2_ref, b2_ref, o_ref):
    f32 = jnp.float32
    cdt = wo_ref.dtype
    o = jnp.dot(ctx_ref[...].astype(cdt), wo_ref[...],
                preferred_element_type=f32) + bo_ref[...]
    h1 = jnp.dot(o.astype(cdt), w1_ref[...], preferred_element_type=f32) + b1_ref[...]
    h1 = jax.nn.gelu(h1, approximate=False)
    out = jnp.dot(h1.astype(cdt), w2_ref[...], preferred_element_type=f32) + b2_ref[...]
    o_ref[...] = out.astype(o_ref.dtype)


# --------------------------------------------------------------------------------------
# Spec / sizing helpers
# --------------------------------------------------------------------------------------
def _const_spec(shape, single_buffer):
    """Weight spec: constant index_map (DMA'd once); optionally single-buffered."""
    index_map = lambda *_: (0,) * len(shape)
    if single_buffer:
        try:
            return pl.BlockSpec(shape, index_map, pipeline_mode=pl.Buffered(1))
        except TypeError:
            pass
    return pl.BlockSpec(shape, index_map)


def _vmem_limit_bytes():
    phys = None
    try:
        phys = getattr(pltpu.get_tpu_info(), "vmem_capacity_bytes", None)
    except Exception:
        phys = None
    if not phys or int(phys) <= 0:
        phys = 64 * _MIB                               # conservative (v7x-class VMEM)
    limit = min(int(phys) - 12 * _MIB, 112 * _MIB)     # v7x -> ~52 MiB, v5e/v6e -> 112 MiB
    return max(limit, 32 * _MIB)


def _pick_b_tile(batch, s_pad, e, hp, x_bytes, w_bytes, budget):
    """Largest batch tile whose attention working set fits the VMEM budget."""
    resident = w_bytes * (e * (e + hp) + hp * e) + 4 * (4 * e + hp)
    per_row = (
        2 * s_pad * e * x_bytes        # x tile (double-buffered)
        + s_pad * e * 4                # xn (f32)
        + s_pad * e * w_bytes          # xn cast to compute dtype
        + s_pad * (e + hp) * 4         # fused V / score result (f32)
        + 2 * s_pad * hp * 4           # softmax temporaries
        + s_pad * e * 4                # p_exp (f32)
        + 2 * e * 4                    # ctx out (double-buffered)
    )
    bt = int(max(8, min((budget - resident) // per_row, 256)))
    bt = max(8, (bt // 8) * 8)
    cap = _round_up(batch, 8)
    if batch >= 16:                    # keep >= 2 grid tiles so v7x uses both TensorCores
        cap = min(cap, _round_up((batch + 1) // 2, 8))
    return max(8, min(bt, cap))


def _pick_mlp_tile(rows, e, hid, w_bytes, budget, single_buffer):
    bufs = 1 if single_buffer else 2
    resident = bufs * w_bytes * (e * e + 2 * e * hid) + 4 * (2 * e + hid)
    per_row = 2 * e * 4 + (e + hid) * 4 + (e + hid) * w_bytes + 2 * e * 4
    mt = int(max(8, min((budget - resident) // per_row, 512, _round_up(rows, 8))))
    return max(8, (mt // 8) * 8)


# --------------------------------------------------------------------------------------
# Wrapper
# --------------------------------------------------------------------------------------
def _forward_impl(x, params, num_heads, *, compute_dtype, b_tile, mlp_tile, single_buffer):
    f32 = jnp.float32
    hi = jax.lax.Precision.HIGHEST
    B, S, E = x.shape
    assert E % num_heads == 0 and num_heads <= _HEAD_PAD
    head_dim = E // num_heads
    hid = params["w1"].shape[0]
    hp = _HEAD_PAD
    cdt = jnp.dtype(compute_dtype) if compute_dtype is not None else jnp.dtype(x.dtype)

    # ---- wrapper-side precompute (f32, HIGHEST precision) ----
    wq, wk, wv = jnp.split(params["in_proj_w"].astype(f32), 3, axis=0)
    bq, bk, bv = jnp.split(params["in_proj_b"].astype(f32), 3)

    onehot = jnp.asarray(
        (np.arange(E)[:, None] // head_dim) == np.arange(hp)[None, :], dtype=np.float32)

    q_scaled = (jnp.dot(params["query"].reshape(1, E).astype(f32), wq.T, precision=hi)
                + bq) * (1.0 / float(head_dim) ** 0.5)              # (1, E)
    qdiag = onehot * q_scaled.reshape(E, 1)                          # (E, hp) block-diagonal
    # Fold the K projection into the score matrix: scores = xn @ w_score + b_score.
    w_score = jnp.dot(wk.T, qdiag, precision=hi)                     # (E, hp)
    b_score = jnp.dot(bk.reshape(1, E), qdiag, precision=hi)         # (1, hp)

    w_vs = jnp.concatenate([wv.T, w_score], axis=1).astype(cdt)      # (E, E + hp)
    b_vs = jnp.concatenate([bv.reshape(1, E), b_score], axis=1).astype(f32)
    expand = onehot.T.astype(cdt)                                    # (hp, E)
    lnw = params["ln_w"].reshape(1, E).astype(f32)
    lnb = params["ln_b"].reshape(1, E).astype(f32)

    # ---- layout: pad S to a sublane-friendly multiple; stream x in the compute dtype ----
    x_stream = x.astype(jnp.bfloat16) if cdt == jnp.bfloat16 else x
    x_bytes = jnp.dtype(x_stream.dtype).itemsize
    w_bytes = jnp.dtype(cdt).itemsize
    s_pad = _round_up(S, 16)
    if s_pad != S:
        x_stream = jnp.pad(x_stream, ((0, 0), (0, s_pad - S), (0, 0)))

    vmem_limit = _vmem_limit_bytes()
    budget = vmem_limit - 8 * _MIB

    if b_tile is None:
        b_tile = _pick_b_tile(B, s_pad, E, hp, x_bytes, w_bytes, budget)
    b_tile = max(8, _round_up(int(b_tile), 8))
    num_tiles = pl.cdiv(B, b_tile)
    b_pad = num_tiles * b_tile
    if b_pad != B:
        x_stream = jnp.pad(x_stream, ((0, b_pad - B), (0, 0), (0, 0)))

    cparams = pltpu.CompilerParams(
        dimension_semantics=("parallel",), vmem_limit_bytes=vmem_limit)

    ctx = pl.pallas_call(
        functools.partial(_attn_pool_kernel, S),
        out_shape=jax.ShapeDtypeStruct((b_pad, E), f32),
        grid=(num_tiles,),
        in_specs=[
            pl.BlockSpec((b_tile, s_pad, E), lambda b: (b, 0, 0)),   # x batch tile
            _const_spec((1, E), single_buffer),                      # ln_w
            _const_spec((1, E), single_buffer),                      # ln_b
            _const_spec((E, E + hp), single_buffer),                 # [Wv^T | w_score]
            _const_spec((1, E + hp), single_buffer),                 # [bv | b_score]
            _const_spec((hp, E), single_buffer),                     # head -> embed expand
        ],
        out_specs=pl.BlockSpec((b_tile, E), lambda b: (b, 0)),
        compiler_params=cparams,
    )(x_stream, lnw, lnb, w_vs, b_vs, expand)

    # ---- out-projection + MLP once over all batch rows ----
    if mlp_tile is None:
        mlp_tile = _pick_mlp_tile(b_pad, E, hid, w_bytes, budget, single_buffer)
    mlp_tile = min(max(8, _round_up(int(mlp_tile), 8)), b_pad)
    num_mlp_tiles = pl.cdiv(b_pad, mlp_tile)
    rows = num_mlp_tiles * mlp_tile
    if rows != b_pad:
        ctx = jnp.pad(ctx, ((0, rows - b_pad), (0, 0)))

    wo = params["out_proj_w"].T.astype(cdt)
    bo = params["out_proj_b"].reshape(1, E).astype(f32)
    w1 = params["w1"].T.astype(cdt)
    b1 = params["b1"].reshape(1, hid).astype(f32)
    w2 = params["w2"].T.astype(cdt)
    b2 = params["b2"].reshape(1, E).astype(f32)

    out = pl.pallas_call(
        _out_mlp_kernel,
        out_shape=jax.ShapeDtypeStruct((rows, E), x.dtype),
        grid=(num_mlp_tiles,),
        in_specs=[
            pl.BlockSpec((mlp_tile, E), lambda i: (i, 0)),
            _const_spec((E, E), single_buffer), _const_spec((1, E), single_buffer),
            _const_spec((E, hid), single_buffer), _const_spec((1, hid), single_buffer),
            _const_spec((hid, E), single_buffer), _const_spec((1, E), single_buffer),
        ],
        out_specs=pl.BlockSpec((mlp_tile, E), lambda i: (i, 0)),
        compiler_params=cparams,
    )(ctx, wo, bo, w1, b1, w2, b2)

    return out[:B]                     # == squeeze(1) of the (B, 1, E) PyTorch output


def siglip_pooling_head(x, params, num_heads, *, compute_dtype=None, b_tile=None,
                        mlp_tile=None, single_buffer_consts=True):
    """x: (B, S, E); params: PyTorch-layout weights. Returns (B, E).

    compute_dtype=jnp.bfloat16 selects the bf16 matmul-operand / bf16-x-stream path
    (recommended on v5e / v7x); statistics and accumulation stay in f32.
    """
    kwargs = dict(compute_dtype=compute_dtype, b_tile=b_tile, mlp_tile=mlp_tile)
    if single_buffer_consts:
        try:
            return _forward_impl(x, params, num_heads, single_buffer=True, **kwargs)
        except Exception:
            # Fallback for JAX versions without pipeline_mode=pl.Buffered(1) support.
            pass
    return _forward_impl(x, params, num_heads, single_buffer=False, **kwargs)


# --------------------------------------------------------------------------------------
# Pure-JAX reference mirroring the PyTorch module.
# --------------------------------------------------------------------------------------
def ref_forward(x, params, num_heads):
    with jax.default_matmul_precision("highest"):
        B, S, E = x.shape
        hd = E // num_heads
        mu = x.mean(-1, keepdims=True)
        var = ((x - mu) ** 2).mean(-1, keepdims=True)
        xn = (x - mu) / jnp.sqrt(var + 1e-6) * params["ln_w"] + params["ln_b"]
        wq, wk, wv = jnp.split(params["in_proj_w"], 3, axis=0)
        bq, bk, bv = jnp.split(params["in_proj_b"], 3)
        query = jnp.broadcast_to(params["query"], (B, 1, E))
        q = query @ wq.T + bq
        k = xn @ wk.T + bk
        v = xn @ wv.T + bv
        qh = q.reshape(B, 1, num_heads, hd).transpose(0, 2, 1, 3)
        kh = k.reshape(B, S, num_heads, hd).transpose(0, 2, 1, 3)
        vh = v.reshape(B, S, num_heads, hd).transpose(0, 2, 1, 3)
        s = jnp.einsum("bhqd,bhkd->bhqk", qh, kh) / jnp.sqrt(hd)
        a = jax.nn.softmax(s, axis=-1)
        ctx = jnp.einsum("bhqk,bhkd->bhqd", a, vh).transpose(0, 2, 1, 3).reshape(B, 1, E)
        o = ctx @ params["out_proj_w"].T + params["out_proj_b"]
        h1 = jax.nn.gelu(o @ params["w1"].T + params["b1"], approximate=False)
        out = h1 @ params["w2"].T + params["b2"]
        return out[:, 0, :]


if __name__ == "__main__":
    # Small shapes consistent with the module (original: E=768, S=196, HID=3072=4*E, H=12).
    # S=13 exercises the padded-key masking path (196 % 8 != 0 in production too);
    # B=20 exercises batch padding and a multi-tile grid.
    B, S, E = 20, 13, 64
    NUM_HEADS = 4
    HID = 4 * E

    key = jax.random.PRNGKey(0)
    ks = jax.random.split(key, 12)
    f32 = jnp.float32
    params = {
        "query":      jax.random.normal(ks[0], (1, 1, E), f32),
        "ln_w":       1.0 + 0.1 * jax.random.normal(ks[1], (E,), f32),
        "ln_b":       0.1 * jax.random.normal(ks[2], (E,), f32),
        "in_proj_w":  jax.random.normal(ks[3], (3 * E, E), f32) / jnp.sqrt(E),
        "in_proj_b":  0.02 * jax.random.normal(ks[4], (3 * E,), f32),
        "out_proj_w": jax.random.normal(ks[5], (E, E), f32) / jnp.sqrt(E),
        "out_proj_b": 0.02 * jax.random.normal(ks[6], (E,), f32),
        "w1":         jax.random.normal(ks[7], (HID, E), f32) / jnp.sqrt(E),
        "b1":         0.02 * jax.random.normal(ks[8], (HID,), f32),
        "w2":         jax.random.normal(ks[9], (E, HID), f32) / jnp.sqrt(HID),
        "b2":         0.02 * jax.random.normal(ks[10], (E,), f32),
    }
    x = jax.random.normal(ks[11], (B, S, E), f32)

    ref = jax.block_until_ready(ref_forward(x, params, NUM_HEADS))

    # f32 compute path, auto-derived (VMEM-budget) tiling.
    out = jax.block_until_ready(siglip_pooling_head(x, params, NUM_HEADS))
    assert out.shape == (B, E), out.shape
    np.testing.assert_allclose(np.asarray(out), np.asarray(ref), rtol=5e-3, atol=5e-3)

    # Explicit small tiles: multi-step grid + batch padding on both kernels.
    out_tiled = jax.block_until_ready(
        siglip_pooling_head(x, params, NUM_HEADS, b_tile=8, mlp_tile=8))
    np.testing.assert_allclose(np.asarray(out_tiled), np.asarray(ref), rtol=5e-3, atol=5e-3)

    # bf16 compute path (bf16 weights / matmul operands / streamed x, f32 accumulation).
    out_bf16 = jax.block_until_ready(
        siglip_pooling_head(x, params, NUM_HEADS, compute_dtype=jnp.bfloat16))
    np.testing.assert_allclose(np.asarray(out_bf16), np.asarray(ref), rtol=1e-1, atol=1e-1)

    print("KERNEL_OK")
</pallas_src>

<mosaic_0001>
module attributes {stable_mosaic.version = 11 : i64} {
  func.func @_attn_pool_kernel(%arg0: i32, %arg1: memref<16x16x64xf32, #tpu.memory_space<vmem>>, %arg2: memref<1x64xf32, #tpu.memory_space<vmem>>, %arg3: memref<1x64xf32, #tpu.memory_space<vmem>>, %arg4: memref<64x192xf32, #tpu.memory_space<vmem>>, %arg5: memref<1x192xf32, #tpu.memory_space<vmem>>, %arg6: memref<128x64xf32, #tpu.memory_space<vmem>>, %arg7: memref<16x64xf32, #tpu.memory_space<vmem>>) attributes {dimension_semantics = [#tpu.dimension_semantics<parallel>], iteration_bounds = array<i64: 2>, scalar_prefetch = 0 : i64, scratch_operands = 0 : i64, tpu.core_type = #tpu.core_type<tc>, window_params = [{transform_indices = @transform_0, window_bounds = array<i64: 16, 16, 64>}, {pipeline_mode = #tpu.pipeline_mode<synchronous>, transform_indices = @transform_1, window_bounds = array<i64: 1, 64>}, {pipeline_mode = #tpu.pipeline_mode<synchronous>, transform_indices = @transform_2, window_bounds = array<i64: 1, 64>}, {pipeline_mode = #tpu.pipeline_mode<synchronous>, transform_indices = @transform_3, window_bounds = array<i64: 64, 192>}, {pipeline_mode = #tpu.pipeline_mode<synchronous>, transform_indices = @transform_4, window_bounds = array<i64: 1, 192>}, {pipeline_mode = #tpu.pipeline_mode<synchronous>, transform_indices = @transform_5, window_bounds = array<i64: 128, 64>}, {transform_indices = @transform_6, window_bounds = array<i64: 16, 64>}]} {
    %c0 = arith.constant 0 : index
    %c0_0 = arith.constant 0 : index
    %c0_1 = arith.constant 0 : index
    %0 = vector.load %arg1[%c0, %c0_0, %c0_1] : memref<16x16x64xf32, #tpu.memory_space<vmem>>, vector<16x16x64xf32>
    %cst = arith.constant dense<0.000000e+00> : vector<16x16xf32>
    %1 = vector.multi_reduction <add>, %0, %cst [2] : vector<16x16x64xf32> to vector<16x16xf32>
    %2 = vector.shape_cast %1 : vector<16x16xf32> to vector<16x16x1xf32>
    %cst_2 = arith.constant 6.400000e+01 : f32
    %3 = vector.broadcast %cst_2 : f32 to vector<16x16x1xf32>
    %4 = arith.divf %2, %3 : vector<16x16x1xf32>
    %5 = vector.broadcast %4 : vector<16x16x1xf32> to vector<16x16x64xf32>
    %6 = arith.subf %0, %5 : vector<16x16x64xf32>
    %7 = arith.mulf %6, %6 : vector<16x16x64xf32>
    %cst_3 = arith.constant dense<0.000000e+00> : vector<16x16xf32>
    %8 = vector.multi_reduction <add>, %7, %cst_3 [2] : vector<16x16x64xf32> to vector<16x16xf32>
    %9 = vector.shape_cast %8 : vector<16x16xf32> to vector<16x16x1xf32>
    %cst_4 = arith.constant 6.400000e+01 : f32
    %10 = vector.broadcast %cst_4 : f32 to vector<16x16x1xf32>
    %11 = arith.divf %9, %10 : vector<16x16x1xf32>
    %12 = vector.broadcast %4 : vector<16x16x1xf32> to vector<16x16x64xf32>
    %13 = arith.subf %0, %12 : vector<16x16x64xf32>
    %cst_5 = arith.constant 9.99999997E-7 : f32
    %14 = vector.broadcast %cst_5 : f32 to vector<16x16x1xf32>
    %15 = arith.addf %11, %14 : vector<16x16x1xf32>
    %16 = math.rsqrt %15 : vector<16x16x1xf32>
    %17 = vector.broadcast %16 : vector<16x16x1xf32> to vector<16x16x64xf32>
    %18 = arith.mulf %13, %17 : vector<16x16x64xf32>
    %c0_6 = arith.constant 0 : index
    %c0_7 = arith.constant 0 : index
    %19 = vector.load %arg2[%c0_6, %c0_7] : memref<1x64xf32, #tpu.memory_space<vmem>>, vector<1x64xf32>
    %20 = vector.shape_cast %19 : vector<1x64xf32> to vector<1x1x64xf32>
    %21 = vector.broadcast %20 : vector<1x1x64xf32> to vector<16x16x64xf32>
    %22 = arith.mulf %18, %21 : vector<16x16x64xf32>
    %c0_8 = arith.constant 0 : index
    %c0_9 = arith.constant 0 : index
    %23 = vector.load %arg3[%c0_8, %c0_9] : memref<1x64xf32, #tpu.memory_space<vmem>>, vector<1x64xf32>
    %24 = vector.shape_cast %23 : vector<1x64xf32> to vector<1x1x64xf32>
    %25 = vector.broadcast %24 : vector<1x1x64xf32> to vector<16x16x64xf32>
    %26 = arith.addf %22, %25 : vector<16x16x64xf32>
    %27 = vector.shape_cast %26 : vector<16x16x64xf32> to vector<256x64xf32>
    %c0_10 = arith.constant 0 : index
    %c0_11 = arith.constant 0 : index
    %28 = vector.load %arg4[%c0_10, %c0_11] : memref<64x192xf32, #tpu.memory_space<vmem>>, vector<64x192xf32>
    %cst_12 = arith.constant dense<0.000000e+00> : vector<256x192xf32>
    %29 = tpu.matmul %27, %28, %cst_12 {dimension_numbers = #tpu.dot_dimension_numbers<[1], [0], [0], [1], [0, 0, 1, 1], [], []>} : vector<256x64xf32>, vector<64x192xf32>, vector<256x192xf32> -> vector<256x192xf32>
    %c0_13 = arith.constant 0 : index
    %c0_14 = arith.constant 0 : index
    %30 = vector.load %arg5[%c0_13, %c0_14] : memref<1x192xf32, #tpu.memory_space<vmem>>, vector<1x192xf32>
    %31 = vector.broadcast %30 : vector<1x192xf32> to vector<256x192xf32>
    %32 = arith.addf %29, %31 : vector<256x192xf32>
    %33 = vector.extract_strided_slice %32 {offsets = [0, 0], sizes = [256, 64], strides = [1, 1]} : vector<256x192xf32> to vector<256x64xf32>
    %34 = vector.extract_strided_slice %32 {offsets = [0, 64], sizes = [256, 128], strides = [1, 1]} : vector<256x192xf32> to vector<256x128xf32>
    %35 = vector.shape_cast %34 : vector<256x128xf32> to vector<16x16x128xf32>
    %36 = tpu.iota {dimensions = array<i32: 1>} : vector<1x16x128xi32>
    %c13_i32 = arith.constant 13 : i32
    %37 = vector.broadcast %c13_i32 : i32 to vector<1x16x128xi32>
    %38 = arith.cmpi slt, %36, %37 : vector<1x16x128xi32>
    %cst_15 = arith.constant -1.000000e+30 : f32
    %39 = vector.shape_cast %38 : vector<1x16x128xi1> to vector<1x16x128xi1>
    %40 = vector.broadcast %39 : vector<1x16x128xi1> to vector<16x16x128xi1>
    %41 = vector.broadcast %cst_15 : f32 to vector<16x16x128xf32>
    %42 = arith.select %40, %35, %41 : vector<16x16x128xi1>, vector<16x16x128xf32>
    %cst_16 = arith.constant dense<0xFF800000> : vector<16x128xf32>
    %43 = vector.multi_reduction <maximumf>, %42, %cst_16 [1] : vector<16x16x128xf32> to vector<16x128xf32>
    %44 = vector.shape_cast %43 : vector<16x128xf32> to vector<16x1x128xf32>
    %45 = vector.broadcast %44 : vector<16x1x128xf32> to vector<16x16x128xf32>
    %46 = arith.subf %42, %45 : vector<16x16x128xf32>
    %47 = math.exp %46 : vector<16x16x128xf32>
    %cst_17 = arith.constant dense<0.000000e+00> : vector<16x128xf32>
    %48 = vector.multi_reduction <add>, %47, %cst_17 [1] : vector<16x16x128xf32> to vector<16x128xf32>
    %49 = vector.shape_cast %48 : vector<16x128xf32> to vector<16x1x128xf32>
    %50 = tpu.reciprocal %49 {approx = true} : vector<16x1x128xf32> -> vector<16x1x128xf32>
    %51 = vector.broadcast %50 : vector<16x1x128xf32> to vector<16x16x128xf32>
    %52 = arith.mulf %47, %51 : vector<16x16x128xf32>
    %53 = vector.shape_cast %52 : vector<16x16x128xf32> to vector<256x128xf32>
    %c0_18 = arith.constant 0 : index
    %c0_19 = arith.constant 0 : index
    %54 = vector.load %arg6[%c0_18, %c0_19] : memref<128x64xf32, #tpu.memory_space<vmem>>, vector<128x64xf32>
    %cst_20 = arith.constant dense<0.000000e+00> : vector<256x64xf32>
    %55 = tpu.matmul %53, %54, %cst_20 {dimension_numbers = #tpu.dot_dimension_numbers<[1], [0], [0], [1], [0, 0, 1, 1], [], []>} : vector<256x128xf32>, vector<128x64xf32>, vector<256x64xf32> -> vector<256x64xf32>
    %56 = arith.mulf %55, %33 : vector<256x64xf32>
    %57 = vector.shape_cast %56 : vector<256x64xf32> to vector<16x16x64xf32>
    %cst_21 = arith.constant dense<0.000000e+00> : vector<16x64xf32>
    %58 = vector.multi_reduction <add>, %57, %cst_21 [1] : vector<16x16x64xf32> to vector<16x64xf32>
    %c0_22 = arith.constant 0 : index
    %c0_23 = arith.constant 0 : index
    %59 = vector.load %arg7[%c0_22, %c0_23] : memref<16x64xf32, #tpu.memory_space<vmem>>, vector<16x64xf32>
    tpu.vector_store %arg7[%c0_22, %c0_23], %58 {strides = array<i32>} : memref<16x64xf32, #tpu.memory_space<vmem>>, vector<16x64xf32>,
    return
  }
  func.func @transform_0(%arg0: i32) -> (i32, i32, i32) {
    %c0_i32 = arith.constant 0 : i32
    %c0_i32_0 = arith.constant 0 : i32
    %c0_i32_1 = arith.constant 0 : i32
    return %arg0, %c0_i32, %c0_i32_0 : i32, i32, i32
  }
  func.func @transform_1(%arg0: i32) -> (i32, i32) {
    %c0_i32 = arith.constant 0 : i32
    %c0_i32_0 = arith.constant 0 : i32
    %c0_i32_1 = arith.constant 0 : i32
    return %c0_i32, %c0_i32_0 : i32, i32
  }
  func.func @transform_2(%arg0: i32) -> (i32, i32) {
    %c0_i32 = arith.constant 0 : i32
    %c0_i32_0 = arith.constant 0 : i32
    %c0_i32_1 = arith.constant 0 : i32
    return %c0_i32, %c0_i32_0 : i32, i32
  }
  func.func @transform_3(%arg0: i32) -> (i32, i32) {
    %c0_i32 = arith.constant 0 : i32
    %c0_i32_0 = arith.constant 0 : i32
    %c0_i32_1 = arith.constant 0 : i32
    return %c0_i32, %c0_i32_0 : i32, i32
  }
  func.func @transform_4(%arg0: i32) -> (i32, i32) {
    %c0_i32 = arith.constant 0 : i32
    %c0_i32_0 = arith.constant 0 : i32
    %c0_i32_1 = arith.constant 0 : i32
    return %c0_i32, %c0_i32_0 : i32, i32
  }
  func.func @transform_5(%arg0: i32) -> (i32, i32) {
    %c0_i32 = arith.constant 0 : i32
    %c0_i32_0 = arith.constant 0 : i32
    %c0_i32_1 = arith.constant 0 : i32
    return %c0_i32, %c0_i32_0 : i32, i32
  }
  func.func @transform_6(%arg0: i32) -> (i32, i32) {
    %c0_i32 = arith.constant 0 : i32
    %c0_i32_0 = arith.constant 0 : i32
    return %arg0, %c0_i32 : i32, i32
  }
}

module attributes {stable_mosaic.version = 11 : i64} {
  func.func @_attn_pool_kernel(%arg0: i32, %arg1: memref<16x16x64xf32, #tpu.memory_space<vmem>>, %arg2: memref<1x64xf32, #tpu.memory_space<vmem>>, %arg3: memref<1x64xf32, #tpu.memory_space<vmem>>, %arg4: memref<64x192xf32, #tpu.memory_space<vmem>>, %arg5: memref<1x192xf32, #tpu.memory_space<vmem>>, %arg6: memref<128x64xf32, #tpu.memory_space<vmem>>, %arg7: memref<16x64xf32, #tpu.memory_space<vmem>>) attributes {dimension_semantics = [#tpu.dimension_semantics<parallel>], iteration_bounds = array<i64: 2>, scalar_prefetch = 0 : i64, scratch_operands = 0 : i64, tpu.core_type = #tpu.core_type<tc>, window_params = [{transform_indices = @transform_0, window_bounds = array<i64: 16, 16, 64>}, {pipeline_mode = #tpu.pipeline_mode<synchronous>, transform_indices = @transform_1, window_bounds = array<i64: 1, 64>}, {pipeline_mode = #tpu.pipeline_mode<synchronous>, transform_indices = @transform_2, window_bounds = array<i64: 1, 64>}, {pipeline_mode = #tpu.pipeline_mode<synchronous>, transform_indices = @transform_3, window_bounds = array<i64: 64, 192>}, {pipeline_mode = #tpu.pipeline_mode<synchronous>, transform_indices = @transform_4, window_bounds = array<i64: 1, 192>}, {pipeline_mode = #tpu.pipeline_mode<synchronous>, transform_indices = @transform_5, window_bounds = array<i64: 128, 64>}, {transform_indices = @transform_6, window_bounds = array<i64: 16, 64>}]} {
    %c0 = arith.constant 0 : index
    %c0_0 = arith.constant 0 : index
    %c0_1 = arith.constant 0 : index
    %0 = vector.load %arg1[%c0, %c0_0, %c0_1] : memref<16x16x64xf32, #tpu.memory_space<vmem>>, vector<16x16x64xf32>
    %cst = arith.constant dense<0.000000e+00> : vector<16x16xf32>
    %1 = vector.multi_reduction <add>, %0, %cst [2] : vector<16x16x64xf32> to vector<16x16xf32>
    %2 = vector.shape_cast %1 : vector<16x16xf32> to vector<16x16x1xf32>
    %cst_2 = arith.constant 6.400000e+01 : f32
    %3 = vector.broadcast %cst_2 : f32 to vector<16x16x1xf32>
    %4 = arith.divf %2, %3 : vector<16x16x1xf32>
    %5 = vector.broadcast %4 : vector<16x16x1xf32> to vector<16x16x64xf32>
    %6 = arith.subf %0, %5 : vector<16x16x64xf32>
    %7 = arith.mulf %6, %6 : vector<16x16x64xf32>
    %cst_3 = arith.constant dense<0.000000e+00> : vector<16x16xf32>
    %8 = vector.multi_reduction <add>, %7, %cst_3 [2] : vector<16x16x64xf32> to vector<16x16xf32>
    %9 = vector.shape_cast %8 : vector<16x16xf32> to vector<16x16x1xf32>
    %cst_4 = arith.constant 6.400000e+01 : f32
    %10 = vector.broadcast %cst_4 : f32 to vector<16x16x1xf32>
    %11 = arith.divf %9, %10 : vector<16x16x1xf32>
    %12 = vector.broadcast %4 : vector<16x16x1xf32> to vector<16x16x64xf32>
    %13 = arith.subf %0, %12 : vector<16x16x64xf32>
    %cst_5 = arith.constant 9.99999997E-7 : f32
    %14 = vector.broadcast %cst_5 : f32 to vector<16x16x1xf32>
    %15 = arith.addf %11, %14 : vector<16x16x1xf32>
    %16 = math.rsqrt %15 : vector<16x16x1xf32>
    %17 = vector.broadcast %16 : vector<16x16x1xf32> to vector<16x16x64xf32>
    %18 = arith.mulf %13, %17 : vector<16x16x64xf32>
    %c0_6 = arith.constant 0 : index
    %c0_7 = arith.constant 0 : index
    %19 = vector.load %arg2[%c0_6, %c0_7] : memref<1x64xf32, #tpu.memory_space<vmem>>, vector<1x64xf32>
    %20 = vector.shape_cast %19 : vector<1x64xf32> to vector<1x1x64xf32>
    %21 = vector.broadcast %20 : vector<1x1x64xf32> to vector<16x16x64xf32>
    %22 = arith.mulf %18, %21 : vector<16x16x64xf32>
    %c0_8 = arith.constant 0 : index
    %c0_9 = arith.constant 0 : index
    %23 = vector.load %arg3[%c0_8, %c0_9] : memref<1x64xf32, #tpu.memory_space<vmem>>, vector<1x64xf32>
    %24 = vector.shape_cast %23 : vector<1x64xf32> to vector<1x1x64xf32>
    %25 = vector.broadcast %24 : vector<1x1x64xf32> to vector<16x16x64xf32>
    %26 = arith.addf %22, %25 : vector<16x16x64xf32>
    %27 = vector.shape_cast %26 : vector<16x16x64xf32> to vector<256x64xf32>
    %c0_10 = arith.constant 0 : index
    %c0_11 = arith.constant 0 : index
    %28 = vector.load %arg4[%c0_10, %c0_11] : memref<64x192xf32, #tpu.memory_space<vmem>>, vector<64x192xf32>
    %cst_12 = arith.constant dense<0.000000e+00> : vector<256x192xf32>
    %29 = tpu.matmul %27, %28, %cst_12 {dimension_numbers = #tpu.dot_dimension_numbers<[1], [0], [0], [1], [0, 0, 1, 1], [], []>} : vector<256x64xf32>, vector<64x192xf32>, vector<256x192xf32> -> vector<256x192xf32>
    %c0_13 = arith.constant 0 : index
    %c0_14 = arith.constant 0 : index
    %30 = vector.load %arg5[%c0_13, %c0_14] : memref<1x192xf32, #tpu.memory_space<vmem>>, vector<1x192xf32>
    %31 = vector.broadcast %30 : vector<1x192xf32> to vector<256x192xf32>
    %32 = arith.addf %29, %31 : vector<256x192xf32>
    %33 = vector.extract_strided_slice %32 {offsets = [0, 0], sizes = [256, 64], strides = [1, 1]} : vector<256x192xf32> to vector<256x64xf32>
    %34 = vector.extract_strided_slice %32 {offsets = [0, 64], sizes = [256, 128], strides = [1, 1]} : vector<256x192xf32> to vector<256x128xf32>
    %35 = vector.shape_cast %34 : vector<256x128xf32> to vector<16x16x128xf32>
    %36 = tpu.iota {dimensions = array<i32: 1>} : vector<1x16x128xi32>
    %c13_i32 = arith.constant 13 : i32
    %37 = vector.broadcast %c13_i32 : i32 to vector<1x16x128xi32>
    %38 = arith.cmpi slt, %36, %37 : vector<1x16x128xi32>
    %cst_15 = arith.constant -1.000000e+30 : f32
    %39 = vector.shape_cast %38 : vector<1x16x128xi1> to vector<1x16x128xi1>
    %40 = vector.broadcast %39 : vector<1x16x128xi1> to vector<16x16x128xi1>
    %41 = vector.broadcast %cst_15 : f32 to vector<16x16x128xf32>
    %42 = arith.select %40, %35, %41 : vector<16x16x128xi1>, vector<16x16x128xf32>
    %cst_16 = arith.constant dense<0xFF800000> : vector<16x128xf32>
    %43 = vector.multi_reduction <maximumf>, %42, %cst_16 [1] : vector<16x16x128xf32> to vector<16x128xf32>
    %44 = vector.shape_cast %43 : vector<16x128xf32> to vector<16x1x128xf32>
    %45 = vector.broadcast %44 : vector<16x1x128xf32> to vector<16x16x128xf32>
    %46 = arith.subf %42, %45 : vector<16x16x128xf32>
    %47 = math.exp %46 : vector<16x16x128xf32>
    %cst_17 = arith.constant dense<0.000000e+00> : vector<16x128xf32>
    %48 = vector.multi_reduction <add>, %47, %cst_17 [1] : vector<16x16x128xf32> to vector<16x128xf32>
    %49 = vector.shape_cast %48 : vector<16x128xf32> to vector<16x1x128xf32>
    %50 = tpu.reciprocal %49 {approx = true} : vector<16x1x128xf32> -> vector<16x1x128xf32>
    %51 = vector.broadcast %50 : vector<16x1x128xf32> to vector<16x16x128xf32>
    %52 = arith.mulf %47, %51 : vector<16x16x128xf32>
    %53 = vector.shape_cast %52 : vector<16x16x128xf32> to vector<256x128xf32>
    %c0_18 = arith.constant 0 : index
    %c0_19 = arith.constant 0 : index
    %54 = vector.load %arg6[%c0_18, %c0_19] : memref<128x64xf32, #tpu.memory_space<vmem>>, vector<128x64xf32>
    %cst_20 = arith.constant dense<0.000000e+00> : vector<256x64xf32>
    %55 = tpu.matmul %53, %54, %cst_20 {dimension_numbers = #tpu.dot_dimension_numbers<[1], [0], [0], [1], [0, 0, 1, 1], [], []>} : vector<256x128xf32>, vector<128x64xf32>, vector<256x64xf32> -> vector<256x64xf32>
    %56 = arith.mulf %55, %33 : vector<256x64xf32>
    %57 = vector.shape_cast %56 : vector<256x64xf32> to vector<16x16x64xf32>
    %cst_21 = arith.constant dense<0.000000e+00> : vector<16x64xf32>
    %58 = vector.multi_reduction <add>, %57, %cst_21 [1] : vector<16x16x64xf32> to vector<16x64xf32>
    %c0_22 = arith.constant 0 : index
    %c0_23 = arith.constant 0 : index
    %59 = vector.load %arg7[%c0_22, %c0_23] : memref<16x64xf32, #tpu.memory_space<vmem>>, vector<16x64xf32>
    tpu.vector_store %arg7[%c0_22, %c0_23], %58 {strides = array<i32>} : memref<16x64xf32, #tpu.memory_space<vmem>>, vector<16x64xf32>,
    return
  }
  func.func @transform_0(%arg0: i32) -> (i32, i32, i32) {
    %c0_i32 = arith.constant 0 : i32
    %c0_i32_0 = arith.constant 0 : i32
    %c0_i32_1 = arith.constant 0 : i32
    return %arg0, %c0_i32, %c0_i32_0 : i32, i32, i32
  }
  func.func @transform_1(%arg0: i32) -> (i32, i32) {
    %c0_i32 = arith.constant 0 : i32
    %c0_i32_0 = arith.constant 0 : i32
    %c0_i32_1 = arith.constant 0 : i32
    return %c0_i32, %c0_i32_0 : i32, i32
  }
  func.func @transform_2(%arg0: i32) -> (i32, i32) {
    %c0_i32 = arith.constant 0 : i32
    %c0_i32_0 = arith.constant 0 : i32
    %c0_i32_1 = arith.constant 0 : i32
    return %c0_i32, %c0_i32_0 : i32, i32
  }
  func.func @transform_3(%arg0: i32) -> (i32, i32) {
    %c0_i32 = arith.constant 0 : i32
    %c0_i32_0 = arith.constant 0 : i32
    %c0_i32_1 = arith.constant 0 : i32
    return %c0_i32, %c0_i32_0 : i32, i32
  }
  func.func @transform_4(%arg0: i32) -> (i32, i32) {
    %c0_i32 = arith.constant 0 : i32
    %c0_i32_0 = arith.constant 0 : i32
    %c0_i32_1 = arith.constant 0 : i32
    return %c0_i32, %c0_i32_0 : i32, i32
  }
  func.func @transform_5(%arg0: i32) -> (i32, i32) {
    %c0_i32 = arith.constant 0 : i32
    %c0_i32_0 = arith.constant 0 : i32
    %c0_i32_1 = arith.constant 0 : i32
    return %c0_i32, %c0_i32_0 : i32, i32
  }
  func.func @transform_6(%arg0: i32) -> (i32, i32) {
    %c0_i32 = arith.constant 0 : i32
    %c0_i32_0 = arith.constant 0 : i32
    return %arg0, %c0_i32 : i32, i32
  }
}

</mosaic_0001>

<llo_original>
// kernel: tpu_custom_call.1
$region0: #{tpu_custom_call.1}
  #allocation0 [shape = 'u32[]', space=smem, size = 0x4, offset = 0x4, fixed_abs, tag = 'smem constant byte address 0x4 - core index']
  #allocation1 [shape = 'u32[144,128]{1,0:T(1,128)}', space=vmem, size = 0x12000, scoped, tag = 'internal scratch']
  %s0 = inlined_call_operand.hbm [shape: f32[32,16,64], index: 0, kind: input, shape index: {}]
  %s1 = inlined_call_operand.vmem [shape: f32[1,64], index: 1, kind: input, shape index: {}]
  %s2 = inlined_call_operand.vmem [shape: f32[1,64], index: 2, kind: input, shape index: {}]
  %s3 = inlined_call_operand.vmem [shape: f32[64,192], index: 3, kind: input, shape index: {}]
  %s4 = inlined_call_operand.vmem [shape: f32[1,192], index: 4, kind: input, shape index: {}]
  %s5 = inlined_call_operand.vmem [shape: f32[128,64], index: 5, kind: input, shape index: {}]
  %s6 = inlined_call_operand.hbm [shape: f32[32,64], index: 6, kind: output, shape index: {}]
  %s7 = sld [smem:[#allocation0]]
  $region61: #{tpu_custom_call.1} parent=0
    _
  %s9 = ssub.s32 1, %s7
  %s10 = scalar_select 0, %s9, %s7
  $region1: #{tpu_custom_call.1} parent=0
    #allocation2 [shape = 'u8[262144]{0}', space=vmem, size = 0x40000, scoped, tag = 'input window, operand 0']
    #allocation3 [shape = 's32[2]{0}', space=sflag, size = 0x8, scoped, tag = 'scoped memory for tpu_custom_call.1']
    #allocation4 [shape = 's32[2]{0}', space=sflag, size = 0x8, scoped, tag = 'scoped memory for tpu_custom_call.1']
    #allocation5 [shape = 'u8[16384]{0}', space=vmem, size = 0x4000, scoped, tag = 'output window, operand 0']
    %11 = vsyncpa [#allocation3], 0
    %s12 = scalar_lea.sflag [#allocation3], 1
    %13 = vsyncpa %s12, 0
    %14 = vsyncpa [#allocation4], 0
    %s15 = scalar_lea.sflag [#allocation4], 1
    %16 = vsyncpa %s15, 0
    loop: start=0, step=1, limit=4
    $region2: #{tpu_custom_call.1} parent=1 // loop_pre_header
      _
    $region3: #{tpu_custom_call.1} parent=1 // loop_header
      %s18 = sphi 0, %s22
      %p19 = scmp.ge.s32.totalorder %s18, 4
      %s28 = sphi 0, %s30
      %s31 = sphi 0, %s28
      %s32 = sphi 0, %s31
      %s48 = sphi 0, %s32
      %s52 = sphi 0, %s52
      %s54 = sphi 0, %s52
      %s55 = sphi 0, %s54
      %s69 = sphi 0, %s55
      %s73 = sphi 0, %s73
      %s75 = sphi 0, %s73
      %s76 = sphi 0, %s75
      %s90 = sphi 0, %s76
      %s94 = sphi 0, %s94
      %s96 = sphi 0, %s94
      %s97 = sphi 0, %s96
      %s111 = sphi 0, %s97
      %s115 = sphi 0, %s115
      %s117 = sphi 0, %s115
      %s118 = sphi 0, %s117
      %s132 = sphi 0, %s118
      %s136 = sphi 0, %s136
      %s138 = sphi 0, %s136
      %s139 = sphi 0, %s138
      %s153 = sphi 0, %s139
      %s159 = sphi 0, %s161
      %s162 = sphi 0, %s159
      %s163 = sphi 0, %s162
      %s179 = sphi 0, %s163
    $region4: #{tpu_custom_call.1} parent=1 // loop_header_branch
      %21 = sbr.rel (%p19) target = $region8
    $region5: #{tpu_custom_call.1} parent=1 // loop_body
      %s23 = ssub.s32 %s18, 1
      %s24 = ssub.s32 %s18, 2
      %s25 = sadd.s32 %s18, 1
      %s26 = ssub.s32 %s18, %s25
      %p27 = scmp.eq.s32.totalorder %s26, 0
      %s29 = sadd.s32 %s28, 1
      %s30 = scalar_select %p27, %s28, %s29
      %p33 = pneg %p27
      %p34 = scmp.eq.s32.totalorder %s18, 1
      %p35 = por %p33, %p34
      %p36 = scmp.ne.s32.totalorder %s28, %s31
      %p37 = scmp.eq.s32.totalorder %s18, 0
      %p38 = por %p36, %p37
      %p39 = scmp.ne.s32.totalorder %s28, %s31
      %p40 = scmp.eq.s32.totalorder %s23, 1
      %p41 = por %p39, %p40
      %p42 = scmp.ne.s32.totalorder %s31, %s32
      %p43 = scmp.eq.s32.totalorder %s23, 0
      %p44 = por %p42, %p43
      %p45 = scmp.ne.s32.totalorder %s31, %s32
      %p46 = scmp.eq.s32.totalorder %s24, 1
      %p47 = por %p45, %p46
      %p49 = scmp.ne.s32.totalorder %s32, %s48
      %p50 = scmp.eq.s32.totalorder %s24, 0
      %p51 = por %p49, %p50
      %s53 = sadd.s32 %s52, 1
      %p56 = scmp.eq.s32.totalorder %s18, 1
      %p57 = scmp.ne.s32.totalorder %s52, %s54
      %p58 = scmp.eq.s32.totalorder %s18, 0
      %p59 = por %p57, %p58
      %p60 = scmp.ne.s32.totalorder %s52, %s54
      %p61 = scmp.eq.s32.totalorder %s23, 1
      %p62 = por %p60, %p61
      %p63 = scmp.ne.s32.totalorder %s54, %s55
      %p64 = scmp.eq.s32.totalorder %s23, 0
      %p65 = por %p63, %p64
      %p66 = scmp.ne.s32.totalorder %s54, %s55
      %p67 = scmp.eq.s32.totalorder %s24, 1
      %p68 = por %p66, %p67
      %p70 = scmp.ne.s32.totalorder %s55, %s69
      %p71 = scmp.eq.s32.totalorder %s24, 0
      %p72 = por %p70, %p71
      %s74 = sadd.s32 %s73, 1
      %p77 = scmp.eq.s32.totalorder %s18, 1
      %p78 = scmp.ne.s32.totalorder %s73, %s75
      %p79 = scmp.eq.s32.totalorder %s18, 0
      %p80 = por %p78, %p79
      %p81 = scmp.ne.s32.totalorder %s73, %s75
      %p82 = scmp.eq.s32.totalorder %s23, 1
      %p83 = por %p81, %p82
      %p84 = scmp.ne.s32.totalorder %s75, %s76
      %p85 = scmp.eq.s32.totalorder %s23, 0
      %p86 = por %p84, %p85
      %p87 = scmp.ne.s32.totalorder %s75, %s76
      %p88 = scmp.eq.s32.totalorder %s24, 1
      %p89 = por %p87, %p88
      %p91 = scmp.ne.s32.totalorder %s76, %s90
      %p92 = scmp.eq.s32.totalorder %s24, 0
      %p93 = por %p91, %p92
      %s95 = sadd.s32 %s94, 1
      %p98 = scmp.eq.s32.totalorder %s18, 1
      %p99 = scmp.ne.s32.totalorder %s94, %s96
      %p100 = scmp.eq.s32.totalorder %s18, 0
      %p101 = por %p99, %p100
      %p102 = scmp.ne.s32.totalorder %s94, %s96
      %p103 = scmp.eq.s32.totalorder %s23, 1
      %p104 = por %p102, %p103
      %p105 = scmp.ne.s32.totalorder %s96, %s97
      %p106 = scmp.eq.s32.totalorder %s23, 0
      %p107 = por %p105, %p106
      %p108 = scmp.ne.s32.totalorder %s96, %s97
      %p109 = scmp.eq.s32.totalorder %s24, 1
      %p110 = por %p108, %p109
      %p112 = scmp.ne.s32.totalorder %s97, %s111
      %p113 = scmp.eq.s32.totalorder %s24, 0
      %p114 = por %p112, %p113
      %s116 = sadd.s32 %s115, 1
      %p119 = scmp.eq.s32.totalorder %s18, 1
      %p120 = scmp.ne.s32.totalorder %s115, %s117
      %p121 = scmp.eq.s32.totalorder %s18, 0
      %p122 = por %p120, %p121
      %p123 = scmp.ne.s32.totalorder %s115, %s117
      %p124 = scmp.eq.s32.totalorder %s23, 1
      %p125 = por %p123, %p124
      %p126 = scmp.ne.s32.totalorder %s117, %s118
      %p127 = scmp.eq.s32.totalorder %s23, 0
      %p128 = por %p126, %p127
      %p129 = scmp.ne.s32.totalorder %s117, %s118
      %p130 = scmp.eq.s32.totalorder %s24, 1
      %p131 = por %p129, %p130
      %p133 = scmp.ne.s32.totalorder %s118, %s132
      %p134 = scmp.eq.s32.totalorder %s24, 0
      %p135 = por %p133, %p134
      %s137 = sadd.s32 %s136, 1
      %p140 = scmp.eq.s32.totalorder %s18, 1
      %p141 = scmp.ne.s32.totalorder %s136, %s138
      %p142 = scmp.eq.s32.totalorder %s18, 0
      %p143 = por %p141, %p142
      %p144 = scmp.ne.s32.totalorder %s136, %s138
      %p145 = scmp.eq.s32.totalorder %s23, 1
      %p146 = por %p144, %p145
      %p147 = scmp.ne.s32.totalorder %s138, %s139
      %p148 = scmp.eq.s32.totalorder %s23, 0
      %p149 = por %p147, %p148
      %p150 = scmp.ne.s32.totalorder %s138, %s139
      %p151 = scmp.eq.s32.totalorder %s24, 1
      %p152 = por %p150, %p151
      %p154 = scmp.ne.s32.totalorder %s139, %s153
      %p155 = scmp.eq.s32.totalorder %s24, 0
      %p156 = por %p154, %p155
      %s157 = ssub.s32 %s18, %s25
      %p158 = scmp.eq.s32.totalorder %s157, 0
      %s160 = sadd.s32 %s159, 1
      %s161 = scalar_select %p158, %s159, %s160
      %p164 = pneg %p158
      %p165 = scmp.eq.s32.totalorder %s18, 1
      %p166 = por %p164, %p165
      %p167 = scmp.ne.s32.totalorder %s159, %s162
      %p168 = scmp.eq.s32.totalorder %s18, 0
      %p169 = por %p167, %p168
      %p170 = scmp.ne.s32.totalorder %s159, %s162
      %p171 = scmp.eq.s32.totalorder %s23, 1
      %p172 = por %p170, %p171
      %p173 = scmp.ne.s32.totalorder %s162, %s163
      %p174 = scmp.eq.s32.totalorder %s23, 0
      %p175 = por %p173, %p174
      %p176 = scmp.ne.s32.totalorder %s162, %s163
      %p177 = scmp.eq.s32.totalorder %s24, 1
      %p178 = por %p176, %p177
      %p180 = scmp.ne.s32.totalorder %s163, %s179
      %p181 = scmp.eq.s32.totalorder %s24, 0
      %p182 = por %p180, %p181
      %p183 = scmp.le.s32.totalorder 1, %s18
      %p184 = scmp.lt.s32.totalorder %s18, 3
      %p185 = pnand %p183, %p184
      %p186 = pneg %p185
      // Predicated region
      $region9: #{tpu_custom_call.1} parent=5 // pred_check
        _
      $region10: #{tpu_custom_call.1} parent=5 // pred_check_branch
        %188 = sbr.rel (%p185) target = $region12
      $region11: #{tpu_custom_call.1} parent=5 // pred_region
        %s189 = ssub.s32 %s18, 1
        // Predicated region
        $region13: #{tpu_custom_call.1} parent=11 // pred_check
          %p190 = pneg %p65
        $region14: #{tpu_custom_call.1} parent=11 // pred_check_branch
          %192 = sbr.rel (%p190) target = $region16
        $region15: #{tpu_custom_call.1} parent=11 // pred_region
          _
        $region16: #{tpu_custom_call.1} parent=11 // pred_fallthru
          _
        // Predicated region
        $region17: #{tpu_custom_call.1} parent=11 // pred_check
          %p193 = pneg %p86
        $region18: #{tpu_custom_call.1} parent=11 // pred_check_branch
          %195 = sbr.rel (%p193) target = $region20
        $region19: #{tpu_custom_call.1} parent=11 // pred_region
          _
        $region20: #{tpu_custom_call.1} parent=11 // pred_fallthru
          _
        // Predicated region
        $region21: #{tpu_custom_call.1} parent=11 // pred_check
          %p196 = pneg %p107
        $region22: #{tpu_custom_call.1} parent=11 // pred_check_branch
          %198 = sbr.rel (%p196) target = $region24
        $region23: #{tpu_custom_call.1} parent=11 // pred_region
          _
        $region24: #{tpu_custom_call.1} parent=11 // pred_fallthru
          _
        // Predicated region
        $region25: #{tpu_custom_call.1} parent=11 // pred_check
          %p199 = pneg %p128
        $region26: #{tpu_custom_call.1} parent=11 // pred_check_branch
          %201 = sbr.rel (%p199) target = $region28
        $region27: #{tpu_custom_call.1} parent=11 // pred_region
          _
        $region28: #{tpu_custom_call.1} parent=11 // pred_fallthru
          _
        // Predicated region
        $region29: #{tpu_custom_call.1} parent=11 // pred_check
          %p202 = pneg %p149
        $region30: #{tpu_custom_call.1} parent=11 // pred_check_branch
          %204 = sbr.rel (%p202) target = $region32
        $region31: #{tpu_custom_call.1} parent=11 // pred_region
          _
        $region32: #{tpu_custom_call.1} parent=11 // pred_fallthru
          _
      $region12: #{tpu_custom_call.1} parent=5 // pred_fallthru
        _
      %p205 = scmp.lt.s32.totalorder %s18, 2
      // Predicated region
      $region33: #{tpu_custom_call.1} parent=5 // pred_check
        %p206 = pneg %p205
      $region34: #{tpu_custom_call.1} parent=5 // pred_check_branch
        %208 = sbr.rel (%p206) target = $region36
      $region35: #{tpu_custom_call.1} parent=5 // pred_region
        // Predicated region
        $region37: #{tpu_custom_call.1} parent=35 // pred_check
          %p209 = pneg %p38
        $region38: #{tpu_custom_call.1} parent=35 // pred_check_branch
          %211 = sbr.rel (%p209) target = $region40
        $region39: #{tpu_custom_call.1} parent=35 // pred_region
          %s212 = sand.u32 %s28, 1
          %s213 = scalar_lea.sflag [#allocation3], %s212
          %s214 = sand.u32 %s28, 1
          %s215 = smul.addr %s214, 256
          %s216 = scalar_lea.vmem [#allocation2], %s215
          %s217 = smul.u32 16, %s18
          %s219 = ssub.s32 4096, 4096
          %220 = vsyncadd %s213, %s219
          %s221 = smul.addr %s217, 2
          %s222 = smul.addr %s221, 128
          %s223 = scalar_lea.hbm %s0, %s222
          %s224 = sshll.u32 %s216, 4
          %s225 = int_to_ptr.vmem [resolvable:$true] %s224
          %230 = dma.hbm_to_vmem [thread:$0]  %s223, 4096, %s225, %s213, 128, 128, 8
        $region40: #{tpu_custom_call.1} parent=35 // pred_fallthru
          _
      $region36: #{tpu_custom_call.1} parent=5 // pred_fallthru
        _
      %p231 = scmp.le.s32.totalorder 1, %s18
      %p232 = scmp.lt.s32.totalorder %s18, 3
      %p233 = pnand %p231, %p232
      %p234 = pneg %p233
      // Predicated region
      $region41: #{tpu_custom_call.1} parent=5 // pred_check
        _
      $region42: #{tpu_custom_call.1} parent=5 // pred_check_branch
        %236 = sbr.rel (%p233) target = $region44
      $region43: #{tpu_custom_call.1} parent=5 // pred_region
        %s237 = ssub.s32 %s18, 1
        %s238 = sand.u32 %s31, 1
        %s239 = scalar_lea.sflag [#allocation3], %s238
        %s240 = sand.u32 %s31, 1
        %s241 = smul.addr %s240, 256
        %s242 = scalar_lea.vmem [#allocation2], %s241
        // Predicated region
        $region45: #{tpu_custom_call.1} parent=43 // pred_check
          %p243 = pneg %p44
        $region46: #{tpu_custom_call.1} parent=43 // pred_check_branch
          %245 = sbr.rel (%p243) target = $region48
        $region47: #{tpu_custom_call.1} parent=43 // pred_region
          %246 = dma.done %s239, 4096
        $region48: #{tpu_custom_call.1} parent=43 // pred_fallthru
          _
        %s247 = sand.u32 %s31, 1
        %s248 = scalar_lea.sflag [#allocation3], %s247
        %s249 = sand.u32 %s31, 1
        %s250 = smul.addr %s249, 256
        %s251 = scalar_lea.vmem [#allocation2], %s250
        %p252 = pneg %p44
        %p253 = pneg %p41
        %p254 = pneg %p65
        %p255 = pneg %p62
        %p256 = pneg %p86
        %p257 = pneg %p83
        %p258 = pneg %p107
        %p259 = pneg %p104
        %p260 = pneg %p128
        %p261 = pneg %p125
        %p262 = pneg %p149
        %p263 = pneg %p146
        %p264 = pneg %p175
        %p265 = pneg %p172
        %s266 = sand.u32 %s162, 1
        %s267 = scalar_lea.sflag [#allocation4], %s266
        %s268 = sand.u32 %s162, 1
        %s269 = smul.addr %s268, 16
        %s270 = scalar_lea.vmem [#allocation5], %s269
        %s271 = smul.u32 16, %s23
        %s272 = smul.u32 2, %s23
        %v273 = vld [vmem:[%s242] sm:$0xff]
        %v274 = vld [vmem:[%s242 + $0x8] sm:$0xff]
        %v275 = vld [vmem:[%s242 + $0x10] sm:$0xff]
        %v276 = vld [vmem:[%s242 + $0x18] sm:$0xff]
        %v277 = vld [vmem:[%s242 + $0x20] sm:$0xff]
        %v278 = vld [vmem:[%s242 + $0x28] sm:$0xff]
        %v279 = vld [vmem:[%s242 + $0x30] sm:$0xff]
        %v280 = vld [vmem:[%s242 + $0x38] sm:$0xff]
        %v281 = vld [vmem:[%s242 + $0x40] sm:$0xff]
        %v282 = vld [vmem:[%s242 + $0x48] sm:$0xff]
        %v283 = vld [vmem:[%s242 + $0x50] sm:$0xff]
        %v284 = vld [vmem:[%s242 + $0x58] sm:$0xff]
        %v285 = vld [vmem:[%s242 + $0x60] sm:$0xff]
        %v286 = vld [vmem:[%s242 + $0x68] sm:$0xff]
        %v287 = vld [vmem:[%s242 + $0x70] sm:$0xff]
        %v288 = vld [vmem:[%s242 + $0x78] sm:$0xff]
        %v289 = vld [vmem:[%s242 + $0x80] sm:$0xff]
        %v290 = vld [vmem:[%s242 + $0x88] sm:$0xff]
        %v291 = vld [vmem:[%s242 + $0x90] sm:$0xff]
        %v292 = vld [vmem:[%s242 + $0x98] sm:$0xff]
        %v293 = vld [vmem:[%s242 + $0xa0] sm:$0xff]
        %v294 = vld [vmem:[%s242 + $0xa8] sm:$0xff]
        %v295 = vld [vmem:[%s242 + $0xb0] sm:$0xff]
        %v296 = vld [vmem:[%s242 + $0xb8] sm:$0xff]
        %v297 = vld [vmem:[%s242 + $0xc0] sm:$0xff]
        %v298 = vld [vmem:[%s242 + $0xc8] sm:$0xff]
        %v299 = vld [vmem:[%s242 + $0xd0] sm:$0xff]
        %v300 = vld [vmem:[%s242 + $0xd8] sm:$0xff]
        %v301 = vld [vmem:[%s242 + $0xe0] sm:$0xff]
        %v302 = vld [vmem:[%s242 + $0xe8] sm:$0xff]
        %v303 = vld [vmem:[%s242 + $0xf0] sm:$0xff]
        %v304 = vld [vmem:[%s242 + $0xf8] sm:$0xff]
        %vm305 = vcmask 523264
        %v306 = vsel %vm305, %v273, 0.0
        %307 = vadd.xlane.f32.xlu0 %v306
        %v308 = vpop.xlane.xlu0 %307
        %v309 = vsel %vm305, %v274, 0.0
        %310 = vadd.xlane.f32.xlu0 %v309
        %v311 = vpop.xlane.xlu0 %310
        %v312 = vsel %vm305, %v275, 0.0
        %313 = vadd.xlane.f32.xlu0 %v312
        %v314 = vpop.xlane.xlu0 %313
        %v315 = vsel %vm305, %v276, 0.0
        %316 = vadd.xlane.f32.xlu0 %v315
        %v317 = vpop.xlane.xlu0 %316
        %v318 = vsel %vm305, %v277, 0.0
        %319 = vadd.xlane.f32.xlu0 %v318
        %v320 = vpop.xlane.xlu0 %319
        %v321 = vsel %vm305, %v278, 0.0
        %322 = vadd.xlane.f32.xlu0 %v321
        %v323 = vpop.xlane.xlu0 %322
        %v324 = vsel %vm305, %v279, 0.0
        %325 = vadd.xlane.f32.xlu0 %v324
        %v326 = vpop.xlane.xlu0 %325
        %v327 = vsel %vm305, %v280, 0.0
        %328 = vadd.xlane.f32.xlu0 %v327
        %v329 = vpop.xlane.xlu0 %328
        %v330 = vsel %vm305, %v281, 0.0
        %331 = vadd.xlane.f32.xlu0 %v330
        %v332 = vpop.xlane.xlu0 %331
        %v333 = vsel %vm305, %v282, 0.0
        %334 = vadd.xlane.f32.xlu0 %v333
        %v335 = vpop.xlane.xlu0 %334
        %v336 = vsel %vm305, %v283, 0.0
        %337 = vadd.xlane.f32.xlu0 %v336
        %v338 = vpop.xlane.xlu0 %337
        %v339 = vsel %vm305, %v284, 0.0
        %340 = vadd.xlane.f32.xlu0 %v339
        %v341 = vpop.xlane.xlu0 %340
        %v342 = vsel %vm305, %v285, 0.0
        %343 = vadd.xlane.f32.xlu0 %v342
        %v344 = vpop.xlane.xlu0 %343
        %v345 = vsel %vm305, %v286, 0.0
        %346 = vadd.xlane.f32.xlu0 %v345
        %v347 = vpop.xlane.xlu0 %346
        %v348 = vsel %vm305, %v287, 0.0
        %349 = vadd.xlane.f32.xlu0 %v348
        %v350 = vpop.xlane.xlu0 %349
        %v351 = vsel %vm305, %v288, 0.0
        %352 = vadd.xlane.f32.xlu0 %v351
        %v353 = vpop.xlane.xlu0 %352
        %v354 = vsel %vm305, %v289, 0.0
        %355 = vadd.xlane.f32.xlu0 %v354
        %v356 = vpop.xlane.xlu0 %355
        %v357 = vsel %vm305, %v290, 0.0
        %358 = vadd.xlane.f32.xlu0 %v357
        %v359 = vpop.xlane.xlu0 %358
        %v360 = vsel %vm305, %v291, 0.0
        %361 = vadd.xlane.f32.xlu0 %v360
        %v362 = vpop.xlane.xlu0 %361
        %v363 = vsel %vm305, %v292, 0.0
        %364 = vadd.xlane.f32.xlu0 %v363
        %v365 = vpop.xlane.xlu0 %364
        %v366 = vsel %vm305, %v293, 0.0
        %367 = vadd.xlane.f32.xlu0 %v366
        %v368 = vpop.xlane.xlu0 %367
        %v369 = vsel %vm305, %v294, 0.0
        %370 = vadd.xlane.f32.xlu0 %v369
        %v371 = vpop.xlane.xlu0 %370
        %v372 = vsel %vm305, %v295, 0.0
        %373 = vadd.xlane.f32.xlu0 %v372
        %v374 = vpop.xlane.xlu0 %373
        %v375 = vsel %vm305, %v296, 0.0
        %376 = vadd.xlane.f32.xlu0 %v375
        %v377 = vpop.xlane.xlu0 %376
        %v378 = vsel %vm305, %v297, 0.0
        %379 = vadd.xlane.f32.xlu0 %v378
        %v380 = vpop.xlane.xlu0 %379
        %v381 = vsel %vm305, %v298, 0.0
        %382 = vadd.xlane.f32.xlu0 %v381
        %v383 = vpop.xlane.xlu0 %382
        %v384 = vsel %vm305, %v299, 0.0
        %385 = vadd.xlane.f32.xlu0 %v384
        %v386 = vpop.xlane.xlu0 %385
        %v387 = vsel %vm305, %v300, 0.0
        %388 = vadd.xlane.f32.xlu0 %v387
        %v389 = vpop.xlane.xlu0 %388
        %v390 = vsel %vm305, %v301, 0.0
        %391 = vadd.xlane.f32.xlu0 %v390
        %v392 = vpop.xlane.xlu0 %391
        %v393 = vsel %vm305, %v302, 0.0
        %394 = vadd.xlane.f32.xlu0 %v393
        %v395 = vpop.xlane.xlu0 %394
        %v396 = vsel %vm305, %v303, 0.0
        %397 = vadd.xlane.f32.xlu0 %v396
        %v398 = vpop.xlane.xlu0 %397
        %v399 = vsel %vm305, %v304, 0.0
        %400 = vadd.xlane.f32.xlu0 %v399
        %v401 = vpop.xlane.xlu0 %400
        %v402 = vrcp.pop 64.0
        %v403 = vmul.f32 %v308, %v402
        %v404 = vmul.f32 %v311, %v402
        %v405 = vmul.f32 %v314, %v402
        %v406 = vmul.f32 %v317, %v402
        %v407 = vmul.f32 %v320, %v402
        %v408 = vmul.f32 %v323, %v402
        %v409 = vmul.f32 %v326, %v402
        %v410 = vmul.f32 %v329, %v402
        %v411 = vmul.f32 %v332, %v402
        %v412 = vmul.f32 %v335, %v402
        %v413 = vmul.f32 %v338, %v402
        %v414 = vmul.f32 %v341, %v402
        %v415 = vmul.f32 %v344, %v402
        %v416 = vmul.f32 %v347, %v402
        %v417 = vmul.f32 %v350, %v402
        %v418 = vmul.f32 %v353, %v402
        %v419 = vmul.f32 %v356, %v402
        %v420 = vmul.f32 %v359, %v402
        %v421 = vmul.f32 %v362, %v402
        %v422 = vmul.f32 %v365, %v402
        %v423 = vmul.f32 %v368, %v402
        %v424 = vmul.f32 %v371, %v402
        %v425 = vmul.f32 %v374, %v402
        %v426 = vmul.f32 %v377, %v402
        %v427 = vmul.f32 %v380, %v402
        %v428 = vmul.f32 %v383, %v402
        %v429 = vmul.f32 %v386, %v402
        %v430 = vmul.f32 %v389, %v402
        %v431 = vmul.f32 %v392, %v402
        %v432 = vmul.f32 %v395, %v402
        %v433 = vmul.f32 %v398, %v402
        %v434 = vmul.f32 %v401, %v402
        %v435 = vsub.f32 %v273, %v403
        %v436 = vsub.f32 %v274, %v404
        %v437 = vsub.f32 %v275, %v405
        %v438 = vsub.f32 %v276, %v406
        %v439 = vsub.f32 %v277, %v407
        %v440 = vsub.f32 %v278, %v408
        %v441 = vsub.f32 %v279, %v409
        %v442 = vsub.f32 %v280, %v410
        %v443 = vsub.f32 %v281, %v411
        %v444 = vsub.f32 %v282, %v412
        %v445 = vsub.f32 %v283, %v413
        %v446 = vsub.f32 %v284, %v414
        %v447 = vsub.f32 %v285, %v415
        %v448 = vsub.f32 %v286, %v416
        %v449 = vsub.f32 %v287, %v417
        %v450 = vsub.f32 %v288, %v418
        %v451 = vsub.f32 %v289, %v419
        %v452 = vsub.f32 %v290, %v420
        %v453 = vsub.f32 %v291, %v421
        %v454 = vsub.f32 %v292, %v422
        %v455 = vsub.f32 %v293, %v423
        %v456 = vsub.f32 %v294, %v424
        %v457 = vsub.f32 %v295, %v425
        %v458 = vsub.f32 %v296, %v426
        %v459 = vsub.f32 %v297, %v427
        %v460 = vsub.f32 %v298, %v428
        %v461 = vsub.f32 %v299, %v429
        %v462 = vsub.f32 %v300, %v430
        %v463 = vsub.f32 %v301, %v431
        %v464 = vsub.f32 %v302, %v432
        %v465 = vsub.f32 %v303, %v433
        %v466 = vsub.f32 %v304, %v434
        %v467 = vmul.f32 %v435, %v435
        %v468 = vmul.f32 %v436, %v436
        %v469 = vmul.f32 %v437, %v437
        %v470 = vmul.f32 %v438, %v438
        %v471 = vmul.f32 %v439, %v439
        %v472 = vmul.f32 %v440, %v440
        %v473 = vmul.f32 %v441, %v441
        %v474 = vmul.f32 %v442, %v442
        %v475 = vmul.f32 %v443, %v443
        %v476 = vmul.f32 %v444, %v444
        %v477 = vmul.f32 %v445, %v445
        %v478 = vmul.f32 %v446, %v446
        %v479 = vmul.f32 %v447, %v447
        %v480 = vmul.f32 %v448, %v448
        %v481 = vmul.f32 %v449, %v449
        %v482 = vmul.f32 %v450, %v450
        %v483 = vmul.f32 %v451, %v451
        %v484 = vmul.f32 %v452, %v452
        %v485 = vmul.f32 %v453, %v453
        %v486 = vmul.f32 %v454, %v454
        %v487 = vmul.f32 %v455, %v455
        %v488 = vmul.f32 %v456, %v456
        %v489 = vmul.f32 %v457, %v457
        %v490 = vmul.f32 %v458, %v458
        %v491 = vmul.f32 %v459, %v459
        %v492 = vmul.f32 %v460, %v460
        %v493 = vmul.f32 %v461, %v461
        %v494 = vmul.f32 %v462, %v462
        %v495 = vmul.f32 %v463, %v463
        %v496 = vmul.f32 %v464, %v464
        %v497 = vmul.f32 %v465, %v465
        %v498 = vmul.f32 %v466, %v466
        %v499 = vsel %vm305, %v467, 0.0
        %500 = vadd.xlane.f32.xlu0 %v499
        %v501 = vpop.xlane.xlu0 %500
        %v502 = vsel %vm305, %v468, 0.0
        %503 = vadd.xlane.f32.xlu0 %v502
        %v504 = vpop.xlane.xlu0 %503
        %v505 = vsel %vm305, %v469, 0.0
        %506 = vadd.xlane.f32.xlu0 %v505
        %v507 = vpop.xlane.xlu0 %506
        %v508 = vsel %vm305, %v470, 0.0
        %509 = vadd.xlane.f32.xlu0 %v508
        %v510 = vpop.xlane.xlu0 %509
        %v511 = vsel %vm305, %v471, 0.0
        %512 = vadd.xlane.f32.xlu0 %v511
        %v513 = vpop.xlane.xlu0 %512
        %v514 = vsel %vm305, %v472, 0.0
        %515 = vadd.xlane.f32.xlu0 %v514
        %v516 = vpop.xlane.xlu0 %515
        %v517 = vsel %vm305, %v473, 0.0
        %518 = vadd.xlane.f32.xlu0 %v517
        %v519 = vpop.xlane.xlu0 %518
        %v520 = vsel %vm305, %v474, 0.0
        %521 = vadd.xlane.f32.xlu0 %v520
        %v522 = vpop.xlane.xlu0 %521
        %v523 = vsel %vm305, %v475, 0.0
        %524 = vadd.xlane.f32.xlu0 %v523
        %v525 = vpop.xlane.xlu0 %524
        %v526 = vsel %vm305, %v476, 0.0
        %527 = vadd.xlane.f32.xlu0 %v526
        %v528 = vpop.xlane.xlu0 %527
        %v529 = vsel %vm305, %v477, 0.0
        %530 = vadd.xlane.f32.xlu0 %v529
        %v531 = vpop.xlane.xlu0 %530
        %v532 = vsel %vm305, %v478, 0.0
        %533 = vadd.xlane.f32.xlu0 %v532
        %v534 = vpop.xlane.xlu0 %533
        %v535 = vsel %vm305, %v479, 0.0
        %536 = vadd.xlane.f32.xlu0 %v535
        %v537 = vpop.xlane.xlu0 %536
        %v538 = vsel %vm305, %v480, 0.0
        %539 = vadd.xlane.f32.xlu0 %v538
        %v540 = vpop.xlane.xlu0 %539
        %v541 = vsel %vm305, %v481, 0.0
        %542 = vadd.xlane.f32.xlu0 %v541
        %v543 = vpop.xlane.xlu0 %542
        %v544 = vsel %vm305, %v482, 0.0
        %545 = vadd.xlane.f32.xlu0 %v544
        %v546 = vpop.xlane.xlu0 %545
        %v547 = vsel %vm305, %v483, 0.0
        %548 = vadd.xlane.f32.xlu0 %v547
        %v549 = vpop.xlane.xlu0 %548
        %v550 = vsel %vm305, %v484, 0.0
        %551 = vadd.xlane.f32.xlu0 %v550
        %v552 = vpop.xlane.xlu0 %551
        %v553 = vsel %vm305, %v485, 0.0
        %554 = vadd.xlane.f32.xlu0 %v553
        %v555 = vpop.xlane.xlu0 %554
        %v556 = vsel %vm305, %v486, 0.0
        %557 = vadd.xlane.f32.xlu0 %v556
        %v558 = vpop.xlane.xlu0 %557
        %v559 = vsel %vm305, %v487, 0.0
        %560 = vadd.xlane.f32.xlu0 %v559
        %v561 = vpop.xlane.xlu0 %560
        %v562 = vsel %vm305, %v488, 0.0
        %563 = vadd.xlane.f32.xlu0 %v562
        %v564 = vpop.xlane.xlu0 %563
        %v565 = vsel %vm305, %v489, 0.0
        %566 = vadd.xlane.f32.xlu0 %v565
        %v567 = vpop.xlane.xlu0 %566
        %v568 = vsel %vm305, %v490, 0.0
        %569 = vadd.xlane.f32.xlu0 %v568
        %v570 = vpop.xlane.xlu0 %569
        %v571 = vsel %vm305, %v491, 0.0
        %572 = vadd.xlane.f32.xlu0 %v571
        %v573 = vpop.xlane.xlu0 %572
        %v574 = vsel %vm305, %v492, 0.0
        %575 = vadd.xlane.f32.xlu0 %v574
        %v576 = vpop.xlane.xlu0 %575
        %v577 = vsel %vm305, %v493, 0.0
        %578 = vadd.xlane.f32.xlu0 %v577
        %v579 = vpop.xlane.xlu0 %578
        %v580 = vsel %vm305, %v494, 0.0
        %581 = vadd.xlane.f32.xlu0 %v580
        %v582 = vpop.xlane.xlu0 %581
        %v583 = vsel %vm305, %v495, 0.0
        %584 = vadd.xlane.f32.xlu0 %v583
        %v585 = vpop.xlane.xlu0 %584
        %v586 = vsel %vm305, %v496, 0.0
        %587 = vadd.xlane.f32.xlu0 %v586
        %v588 = vpop.xlane.xlu0 %587
        %v589 = vsel %vm305, %v497, 0.0
        %590 = vadd.xlane.f32.xlu0 %v589
        %v591 = vpop.xlane.xlu0 %590
        %v592 = vsel %vm305, %v498, 0.0
        %593 = vadd.xlane.f32.xlu0 %v592
        %v594 = vpop.xlane.xlu0 %593
        %v595 = vmul.f32 %v501, %v402
        %v596 = vmul.f32 %v504, %v402
        %v597 = vmul.f32 %v507, %v402
        %v598 = vmul.f32 %v510, %v402
        %v599 = vmul.f32 %v513, %v402
        %v600 = vmul.f32 %v516, %v402
        %v601 = vmul.f32 %v519, %v402
        %v602 = vmul.f32 %v522, %v402
        %v603 = vmul.f32 %v525, %v402
        %v604 = vmul.f32 %v528, %v402
        %v605 = vmul.f32 %v531, %v402
        %v606 = vmul.f32 %v534, %v402
        %v607 = vmul.f32 %v537, %v402
        %v608 = vmul.f32 %v540, %v402
        %v609 = vmul.f32 %v543, %v402
        %v610 = vmul.f32 %v546, %v402
        %v611 = vmul.f32 %v549, %v402
        %v612 = vmul.f32 %v552, %v402
        %v613 = vmul.f32 %v555, %v402
        %v614 = vmul.f32 %v558, %v402
        %v615 = vmul.f32 %v561, %v402
        %v616 = vmul.f32 %v564, %v402
        %v617 = vmul.f32 %v567, %v402
        %v618 = vmul.f32 %v570, %v402
        %v619 = vmul.f32 %v573, %v402
        %v620 = vmul.f32 %v576, %v402
        %v621 = vmul.f32 %v579, %v402
        %v622 = vmul.f32 %v582, %v402
        %v623 = vmul.f32 %v585, %v402
        %v624 = vmul.f32 %v588, %v402
        %v625 = vmul.f32 %v591, %v402
        %v626 = vmul.f32 %v594, %v402
        %v627 = vadd.f32 %v595, 1e-06
        %v628 = vadd.f32 %v596, 1e-06
        %v629 = vadd.f32 %v597, 1e-06
        %v630 = vadd.f32 %v598, 1e-06
        %v631 = vadd.f32 %v599, 1e-06
        %v632 = vadd.f32 %v600, 1e-06
        %v633 = vadd.f32 %v601, 1e-06
        %v634 = vadd.f32 %v602, 1e-06
        %v635 = vadd.f32 %v603, 1e-06
        %v636 = vadd.f32 %v604, 1e-06
        %v637 = vadd.f32 %v605, 1e-06
        %v638 = vadd.f32 %v606, 1e-06
        %v639 = vadd.f32 %v607, 1e-06
        %v640 = vadd.f32 %v608, 1e-06
        %v641 = vadd.f32 %v609, 1e-06
        %v642 = vadd.f32 %v610, 1e-06
        %v643 = vadd.f32 %v611, 1e-06
        %v644 = vadd.f32 %v612, 1e-06
        %v645 = vadd.f32 %v613, 1e-06
        %v646 = vadd.f32 %v614, 1e-06
        %v647 = vadd.f32 %v615, 1e-06
        %v648 = vadd.f32 %v616, 1e-06
        %v649 = vadd.f32 %v617, 1e-06
        %v650 = vadd.f32 %v618, 1e-06
        %v651 = vadd.f32 %v619, 1e-06
        %v652 = vadd.f32 %v620, 1e-06
        %v653 = vadd.f32 %v621, 1e-06
        %v654 = vadd.f32 %v622, 1e-06
        %v655 = vadd.f32 %v623, 1e-06
        %v656 = vadd.f32 %v624, 1e-06
        %v657 = vadd.f32 %v625, 1e-06
        %v658 = vadd.f32 %v626, 1e-06
        %v659 = vrsqrt.pop %v627
        %v660 = vrsqrt.pop %v628
        %v661 = vrsqrt.pop %v629
        %v662 = vrsqrt.pop %v630
        %v663 = vrsqrt.pop %v631
        %v664 = vrsqrt.pop %v632
        %v665 = vrsqrt.pop %v633
        %v666 = vrsqrt.pop %v634
        %v667 = vrsqrt.pop %v635
        %v668 = vrsqrt.pop %v636
        %v669 = vrsqrt.pop %v637
        %v670 = vrsqrt.pop %v638
        %v671 = vrsqrt.pop %v639
        %v672 = vrsqrt.pop %v640
        %v673 = vrsqrt.pop %v641
        %v674 = vrsqrt.pop %v642
        %v675 = vrsqrt.pop %v643
        %v676 = vrsqrt.pop %v644
        %v677 = vrsqrt.pop %v645
        %v678 = vrsqrt.pop %v646
        %v679 = vrsqrt.pop %v647
        %v680 = vrsqrt.pop %v648
        %v681 = vrsqrt.pop %v649
        %v682 = vrsqrt.pop %v650
        %v683 = vrsqrt.pop %v651
        %v684 = vrsqrt.pop %v652
        %v685 = vrsqrt.pop %v653
        %v686 = vrsqrt.pop %v654
        %v687 = vrsqrt.pop %v655
        %v688 = vrsqrt.pop %v656
        %v689 = vrsqrt.pop %v657
        %v690 = vrsqrt.pop %v658
        %v691 = vmul.f32 %v435, %v659
        %v692 = vmul.f32 %v436, %v660
        %v693 = vmul.f32 %v437, %v661
        %v694 = vmul.f32 %v438, %v662
        %v695 = vmul.f32 %v439, %v663
        %v696 = vmul.f32 %v440, %v664
        %v697 = vmul.f32 %v441, %v665
        %v698 = vmul.f32 %v442, %v666
        %v699 = vmul.f32 %v443, %v667
        %v700 = vmul.f32 %v444, %v668
        %v701 = vmul.f32 %v445, %v669
        %v702 = vmul.f32 %v446, %v670
        %v703 = vmul.f32 %v447, %v671
        %v704 = vmul.f32 %v448, %v672
        %v705 = vmul.f32 %v449, %v673
        %v706 = vmul.f32 %v450, %v674
        %v707 = vmul.f32 %v451, %v675
        %v708 = vmul.f32 %v452, %v676
        %v709 = vmul.f32 %v453, %v677
        %v710 = vmul.f32 %v454, %v678
        %v711 = vmul.f32 %v455, %v679
        %v712 = vmul.f32 %v456, %v680
        %v713 = vmul.f32 %v457, %v681
        %v714 = vmul.f32 %v458, %v682
        %v715 = vmul.f32 %v459, %v683
        %v716 = vmul.f32 %v460, %v684
        %v717 = vmul.f32 %v461, %v685
        %v718 = vmul.f32 %v462, %v686
        %v719 = vmul.f32 %v463, %v687
        %v720 = vmul.f32 %v464, %v688
        %v721 = vmul.f32 %v465, %v689
        %v722 = vmul.f32 %v466, %v690
        %v723 = vld [vmem:[%s1] sm:$0x1]
        %v725 = vlaneseq
        %v726 = vshrl.u32 %v725, 7
        %v727 = vsub.s32 0, %v726
        %v728 = vrot.slane %v723, %v727
        %v730 = vmul.f32 %v691, %v728
        %v731 = vmul.f32 %v692, %v728
        %v732 = vmul.f32 %v693, %v728
        %v733 = vmul.f32 %v694, %v728
        %v734 = vmul.f32 %v695, %v728
        %v735 = vmul.f32 %v696, %v728
        %v736 = vmul.f32 %v697, %v728
        %v737 = vmul.f32 %v698, %v728
        %v738 = vmul.f32 %v699, %v728
        %v739 = vmul.f32 %v700, %v728
        %v740 = vmul.f32 %v701, %v728
        %v741 = vmul.f32 %v702, %v728
        %v742 = vmul.f32 %v703, %v728
        %v743 = vmul.f32 %v704, %v728
        %v744 = vmul.f32 %v705, %v728
        %v745 = vmul.f32 %v706, %v728
        %v746 = vmul.f32 %v707, %v728
        %v747 = vmul.f32 %v708, %v728
        %v748 = vmul.f32 %v709, %v728
        %v749 = vmul.f32 %v710, %v728
        %v750 = vmul.f32 %v711, %v728
        %v751 = vmul.f32 %v712, %v728
        %v752 = vmul.f32 %v713, %v728
        %v753 = vmul.f32 %v714, %v728
        %v754 = vmul.f32 %v715, %v728
        %v755 = vmul.f32 %v716, %v728
        %v756 = vmul.f32 %v717, %v728
        %v757 = vmul.f32 %v718, %v728
        %v758 = vmul.f32 %v719, %v728
        %v759 = vmul.f32 %v720, %v728
        %v760 = vmul.f32 %v721, %v728
        %v761 = vmul.f32 %v722, %v728
        %v762 = vld [vmem:[%s2] sm:$0x1]
        %v764 = vlaneseq
        %v765 = vshrl.u32 %v764, 7
        %v766 = vsub.s32 0, %v765
        %v767 = vrot.slane %v762, %v766
        %v769 = vadd.f32 %v730, %v767
        %v770 = vadd.f32 %v731, %v767
        %v771 = vadd.f32 %v732, %v767
        %v772 = vadd.f32 %v733, %v767
        %v773 = vadd.f32 %v734, %v767
        %v774 = vadd.f32 %v735, %v767
        %v775 = vadd.f32 %v736, %v767
        %v776 = vadd.f32 %v737, %v767
        %v777 = vadd.f32 %v738, %v767
        %v778 = vadd.f32 %v739, %v767
        %v779 = vadd.f32 %v740, %v767
        %v780 = vadd.f32 %v741, %v767
        %v781 = vadd.f32 %v742, %v767
        %v782 = vadd.f32 %v743, %v767
        %v783 = vadd.f32 %v744, %v767
        %v784 = vadd.f32 %v745, %v767
        %v785 = vadd.f32 %v746, %v767
        %v786 = vadd.f32 %v747, %v767
        %v787 = vadd.f32 %v748, %v767
        %v788 = vadd.f32 %v749, %v767
        %v789 = vadd.f32 %v750, %v767
        %v790 = vadd.f32 %v751, %v767
        %v791 = vadd.f32 %v752, %v767
        %v792 = vadd.f32 %v753, %v767
        %v793 = vadd.f32 %v754, %v767
        %v794 = vadd.f32 %v755, %v767
        %v795 = vadd.f32 %v756, %v767
        %v796 = vadd.f32 %v757, %v767
        %v797 = vadd.f32 %v758, %v767
        %v798 = vadd.f32 %v759, %v767
        %v799 = vadd.f32 %v760, %v767
        %v800 = vadd.f32 %v761, %v767
        %v801 = vld [vmem:[%s3] sm:$0xff]
        %v802 = vld [vmem:[%s3 + $0x8] sm:$0xff]
        %v803 = vld [vmem:[%s3 + $0x10] sm:$0xff]
        %v804 = vld [vmem:[%s3 + $0x18] sm:$0xff]
        %v805 = vld [vmem:[%s3 + $0x20] sm:$0xff]
        %v806 = vld [vmem:[%s3 + $0x28] sm:$0xff]
        %v807 = vld [vmem:[%s3 + $0x30] sm:$0xff]
        %v808 = vld [vmem:[%s3 + $0x38] sm:$0xff]
        %v809 = vld [vmem:[%s3 + $0x40] sm:$0xff]
        %v810 = vld [vmem:[%s3 + $0x48] sm:$0xff]
        %v811 = vld [vmem:[%s3 + $0x50] sm:$0xff]
        %v812 = vld [vmem:[%s3 + $0x58] sm:$0xff]
        %v813 = vld [vmem:[%s3 + $0x60] sm:$0xff]
        %v814 = vld [vmem:[%s3 + $0x68] sm:$0xff]
        %v815 = vld [vmem:[%s3 + $0x70] sm:$0xff]
        %v816 = vld [vmem:[%s3 + $0x78] sm:$0xff]
        %v817 = vld [vmem:[%s4] sm:$0x3]
        %v819 = vlaneseq
        %v820 = vshrl.u32 %v819, 7
        %v821 = vsub.s32 0, %v820
        %v822 = vrot.slane %v817, %v821
        %v823 = vlaneseq
        %v824 = vshrl.u32 %v823, 7
        %v825 = vsub.s32 1, %v824
        %v826 = vrot.slane %v817, %v825
        %v830 = vsel %vm305, %v769, 0
        %v833 = vsel %vm305, %v770, 0
        %v836 = vsel %vm305, %v771, 0
        %v839 = vsel %vm305, %v772, 0
        %v842 = vsel %vm305, %v773, 0
        %v845 = vsel %vm305, %v774, 0
        %v848 = vsel %vm305, %v775, 0
        %v851 = vsel %vm305, %v776, 0
        %v854 = vsel %vm305, %v777, 0
        %v857 = vsel %vm305, %v778, 0
        %v860 = vsel %vm305, %v779, 0
        %v863 = vsel %vm305, %v780, 0
        %v866 = vsel %vm305, %v781, 0
        %v869 = vsel %vm305, %v782, 0
        %v872 = vsel %vm305, %v783, 0
        %v875 = vsel %vm305, %v784, 0
        %v878 = vsel %vm305, %v785, 0
        %v881 = vsel %vm305, %v786, 0
        %v884 = vsel %vm305, %v787, 0
        %v887 = vsel %vm305, %v788, 0
        %v890 = vsel %vm305, %v789, 0
        %v893 = vsel %vm305, %v790, 0
        %v896 = vsel %vm305, %v791, 0
        %v899 = vsel %vm305, %v792, 0
        %v902 = vsel %vm305, %v793, 0
        %v905 = vsel %vm305, %v794, 0
        %v908 = vsel %vm305, %v795, 0
        %v911 = vsel %vm305, %v796, 0
        %v914 = vsel %vm305, %v797, 0
        %v917 = vsel %vm305, %v798, 0
        %v920 = vsel %vm305, %v799, 0
        %v923 = vsel %vm305, %v800, 0
        %925 = vmatprep.subr.mxu0 %v802
        %926 = vmatpush1.msra.mxu0 %v801
        %927 = vmatprep.subr.mxu0 %v804
        %928 = vmatpush1.msra.mxu0 %v803
        %929 = vmatprep.subr.mxu0 %v806
        %930 = vmatpush1.msra.mxu0 %v805
        %931 = vmatprep.subr.mxu0 %v808
        %932 = vmatpush1.msra.mxu0 %v807
        %933 = vmatprep.subr.mxu0 %v810
        %934 = vmatpush1.msra.mxu0 %v809
        %935 = vmatprep.subr.mxu0 %v812
        %936 = vmatpush1.msra.mxu0 %v811
        %937 = vmatprep.subr.mxu0 %v814
        %938 = vmatpush1.msra.mxu0 %v813
        %939 = vmatprep.subr.mxu0 %v816
        %940 = vmatpush1.msra.mxu0 %v815
        %941 = vmatprep.subr.mxu0 0.0
        %942 = vmatpush1.msra.mxu0 0.0
        %943 = vmatprep.subr.mxu0 0.0
        %944 = vmatpush1.msra.mxu0 0.0
        %945 = vmatprep.subr.mxu0 0.0
        %946 = vmatpush1.msra.mxu0 0.0
        %947 = vmatprep.subr.mxu0 0.0
        %948 = vmatpush1.msra.mxu0 0.0
        %949 = vmatprep.subr.mxu0 0.0
        %950 = vmatpush1.msra.mxu0 0.0
        %951 = vmatprep.subr.mxu0 0.0
        %952 = vmatpush1.msra.mxu0 0.0
        %953 = vmatprep.subr.mxu0 0.0
        %954 = vmatpush1.msra.mxu0 0.0
        %955 = vmatprep.subr.mxu0 0.0
        %956 = vmatpush1.msra.mxu0 0.0
        %957 = vmatprep.subr.mxu0 0.0
        %958 = vmatpush1.msra.mxu0 0.0
        %959 = vmatprep.subr.mxu0 0.0
        %960 = vmatpush1.msra.mxu0 0.0
        %961 = vmatprep.subr.mxu0 0.0
        %962 = vmatpush1.msra.mxu0 0.0
        %963 = vmatprep.subr.mxu0 0.0
        %964 = vmatpush1.msra.mxu0 0.0
        %965 = vmatprep.subr.mxu0 0.0
        %966 = vmatpush1.msra.mxu0 0.0
        %967 = vmatprep.subr.mxu0 0.0
        %968 = vmatpush1.msra.mxu0 0.0
        %969 = vmatprep.subr.mxu0 0.0
        %970 = vmatpush1.msra.mxu0 0.0
        %971 = vmatprep.subr.mxu0 0.0
        %972 = vmatpush1.msra.mxu0 0.0
        %973 = vmatprep.subr.mxu0 0.0
        %974 = vmatpush1.msra.mxu0 0.0
        %975 = vmatprep.subr.mxu0 0.0
        %976 = vmatpush1.msra.mxu0 0.0
        %977 = vmatprep.subr.mxu0 0.0
        %978 = vmatpush1.msra.mxu0 0.0
        %979 = vmatprep.subr.mxu0 0.0
        %980 = vmatpush1.msra.mxu0 0.0
        %981 = vmatprep.subr.mxu0 0.0
        %982 = vmatpush1.msra.mxu0 0.0
        %983 = vmatprep.subr.mxu0 0.0
        %984 = vmatpush1.msra.mxu0 0.0
        %985 = vmatprep.subr.mxu0 0.0
        %986 = vmatpush1.msra.mxu0 0.0
        %987 = vmatprep.subr.mxu0 0.0
        %988 = vmatpush1.msra.mxu0 0.0
        %989 = vmatprep.mubr.f32.mxu0 0.0
        %990 = vmatmul.mubr.f32.gmra.mrb[0].mxu0 %v830
        %v991 = vpop.f32.mrb[0].mxu0
        %v992 = vadd.f32 %v822, %v991
        %v993 = vpop.f32.mrb[0].mxu0
        %v994 = vadd.f32 %v826, %v993
        %995 = vmatprep.mubr.f32.mxu0 0.0
        %996 = vmatmul.mubr.f32.gmra.mrb[0].mxu0 %v833
        %v997 = vpop.f32.mrb[0].mxu0
        %v998 = vadd.f32 %v822, %v997
        %v999 = vpop.f32.mrb[0].mxu0
        %v1000 = vadd.f32 %v826, %v999
        %1001 = vmatprep.mubr.f32.mxu0 0.0
        %1002 = vmatmul.mubr.f32.gmra.mrb[0].mxu0 %v836
        %v1003 = vpop.f32.mrb[0].mxu0
        %v1004 = vadd.f32 %v822, %v1003
        %v1005 = vpop.f32.mrb[0].mxu0
        %v1006 = vadd.f32 %v826, %v1005
        %1007 = vmatprep.mubr.f32.mxu0 0.0
        %1008 = vmatmul.mubr.f32.gmra.mrb[0].mxu0 %v839
        %v1009 = vpop.f32.mrb[0].mxu0
        %v1010 = vadd.f32 %v822, %v1009
        %v1011 = vpop.f32.mrb[0].mxu0
        %v1012 = vadd.f32 %v826, %v1011
        %1013 = vmatprep.mubr.f32.mxu0 0.0
        %1014 = vmatmul.mubr.f32.gmra.mrb[0].mxu0 %v842
        %v1015 = vpop.f32.mrb[0].mxu0
        %v1016 = vadd.f32 %v822, %v1015
        %v1017 = vpop.f32.mrb[0].mxu0
        %v1018 = vadd.f32 %v826, %v1017
        %1019 = vmatprep.mubr.f32.mxu0 0.0
        %1020 = vmatmul.mubr.f32.gmra.mrb[0].mxu0 %v845
        %v1021 = vpop.f32.mrb[0].mxu0
        %v1022 = vadd.f32 %v822, %v1021
        %v1023 = vpop.f32.mrb[0].mxu0
        %v1024 = vadd.f32 %v826, %v1023
        %1025 = vmatprep.mubr.f32.mxu0 0.0
        %1026 = vmatmul.mubr.f32.gmra.mrb[0].mxu0 %v848
        %v1027 = vpop.f32.mrb[0].mxu0
        %v1028 = vadd.f32 %v822, %v1027
        %v1029 = vpop.f32.mrb[0].mxu0
        %v1030 = vadd.f32 %v826, %v1029
        %1031 = vmatprep.mubr.f32.mxu0 0.0
        %1032 = vmatmul.mubr.f32.gmra.mrb[0].mxu0 %v851
        %v1033 = vpop.f32.mrb[0].mxu0
        %v1034 = vadd.f32 %v822, %v1033
        %v1035 = vpop.f32.mrb[0].mxu0
        %v1036 = vadd.f32 %v826, %v1035
        %1037 = vmatprep.mubr.f32.mxu0 0.0
        %1038 = vmatmul.mubr.f32.gmra.mrb[0].mxu0 %v854
        %v1039 = vpop.f32.mrb[0].mxu0
        %v1040 = vadd.f32 %v822, %v1039
        %v1041 = vpop.f32.mrb[0].mxu0
        %v1042 = vadd.f32 %v826, %v1041
        %1043 = vmatprep.mubr.f32.mxu0 0.0
        %1044 = vmatmul.mubr.f32.gmra.mrb[0].mxu0 %v857
        %v1045 = vpop.f32.mrb[0].mxu0
        %v1046 = vadd.f32 %v822, %v1045
        %v1047 = vpop.f32.mrb[0].mxu0
        %v1048 = vadd.f32 %v826, %v1047
        %1049 = vmatprep.mubr.f32.mxu0 0.0
        %1050 = vmatmul.mubr.f32.gmra.mrb[0].mxu0 %v860
        %v1051 = vpop.f32.mrb[0].mxu0
        %v1052 = vadd.f32 %v822, %v1051
        %v1053 = vpop.f32.mrb[0].mxu0
        %v1054 = vadd.f32 %v826, %v1053
        %1055 = vmatprep.mubr.f32.mxu0 0.0
        %1056 = vmatmul.mubr.f32.gmra.mrb[0].mxu0 %v863
        %v1057 = vpop.f32.mrb[0].mxu0
        %v1058 = vadd.f32 %v822, %v1057
        %v1059 = vpop.f32.mrb[0].mxu0
        %v1060 = vadd.f32 %v826, %v1059
        %1061 = vmatprep.mubr.f32.mxu0 0.0
        %1062 = vmatmul.mubr.f32.gmra.mrb[0].mxu0 %v866
        %v1063 = vpop.f32.mrb[0].mxu0
        %v1064 = vadd.f32 %v822, %v1063
        %v1065 = vpop.f32.mrb[0].mxu0
        %v1066 = vadd.f32 %v826, %v1065
        %1067 = vmatprep.mubr.f32.mxu0 0.0
        %1068 = vmatmul.mubr.f32.gmra.mrb[0].mxu0 %v869
        %v1069 = vpop.f32.mrb[0].mxu0
        %v1070 = vadd.f32 %v822, %v1069
        %v1071 = vpop.f32.mrb[0].mxu0
        %v1072 = vadd.f32 %v826, %v1071
        %1073 = vmatprep.mubr.f32.mxu0 0.0
        %1074 = vmatmul.mubr.f32.gmra.mrb[0].mxu0 %v872
        %v1075 = vpop.f32.mrb[0].mxu0
        %v1076 = vadd.f32 %v822, %v1075
        %v1077 = vpop.f32.mrb[0].mxu0
        %v1078 = vadd.f32 %v826, %v1077
        %1079 = vmatprep.mubr.f32.mxu0 0.0
        %1080 = vmatmul.mubr.f32.gmra.mrb[0].mxu0 %v875
        %v1081 = vpop.f32.mrb[0].mxu0
        %v1082 = vadd.f32 %v822, %v1081
        %v1083 = vpop.f32.mrb[0].mxu0
        %v1084 = vadd.f32 %v826, %v1083
        %1085 = vmatprep.mubr.f32.mxu0 0.0
        %1086 = vmatmul.mubr.f32.gmra.mrb[0].mxu0 %v878
        %v1087 = vpop.f32.mrb[0].mxu0
        %v1088 = vadd.f32 %v822, %v1087
        %v1089 = vpop.f32.mrb[0].mxu0
        %v1090 = vadd.f32 %v826, %v1089
        %1091 = vmatprep.mubr.f32.mxu0 0.0
        %1092 = vmatmul.mubr.f32.gmra.mrb[0].mxu0 %v881
        %v1093 = vpop.f32.mrb[0].mxu0
        %v1094 = vadd.f32 %v822, %v1093
        %v1095 = vpop.f32.mrb[0].mxu0
        %v1096 = vadd.f32 %v826, %v1095
        %1097 = vmatprep.mubr.f32.mxu0 0.0
        %1098 = vmatmul.mubr.f32.gmra.mrb[0].mxu0 %v884
        %v1099 = vpop.f32.mrb[0].mxu0
        %v1100 = vadd.f32 %v822, %v1099
        %v1101 = vpop.f32.mrb[0].mxu0
        %v1102 = vadd.f32 %v826, %v1101
        %1103 = vmatprep.mubr.f32.mxu0 0.0
        %1104 = vmatmul.mubr.f32.gmra.mrb[0].mxu0 %v887
        %v1105 = vpop.f32.mrb[0].mxu0
        %v1106 = vadd.f32 %v822, %v1105
        %v1107 = vpop.f32.mrb[0].mxu0
        %v1108 = vadd.f32 %v826, %v1107
        %1109 = vmatprep.mubr.f32.mxu0 0.0
        %1110 = vmatmul.mubr.f32.gmra.mrb[0].mxu0 %v890
        %v1111 = vpop.f32.mrb[0].mxu0
        %v1112 = vadd.f32 %v822, %v1111
        %v1113 = vpop.f32.mrb[0].mxu0
        %v1114 = vadd.f32 %v826, %v1113
        %1115 = vmatprep.mubr.f32.mxu0 0.0
        %1116 = vmatmul.mubr.f32.gmra.mrb[0].mxu0 %v893
        %v1117 = vpop.f32.mrb[0].mxu0
        %v1118 = vadd.f32 %v822, %v1117
        %v1119 = vpop.f32.mrb[0].mxu0
        %v1120 = vadd.f32 %v826, %v1119
        %1121 = vmatprep.mubr.f32.mxu0 0.0
        %1122 = vmatmul.mubr.f32.gmra.mrb[0].mxu0 %v896
        %v1123 = vpop.f32.mrb[0].mxu0
        %v1124 = vadd.f32 %v822, %v1123
        %v1125 = vpop.f32.mrb[0].mxu0
        %v1126 = vadd.f32 %v826, %v1125
        %1127 = vmatprep.mubr.f32.mxu0 0.0
        %1128 = vmatmul.mubr.f32.gmra.mrb[0].mxu0 %v899
        %v1129 = vpop.f32.mrb[0].mxu0
        %v1130 = vadd.f32 %v822, %v1129
        %v1131 = vpop.f32.mrb[0].mxu0
        %v1132 = vadd.f32 %v826, %v1131
        %1133 = vmatprep.mubr.f32.mxu0 0.0
        %1134 = vmatmul.mubr.f32.gmra.mrb[0].mxu0 %v902
        %v1135 = vpop.f32.mrb[0].mxu0
        %v1136 = vadd.f32 %v822, %v1135
        %v1137 = vpop.f32.mrb[0].mxu0
        %v1138 = vadd.f32 %v826, %v1137
        %1139 = vmatprep.mubr.f32.mxu0 0.0
        %1140 = vmatmul.mubr.f32.gmra.mrb[0].mxu0 %v905
        %v1141 = vpop.f32.mrb[0].mxu0
        %v1142 = vadd.f32 %v822, %v1141
        %v1143 = vpop.f32.mrb[0].mxu0
        %v1144 = vadd.f32 %v826, %v1143
        %1145 = vmatprep.mubr.f32.mxu0 0.0
        %1146 = vmatmul.mubr.f32.gmra.mrb[0].mxu0 %v908
        %v1147 = vpop.f32.mrb[0].mxu0
        %v1148 = vadd.f32 %v822, %v1147
        %v1149 = vpop.f32.mrb[0].mxu0
        %v1150 = vadd.f32 %v826, %v1149
        %1151 = vmatprep.mubr.f32.mxu0 0.0
        %1152 = vmatmul.mubr.f32.gmra.mrb[0].mxu0 %v911
        %v1153 = vpop.f32.mrb[0].mxu0
        %v1154 = vadd.f32 %v822, %v1153
        %v1155 = vpop.f32.mrb[0].mxu0
        %v1156 = vadd.f32 %v826, %v1155
        %1157 = vmatprep.mubr.f32.mxu0 0.0
        %1158 = vmatmul.mubr.f32.gmra.mrb[0].mxu0 %v914
        %v1159 = vpop.f32.mrb[0].mxu0
        %v1160 = vadd.f32 %v822, %v1159
        %v1161 = vpop.f32.mrb[0].mxu0
        %v1162 = vadd.f32 %v826, %v1161
        %1163 = vmatprep.mubr.f32.mxu0 0.0
        %1164 = vmatmul.mubr.f32.gmra.mrb[0].mxu0 %v917
        %v1165 = vpop.f32.mrb[0].mxu0
        %v1166 = vadd.f32 %v822, %v1165
        %v1167 = vpop.f32.mrb[0].mxu0
        %v1168 = vadd.f32 %v826, %v1167
        %1169 = vmatprep.mubr.f32.mxu0 0.0
        %1170 = vmatmul.mubr.f32.gmra.mrb[0].mxu0 %v920
        %v1171 = vpop.f32.mrb[0].mxu0
        %v1172 = vadd.f32 %v822, %v1171
        %v1173 = vpop.f32.mrb[0].mxu0
        %v1174 = vadd.f32 %v826, %v1173
        %1175 = vmatprep.mubr.f32.mxu0 0.0
        %1176 = vmatmul.mubr.f32.gmra.mrb[0].mxu0 %v923
        %v1177 = vpop.f32.mrb[0].mxu0
        %v1178 = vadd.f32 %v822, %v1177
        %v1179 = vpop.f32.mrb[0].mxu0
        %v1180 = vadd.f32 %v826, %v1179
        %1181 = vdwg.mxu0
        %v1182 = vlaneseq
        %v1183 = vshrl.u32 %v1182, 7
        %v1184 = vadd.s32 %v1183, 8
        %vm1185 = vcmp.lt.s32.totalorder %v1183, 13
        %vm1186 = vcmp.lt.s32.totalorder %v1184, 13
        %v1187 = vsel %vm1185, 1, 0
        %v1188 = vsel %vm1186, 1, 0
        %vm1189 = vcmp.eq.s32.totalorder %v1187, 1
        %vm1190 = vcmp.eq.s32.totalorder %v1188, 1
        %v1191 = vsel %vm1189, %v992, -1e+30
        %v1192 = vsel %vm1189, %v994, -1e+30
        %v1193 = vsel %vm1190, %v998, -1e+30
        %v1194 = vsel %vm1190, %v1000, -1e+30
        %v1195 = vsel %vm1189, %v1004, -1e+30
        %v1196 = vsel %vm1189, %v1006, -1e+30
        %v1197 = vsel %vm1190, %v1010, -1e+30
        %v1198 = vsel %vm1190, %v1012, -1e+30
        %v1199 = vsel %vm1189, %v1016, -1e+30
        %v1200 = vsel %vm1189, %v1018, -1e+30
        %v1201 = vsel %vm1190, %v1022, -1e+30
        %v1202 = vsel %vm1190, %v1024, -1e+30
        %v1203 = vsel %vm1189, %v1028, -1e+30
        %v1204 = vsel %vm1189, %v1030, -1e+30
        %v1205 = vsel %vm1190, %v1034, -1e+30
        %v1206 = vsel %vm1190, %v1036, -1e+30
        %v1207 = vsel %vm1189, %v1040, -1e+30
        %v1208 = vsel %vm1189, %v1042, -1e+30
        %v1209 = vsel %vm1190, %v1046, -1e+30
        %v1210 = vsel %vm1190, %v1048, -1e+30
        %v1211 = vsel %vm1189, %v1052, -1e+30
        %v1212 = vsel %vm1189, %v1054, -1e+30
        %v1213 = vsel %vm1190, %v1058, -1e+30
        %v1214 = vsel %vm1190, %v1060, -1e+30
        %v1215 = vsel %vm1189, %v1064, -1e+30
        %v1216 = vsel %vm1189, %v1066, -1e+30
        %v1217 = vsel %vm1190, %v1070, -1e+30
        %v1218 = vsel %vm1190, %v1072, -1e+30
        %v1219 = vsel %vm1189, %v1076, -1e+30
        %v1220 = vsel %vm1189, %v1078, -1e+30
        %v1221 = vsel %vm1190, %v1082, -1e+30
        %v1222 = vsel %vm1190, %v1084, -1e+30
        %v1223 = vsel %vm1189, %v1088, -1e+30
        %v1224 = vsel %vm1189, %v1090, -1e+30
        %v1225 = vsel %vm1190, %v1094, -1e+30
        %v1226 = vsel %vm1190, %v1096, -1e+30
        %v1227 = vsel %vm1189, %v1100, -1e+30
        %v1228 = vsel %vm1189, %v1102, -1e+30
        %v1229 = vsel %vm1190, %v1106, -1e+30
        %v1230 = vsel %vm1190, %v1108, -1e+30
        %v1231 = vsel %vm1189, %v1112, -1e+30
        %v1232 = vsel %vm1189, %v1114, -1e+30
        %v1233 = vsel %vm1190, %v1118, -1e+30
        %v1234 = vsel %vm1190, %v1120, -1e+30
        %v1235 = vsel %vm1189, %v1124, -1e+30
        %v1236 = vsel %vm1189, %v1126, -1e+30
        %v1237 = vsel %vm1190, %v1130, -1e+30
        %v1238 = vsel %vm1190, %v1132, -1e+30
        %v1239 = vsel %vm1189, %v1136, -1e+30
        %v1240 = vsel %vm1189, %v1138, -1e+30
        %v1241 = vsel %vm1190, %v1142, -1e+30
        %v1242 = vsel %vm1190, %v1144, -1e+30
        %v1243 = vsel %vm1189, %v1148, -1e+30
        %v1244 = vsel %vm1189, %v1150, -1e+30
        %v1245 = vsel %vm1190, %v1154, -1e+30
        %v1246 = vsel %vm1190, %v1156, -1e+30
        %v1247 = vsel %vm1189, %v1160, -1e+30
        %v1248 = vsel %vm1189, %v1162, -1e+30
        %v1249 = vsel %vm1190, %v1166, -1e+30
        %v1250 = vsel %vm1190, %v1168, -1e+30
        %v1251 = vsel %vm1189, %v1172, -1e+30
        %v1252 = vsel %vm1189, %v1174, -1e+30
        %v1253 = vsel %vm1190, %v1178, -1e+30
        %v1254 = vsel %vm1190, %v1180, -1e+30
        %vm1255 = vcmask 1048064
        %v1256 = vsel %vm1255, %v1191, -inf
        %v1257 = vsel %vm1255, %v1193, -inf
        %v1258 = vmax.f32 %v1256, %v1257
        %v1259 = vrot.slane %v1258, 4
        %v1260 = vmax.f32 %v1258, %v1259
        %v1261 = vrot.slane %v1260, 2
        %v1262 = vmax.f32 %v1260, %v1261
        %v1263 = vrot.slane %v1262, 1
        %v1264 = vmax.f32 %v1262, %v1263
        %v1265 = vsel %vm305, %v1192, -inf
        %v1266 = vsel %vm305, %v1194, -inf
        %v1267 = vmax.f32 %v1265, %v1266
        %v1268 = vrot.slane %v1267, 4
        %v1269 = vmax.f32 %v1267, %v1268
        %v1270 = vrot.slane %v1269, 2
        %v1271 = vmax.f32 %v1269, %v1270
        %v1272 = vrot.slane %v1271, 1
        %v1273 = vmax.f32 %v1271, %v1272
        %v1274 = vsel %vm1255, %v1195, -inf
        %v1275 = vsel %vm1255, %v1197, -inf
        %v1276 = vmax.f32 %v1274, %v1275
        %v1277 = vrot.slane %v1276, 4
        %v1278 = vmax.f32 %v1276, %v1277
        %v1279 = vrot.slane %v1278, 2
        %v1280 = vmax.f32 %v1278, %v1279
        %v1281 = vrot.slane %v1280, 1
        %v1282 = vmax.f32 %v1280, %v1281
        %v1283 = vsel %vm305, %v1196, -inf
        %v1284 = vsel %vm305, %v1198, -inf
        %v1285 = vmax.f32 %v1283, %v1284
        %v1286 = vrot.slane %v1285, 4
        %v1287 = vmax.f32 %v1285, %v1286
        %v1288 = vrot.slane %v1287, 2
        %v1289 = vmax.f32 %v1287, %v1288
        %v1290 = vrot.slane %v1289, 1
        %v1291 = vmax.f32 %v1289, %v1290
        %v1292 = vsel %vm1255, %v1199, -inf
        %v1293 = vsel %vm1255, %v1201, -inf
        %v1294 = vmax.f32 %v1292, %v1293
        %v1295 = vrot.slane %v1294, 4
        %v1296 = vmax.f32 %v1294, %v1295
        %v1297 = vrot.slane %v1296, 2
        %v1298 = vmax.f32 %v1296, %v1297
        %v1299 = vrot.slane %v1298, 1
        %v1300 = vmax.f32 %v1298, %v1299
        %v1301 = vsel %vm305, %v1200, -inf
        %v1302 = vsel %vm305, %v1202, -inf
        %v1303 = vmax.f32 %v1301, %v1302
        %v1304 = vrot.slane %v1303, 4
        %v1305 = vmax.f32 %v1303, %v1304
        %v1306 = vrot.slane %v1305, 2
        %v1307 = vmax.f32 %v1305, %v1306
        %v1308 = vrot.slane %v1307, 1
        %v1309 = vmax.f32 %v1307, %v1308
        %v1310 = vsel %vm1255, %v1203, -inf
        %v1311 = vsel %vm1255, %v1205, -inf
        %v1312 = vmax.f32 %v1310, %v1311
        %v1313 = vrot.slane %v1312, 4
        %v1314 = vmax.f32 %v1312, %v1313
        %v1315 = vrot.slane %v1314, 2
        %v1316 = vmax.f32 %v1314, %v1315
        %v1317 = vrot.slane %v1316, 1
        %v1318 = vmax.f32 %v1316, %v1317
        %v1319 = vsel %vm305, %v1204, -inf
        %v1320 = vsel %vm305, %v1206, -inf
        %v1321 = vmax.f32 %v1319, %v1320
        %v1322 = vrot.slane %v1321, 4
        %v1323 = vmax.f32 %v1321, %v1322
        %v1324 = vrot.slane %v1323, 2
        %v1325 = vmax.f32 %v1323, %v1324
        %v1326 = vrot.slane %v1325, 1
        %v1327 = vmax.f32 %v1325, %v1326
        %v1328 = vsel %vm1255, %v1207, -inf
        %v1329 = vsel %vm1255, %v1209, -inf
        %v1330 = vmax.f32 %v1328, %v1329
        %v1331 = vrot.slane %v1330, 4
        %v1332 = vmax.f32 %v1330, %v1331
        %v1333 = vrot.slane %v1332, 2
        %v1334 = vmax.f32 %v1332, %v1333
        %v1335 = vrot.slane %v1334, 1
        %v1336 = vmax.f32 %v1334, %v1335
        %v1337 = vsel %vm305, %v1208, -inf
        %v1338 = vsel %vm305, %v1210, -inf
        %v1339 = vmax.f32 %v1337, %v1338
        %v1340 = vrot.slane %v1339, 4
        %v1341 = vmax.f32 %v1339, %v1340
        %v1342 = vrot.slane %v1341, 2
        %v1343 = vmax.f32 %v1341, %v1342
        %v1344 = vrot.slane %v1343, 1
        %v1345 = vmax.f32 %v1343, %v1344
        %v1346 = vsel %vm1255, %v1211, -inf
        %v1347 = vsel %vm1255, %v1213, -inf
        %v1348 = vmax.f32 %v1346, %v1347
        %v1349 = vrot.slane %v1348, 4
        %v1350 = vmax.f32 %v1348, %v1349
        %v1351 = vrot.slane %v1350, 2
        %v1352 = vmax.f32 %v1350, %v1351
        %v1353 = vrot.slane %v1352, 1
        %v1354 = vmax.f32 %v1352, %v1353
        %v1355 = vsel %vm305, %v1212, -inf
        %v1356 = vsel %vm305, %v1214, -inf
        %v1357 = vmax.f32 %v1355, %v1356
        %v1358 = vrot.slane %v1357, 4
        %v1359 = vmax.f32 %v1357, %v1358
        %v1360 = vrot.slane %v1359, 2
        %v1361 = vmax.f32 %v1359, %v1360
        %v1362 = vrot.slane %v1361, 1
        %v1363 = vmax.f32 %v1361, %v1362
        %v1364 = vsel %vm1255, %v1215, -inf
        %v1365 = vsel %vm1255, %v1217, -inf
        %v1366 = vmax.f32 %v1364, %v1365
        %v1367 = vrot.slane %v1366, 4
        %v1368 = vmax.f32 %v1366, %v1367
        %v1369 = vrot.slane %v1368, 2
        %v1370 = vmax.f32 %v1368, %v1369
        %v1371 = vrot.slane %v1370, 1
        %v1372 = vmax.f32 %v1370, %v1371
        %v1373 = vsel %vm305, %v1216, -inf
        %v1374 = vsel %vm305, %v1218, -inf
        %v1375 = vmax.f32 %v1373, %v1374
        %v1376 = vrot.slane %v1375, 4
        %v1377 = vmax.f32 %v1375, %v1376
        %v1378 = vrot.slane %v1377, 2
        %v1379 = vmax.f32 %v1377, %v1378
        %v1380 = vrot.slane %v1379, 1
        %v1381 = vmax.f32 %v1379, %v1380
        %v1382 = vsel %vm1255, %v1219, -inf
        %v1383 = vsel %vm1255, %v1221, -inf
        %v1384 = vmax.f32 %v1382, %v1383
        %v1385 = vrot.slane %v1384, 4
        %v1386 = vmax.f32 %v1384, %v1385
        %v1387 = vrot.slane %v1386, 2
        %v1388 = vmax.f32 %v1386, %v1387
        %v1389 = vrot.slane %v1388, 1
        %v1390 = vmax.f32 %v1388, %v1389
        %v1391 = vsel %vm305, %v1220, -inf
        %v1392 = vsel %vm305, %v1222, -inf
        %v1393 = vmax.f32 %v1391, %v1392
        %v1394 = vrot.slane %v1393, 4
        %v1395 = vmax.f32 %v1393, %v1394
        %v1396 = vrot.slane %v1395, 2
        %v1397 = vmax.f32 %v1395, %v1396
        %v1398 = vrot.slane %v1397, 1
        %v1399 = vmax.f32 %v1397, %v1398
        %v1400 = vsel %vm1255, %v1223, -inf
        %v1401 = vsel %vm1255, %v1225, -inf
        %v1402 = vmax.f32 %v1400, %v1401
        %v1403 = vrot.slane %v1402, 4
        %v1404 = vmax.f32 %v1402, %v1403
        %v1405 = vrot.slane %v1404, 2
        %v1406 = vmax.f32 %v1404, %v1405
        %v1407 = vrot.slane %v1406, 1
        %v1408 = vmax.f32 %v1406, %v1407
        %v1409 = vsel %vm305, %v1224, -inf
        %v1410 = vsel %vm305, %v1226, -inf
        %v1411 = vmax.f32 %v1409, %v1410
        %v1412 = vrot.slane %v1411, 4
        %v1413 = vmax.f32 %v1411, %v1412
        %v1414 = vrot.slane %v1413, 2
        %v1415 = vmax.f32 %v1413, %v1414
        %v1416 = vrot.slane %v1415, 1
        %v1417 = vmax.f32 %v1415, %v1416
        %v1418 = vsel %vm1255, %v1227, -inf
        %v1419 = vsel %vm1255, %v1229, -inf
        %v1420 = vmax.f32 %v1418, %v1419
        %v1421 = vrot.slane %v1420, 4
        %v1422 = vmax.f32 %v1420, %v1421
        %v1423 = vrot.slane %v1422, 2
        %v1424 = vmax.f32 %v1422, %v1423
        %v1425 = vrot.slane %v1424, 1
        %v1426 = vmax.f32 %v1424, %v1425
        %v1427 = vsel %vm305, %v1228, -inf
        %v1428 = vsel %vm305, %v1230, -inf
        %v1429 = vmax.f32 %v1427, %v1428
        %v1430 = vrot.slane %v1429, 4
        %v1431 = vmax.f32 %v1429, %v1430
        %v1432 = vrot.slane %v1431, 2
        %v1433 = vmax.f32 %v1431, %v1432
        %v1434 = vrot.slane %v1433, 1
        %v1435 = vmax.f32 %v1433, %v1434
        %v1436 = vsel %vm1255, %v1231, -inf
        %v1437 = vsel %vm1255, %v1233, -inf
        %v1438 = vmax.f32 %v1436, %v1437
        %v1439 = vrot.slane %v1438, 4
        %v1440 = vmax.f32 %v1438, %v1439
        %v1441 = vrot.slane %v1440, 2
        %v1442 = vmax.f32 %v1440, %v1441
        %v1443 = vrot.slane %v1442, 1
        %v1444 = vmax.f32 %v1442, %v1443
        %v1445 = vsel %vm305, %v1232, -inf
        %v1446 = vsel %vm305, %v1234, -inf
        %v1447 = vmax.f32 %v1445, %v1446
        %v1448 = vrot.slane %v1447, 4
        %v1449 = vmax.f32 %v1447, %v1448
        %v1450 = vrot.slane %v1449, 2
        %v1451 = vmax.f32 %v1449, %v1450
        %v1452 = vrot.slane %v1451, 1
        %v1453 = vmax.f32 %v1451, %v1452
        %v1454 = vsel %vm1255, %v1235, -inf
        %v1455 = vsel %vm1255, %v1237, -inf
        %v1456 = vmax.f32 %v1454, %v1455
        %v1457 = vrot.slane %v1456, 4
        %v1458 = vmax.f32 %v1456, %v1457
        %v1459 = vrot.slane %v1458, 2
        %v1460 = vmax.f32 %v1458, %v1459
        %v1461 = vrot.slane %v1460, 1
        %v1462 = vmax.f32 %v1460, %v1461
        %v1463 = vsel %vm305, %v1236, -inf
        %v1464 = vsel %vm305, %v1238, -inf
        %v1465 = vmax.f32 %v1463, %v1464
        %v1466 = vrot.slane %v1465, 4
        %v1467 = vmax.f32 %v1465, %v1466
        %v1468 = vrot.slane %v1467, 2
        %v1469 = vmax.f32 %v1467, %v1468
        %v1470 = vrot.slane %v1469, 1
        %v1471 = vmax.f32 %v1469, %v1470
        %v1472 = vsel %vm1255, %v1239, -inf
        %v1473 = vsel %vm1255, %v1241, -inf
        %v1474 = vmax.f32 %v1472, %v1473
        %v1475 = vrot.slane %v1474, 4
        %v1476 = vmax.f32 %v1474, %v1475
        %v1477 = vrot.slane %v1476, 2
        %v1478 = vmax.f32 %v1476, %v1477
        %v1479 = vrot.slane %v1478, 1
        %v1480 = vmax.f32 %v1478, %v1479
        %v1481 = vsel %vm305, %v1240, -inf
        %v1482 = vsel %vm305, %v1242, -inf
        %v1483 = vmax.f32 %v1481, %v1482
        %v1484 = vrot.slane %v1483, 4
        %v1485 = vmax.f32 %v1483, %v1484
        %v1486 = vrot.slane %v1485, 2
        %v1487 = vmax.f32 %v1485, %v1486
        %v1488 = vrot.slane %v1487, 1
        %v1489 = vmax.f32 %v1487, %v1488
        %v1490 = vsel %vm1255, %v1243, -inf
        %v1491 = vsel %vm1255, %v1245, -inf
        %v1492 = vmax.f32 %v1490, %v1491
        %v1493 = vrot.slane %v1492, 4
        %v1494 = vmax.f32 %v1492, %v1493
        %v1495 = vrot.slane %v1494, 2
        %v1496 = vmax.f32 %v1494, %v1495
        %v1497 = vrot.slane %v1496, 1
        %v1498 = vmax.f32 %v1496, %v1497
        %v1499 = vsel %vm305, %v1244, -inf
        %v1500 = vsel %vm305, %v1246, -inf
        %v1501 = vmax.f32 %v1499, %v1500
        %v1502 = vrot.slane %v1501, 4
        %v1503 = vmax.f32 %v1501, %v1502
        %v1504 = vrot.slane %v1503, 2
        %v1505 = vmax.f32 %v1503, %v1504
        %v1506 = vrot.slane %v1505, 1
        %v1507 = vmax.f32 %v1505, %v1506
        %v1508 = vsel %vm1255, %v1247, -inf
        %v1509 = vsel %vm1255, %v1249, -inf
        %v1510 = vmax.f32 %v1508, %v1509
        %v1511 = vrot.slane %v1510, 4
        %v1512 = vmax.f32 %v1510, %v1511
        %v1513 = vrot.slane %v1512, 2
        %v1514 = vmax.f32 %v1512, %v1513
        %v1515 = vrot.slane %v1514, 1
        %v1516 = vmax.f32 %v1514, %v1515
        %v1517 = vsel %vm305, %v1248, -inf
        %v1518 = vsel %vm305, %v1250, -inf
        %v1519 = vmax.f32 %v1517, %v1518
        %v1520 = vrot.slane %v1519, 4
        %v1521 = vmax.f32 %v1519, %v1520
        %v1522 = vrot.slane %v1521, 2
        %v1523 = vmax.f32 %v1521, %v1522
        %v1524 = vrot.slane %v1523, 1
        %v1525 = vmax.f32 %v1523, %v1524
        %v1526 = vsel %vm1255, %v1251, -inf
        %v1527 = vsel %vm1255, %v1253, -inf
        %v1528 = vmax.f32 %v1526, %v1527
        %v1529 = vrot.slane %v1528, 4
        %v1530 = vmax.f32 %v1528, %v1529
        %v1531 = vrot.slane %v1530, 2
        %v1532 = vmax.f32 %v1530, %v1531
        %v1533 = vrot.slane %v1532, 1
        %v1534 = vmax.f32 %v1532, %v1533
        %v1535 = vsel %vm305, %v1252, -inf
        %v1536 = vsel %vm305, %v1254, -inf
        %v1537 = vmax.f32 %v1535, %v1536
        %v1538 = vrot.slane %v1537, 4
        %v1539 = vmax.f32 %v1537, %v1538
        %v1540 = vrot.slane %v1539, 2
        %v1541 = vmax.f32 %v1539, %v1540
        %v1542 = vrot.slane %v1541, 1
        %v1543 = vmax.f32 %v1541, %v1542
        %v1544 = vsub.f32 %v1191, %v1264
        %v1545 = vsub.f32 %v1192, %v1273
        %v1546 = vsub.f32 %v1193, %v1264
        %v1547 = vsub.f32 %v1194, %v1273
        %v1548 = vsub.f32 %v1195, %v1282
        %v1549 = vsub.f32 %v1196, %v1291
        %v1550 = vsub.f32 %v1197, %v1282
        %v1551 = vsub.f32 %v1198, %v1291
        %v1552 = vsub.f32 %v1199, %v1300
        %v1553 = vsub.f32 %v1200, %v1309
        %v1554 = vsub.f32 %v1201, %v1300
        %v1555 = vsub.f32 %v1202, %v1309
        %v1556 = vsub.f32 %v1203, %v1318
        %v1557 = vsub.f32 %v1204, %v1327
        %v1558 = vsub.f32 %v1205, %v1318
        %v1559 = vsub.f32 %v1206, %v1327
        %v1560 = vsub.f32 %v1207, %v1336
        %v1561 = vsub.f32 %v1208, %v1345
        %v1562 = vsub.f32 %v1209, %v1336
        %v1563 = vsub.f32 %v1210, %v1345
        %v1564 = vsub.f32 %v1211, %v1354
        %v1565 = vsub.f32 %v1212, %v1363
        %v1566 = vsub.f32 %v1213, %v1354
        %v1567 = vsub.f32 %v1214, %v1363
        %v1568 = vsub.f32 %v1215, %v1372
        %v1569 = vsub.f32 %v1216, %v1381
        %v1570 = vsub.f32 %v1217, %v1372
        %v1571 = vsub.f32 %v1218, %v1381
        %v1572 = vsub.f32 %v1219, %v1390
        %v1573 = vsub.f32 %v1220, %v1399
        %v1574 = vsub.f32 %v1221, %v1390
        %v1575 = vsub.f32 %v1222, %v1399
        %v1576 = vsub.f32 %v1223, %v1408
        %v1577 = vsub.f32 %v1224, %v1417
        %v1578 = vsub.f32 %v1225, %v1408
        %v1579 = vsub.f32 %v1226, %v1417
        %v1580 = vsub.f32 %v1227, %v1426
        %v1581 = vsub.f32 %v1228, %v1435
        %v1582 = vsub.f32 %v1229, %v1426
        %v1583 = vsub.f32 %v1230, %v1435
        %v1584 = vsub.f32 %v1231, %v1444
        %v1585 = vsub.f32 %v1232, %v1453
        %v1586 = vsub.f32 %v1233, %v1444
        %v1587 = vsub.f32 %v1234, %v1453
        %v1588 = vsub.f32 %v1235, %v1462
        %v1589 = vsub.f32 %v1236, %v1471
        %v1590 = vsub.f32 %v1237, %v1462
        %v1591 = vsub.f32 %v1238, %v1471
        %v1592 = vsub.f32 %v1239, %v1480
        %v1593 = vsub.f32 %v1240, %v1489
        %v1594 = vsub.f32 %v1241, %v1480
        %v1595 = vsub.f32 %v1242, %v1489
        %v1596 = vsub.f32 %v1243, %v1498
        %v1597 = vsub.f32 %v1244, %v1507
        %v1598 = vsub.f32 %v1245, %v1498
        %v1599 = vsub.f32 %v1246, %v1507
        %v1600 = vsub.f32 %v1247, %v1516
        %v1601 = vsub.f32 %v1248, %v1525
        %v1602 = vsub.f32 %v1249, %v1516
        %v1603 = vsub.f32 %v1250, %v1525
        %v1604 = vsub.f32 %v1251, %v1534
        %v1605 = vsub.f32 %v1252, %v1543
        %v1606 = vsub.f32 %v1253, %v1534
        %v1607 = vsub.f32 %v1254, %v1543
        %v1608 = vmul.f32 %v1544, 1.442695
        %v1609 = vpow.pop %v1608
        %v1610 = vmul.f32 %v1545, 1.442695
        %v1611 = vpow.pop %v1610
        %v1612 = vmul.f32 %v1546, 1.442695
        %v1613 = vpow.pop %v1612
        %v1614 = vmul.f32 %v1547, 1.442695
        %v1615 = vpow.pop %v1614
        %v1616 = vmul.f32 %v1548, 1.442695
        %v1617 = vpow.pop %v1616
        %v1618 = vmul.f32 %v1549, 1.442695
        %v1619 = vpow.pop %v1618
        %v1620 = vmul.f32 %v1550, 1.442695
        %v1621 = vpow.pop %v1620
        %v1622 = vmul.f32 %v1551, 1.442695
        %v1623 = vpow.pop %v1622
        %v1624 = vmul.f32 %v1552, 1.442695
        %v1625 = vpow.pop %v1624
        %v1626 = vmul.f32 %v1553, 1.442695
        %v1627 = vpow.pop %v1626
        %v1628 = vmul.f32 %v1554, 1.442695
        %v1629 = vpow.pop %v1628
        %v1630 = vmul.f32 %v1555, 1.442695
        %v1631 = vpow.pop %v1630
        %v1632 = vmul.f32 %v1556, 1.442695
        %v1633 = vpow.pop %v1632
        %v1634 = vmul.f32 %v1557, 1.442695
        %v1635 = vpow.pop %v1634
        %v1636 = vmul.f32 %v1558, 1.442695
        %v1637 = vpow.pop %v1636
        %v1638 = vmul.f32 %v1559, 1.442695
        %v1639 = vpow.pop %v1638
        %v1640 = vmul.f32 %v1560, 1.442695
        %v1641 = vpow.pop %v1640
        %v1642 = vmul.f32 %v1561, 1.442695
        %v1643 = vpow.pop %v1642
        %v1644 = vmul.f32 %v1562, 1.442695
        %v1645 = vpow.pop %v1644
        %v1646 = vmul.f32 %v1563, 1.442695
        %v1647 = vpow.pop %v1646
        %v1648 = vmul.f32 %v1564, 1.442695
        %v1649 = vpow.pop %v1648
        %v1650 = vmul.f32 %v1565, 1.442695
        %v1651 = vpow.pop %v1650
        %v1652 = vmul.f32 %v1566, 1.442695
        %v1653 = vpow.pop %v1652
        %v1654 = vmul.f32 %v1567, 1.442695
        %v1655 = vpow.pop %v1654
        %v1656 = vmul.f32 %v1568, 1.442695
        %v1657 = vpow.pop %v1656
        %v1658 = vmul.f32 %v1569, 1.442695
        %v1659 = vpow.pop %v1658
        %v1660 = vmul.f32 %v1570, 1.442695
        %v1661 = vpow.pop %v1660
        %v1662 = vmul.f32 %v1571, 1.442695
        %v1663 = vpow.pop %v1662
        %v1664 = vmul.f32 %v1572, 1.442695
        %v1665 = vpow.pop %v1664
        %v1666 = vmul.f32 %v1573, 1.442695
        %v1667 = vpow.pop %v1666
        %v1668 = vmul.f32 %v1574, 1.442695
        %v1669 = vpow.pop %v1668
        %v1670 = vmul.f32 %v1575, 1.442695
        %v1671 = vpow.pop %v1670
        %v1672 = vmul.f32 %v1576, 1.442695
        %v1673 = vpow.pop %v1672
        %v1674 = vmul.f32 %v1577, 1.442695
        %v1675 = vpow.pop %v1674
        %v1676 = vmul.f32 %v1578, 1.442695
        %v1677 = vpow.pop %v1676
        %v1678 = vmul.f32 %v1579, 1.442695
        %v1679 = vpow.pop %v1678
        %v1680 = vmul.f32 %v1580, 1.442695
        %v1681 = vpow.pop %v1680
        %v1682 = vmul.f32 %v1581, 1.442695
        %v1683 = vpow.pop %v1682
        %v1684 = vmul.f32 %v1582, 1.442695
        %v1685 = vpow.pop %v1684
        %v1686 = vmul.f32 %v1583, 1.442695
        %v1687 = vpow.pop %v1686
        %v1688 = vmul.f32 %v1584, 1.442695
        %v1689 = vpow.pop %v1688
        %v1690 = vmul.f32 %v1585, 1.442695
        %v1691 = vpow.pop %v1690
        %v1692 = vmul.f32 %v1586, 1.442695
        %v1693 = vpow.pop %v1692
        %v1694 = vmul.f32 %v1587, 1.442695
        %v1695 = vpow.pop %v1694
        %v1696 = vmul.f32 %v1588, 1.442695
        %v1697 = vpow.pop %v1696
        %v1698 = vmul.f32 %v1589, 1.442695
        %v1699 = vpow.pop %v1698
        %v1700 = vmul.f32 %v1590, 1.442695
        %v1701 = vpow.pop %v1700
        %v1702 = vmul.f32 %v1591, 1.442695
        %v1703 = vpow.pop %v1702
        %v1704 = vmul.f32 %v1592, 1.442695
        %v1705 = vpow.pop %v1704
        %v1706 = vmul.f32 %v1593, 1.442695
        %v1707 = vpow.pop %v1706
        %v1708 = vmul.f32 %v1594, 1.442695
        %v1709 = vpow.pop %v1708
        %v1710 = vmul.f32 %v1595, 1.442695
        %v1711 = vpow.pop %v1710
        %v1712 = vmul.f32 %v1596, 1.442695
        %v1713 = vpow.pop %v1712
        %v1714 = vmul.f32 %v1597, 1.442695
        %v1715 = vpow.pop %v1714
        %v1716 = vmul.f32 %v1598, 1.442695
        %v1717 = vpow.pop %v1716
        %v1718 = vmul.f32 %v1599, 1.442695
        %v1719 = vpow.pop %v1718
        %v1720 = vmul.f32 %v1600, 1.442695
        %v1721 = vpow.pop %v1720
        %v1722 = vmul.f32 %v1601, 1.442695
        %v1723 = vpow.pop %v1722
        %v1724 = vmul.f32 %v1602, 1.442695
        %v1725 = vpow.pop %v1724
        %v1726 = vmul.f32 %v1603, 1.442695
        %v1727 = vpow.pop %v1726
        %v1728 = vmul.f32 %v1604, 1.442695
        %v1729 = vpow.pop %v1728
        %v1730 = vmul.f32 %v1605, 1.442695
        %v1731 = vpow.pop %v1730
        %v1732 = vmul.f32 %v1606, 1.442695
        %v1733 = vpow.pop %v1732
        %v1734 = vmul.f32 %v1607, 1.442695
        %v1735 = vpow.pop %v1734
        %v1736 = vsel %vm1255, %v1609, 0.0
        %v1737 = vsel %vm1255, %v1613, 0.0
        %v1738 = vadd.f32 %v1736, %v1737
        %v1739 = vrot.slane %v1738, 4
        %v1740 = vadd.f32 %v1738, %v1739
        %v1741 = vrot.slane %v1740, 2
        %v1742 = vadd.f32 %v1740, %v1741
        %v1743 = vrot.slane %v1742, 1
        %v1744 = vadd.f32 %v1742, %v1743
        %v1745 = vsel %vm305, %v1611, 0.0
        %v1746 = vsel %vm305, %v1615, 0.0
        %v1747 = vadd.f32 %v1745, %v1746
        %v1748 = vrot.slane %v1747, 4
        %v1749 = vadd.f32 %v1747, %v1748
        %v1750 = vrot.slane %v1749, 2
        %v1751 = vadd.f32 %v1749, %v1750
        %v1752 = vrot.slane %v1751, 1
        %v1753 = vadd.f32 %v1751, %v1752
        %v1754 = vsel %vm1255, %v1617, 0.0
        %v1755 = vsel %vm1255, %v1621, 0.0
        %v1756 = vadd.f32 %v1754, %v1755
        %v1757 = vrot.slane %v1756, 4
        %v1758 = vadd.f32 %v1756, %v1757
        %v1759 = vrot.slane %v1758, 2
        %v1760 = vadd.f32 %v1758, %v1759
        %v1761 = vrot.slane %v1760, 1
        %v1762 = vadd.f32 %v1760, %v1761
        %v1763 = vsel %vm305, %v1619, 0.0
        %v1764 = vsel %vm305, %v1623, 0.0
        %v1765 = vadd.f32 %v1763, %v1764
        %v1766 = vrot.slane %v1765, 4
        %v1767 = vadd.f32 %v1765, %v1766
        %v1768 = vrot.slane %v1767, 2
        %v1769 = vadd.f32 %v1767, %v1768
        %v1770 = vrot.slane %v1769, 1
        %v1771 = vadd.f32 %v1769, %v1770
        %v1772 = vsel %vm1255, %v1625, 0.0
        %v1773 = vsel %vm1255, %v1629, 0.0
        %v1774 = vadd.f32 %v1772, %v1773
        %v1775 = vrot.slane %v1774, 4
        %v1776 = vadd.f32 %v1774, %v1775
        %v1777 = vrot.slane %v1776, 2
        %v1778 = vadd.f32 %v1776, %v1777
        %v1779 = vrot.slane %v1778, 1
        %v1780 = vadd.f32 %v1778, %v1779
        %v1781 = vsel %vm305, %v1627, 0.0
        %v1782 = vsel %vm305, %v1631, 0.0
        %v1783 = vadd.f32 %v1781, %v1782
        %v1784 = vrot.slane %v1783, 4
        %v1785 = vadd.f32 %v1783, %v1784
        %v1786 = vrot.slane %v1785, 2
        %v1787 = vadd.f32 %v1785, %v1786
        %v1788 = vrot.slane %v1787, 1
        %v1789 = vadd.f32 %v1787, %v1788
        %v1790 = vsel %vm1255, %v1633, 0.0
        %v1791 = vsel %vm1255, %v1637, 0.0
        %v1792 = vadd.f32 %v1790, %v1791
        %v1793 = vrot.slane %v1792, 4
        %v1794 = vadd.f32 %v1792, %v1793
        %v1795 = vrot.slane %v1794, 2
        %v1796 = vadd.f32 %v1794, %v1795
        %v1797 = vrot.slane %v1796, 1
        %v1798 = vadd.f32 %v1796, %v1797
        %v1799 = vsel %vm305, %v1635, 0.0
        %v1800 = vsel %vm305, %v1639, 0.0
        %v1801 = vadd.f32 %v1799, %v1800
        %v1802 = vrot.slane %v1801, 4
        %v1803 = vadd.f32 %v1801, %v1802
        %v1804 = vrot.slane %v1803, 2
        %v1805 = vadd.f32 %v1803, %v1804
        %v1806 = vrot.slane %v1805, 1
        %v1807 = vadd.f32 %v1805, %v1806
        %v1808 = vsel %vm1255, %v1641, 0.0
        %v1809 = vsel %vm1255, %v1645, 0.0
        %v1810 = vadd.f32 %v1808, %v1809
        %v1811 = vrot.slane %v1810, 4
        %v1812 = vadd.f32 %v1810, %v1811
        %v1813 = vrot.slane %v1812, 2
        %v1814 = vadd.f32 %v1812, %v1813
        %v1815 = vrot.slane %v1814, 1
        %v1816 = vadd.f32 %v1814, %v1815
        %v1817 = vsel %vm305, %v1643, 0.0
        %v1818 = vsel %vm305, %v1647, 0.0
        %v1819 = vadd.f32 %v1817, %v1818
        %v1820 = vrot.slane %v1819, 4
        %v1821 = vadd.f32 %v1819, %v1820
        %v1822 = vrot.slane %v1821, 2
        %v1823 = vadd.f32 %v1821, %v1822
        %v1824 = vrot.slane %v1823, 1
        %v1825 = vadd.f32 %v1823, %v1824
        %v1826 = vsel %vm1255, %v1649, 0.0
        %v1827 = vsel %vm1255, %v1653, 0.0
        %v1828 = vadd.f32 %v1826, %v1827
        %v1829 = vrot.slane %v1828, 4
        %v1830 = vadd.f32 %v1828, %v1829
        %v1831 = vrot.slane %v1830, 2
        %v1832 = vadd.f32 %v1830, %v1831
        %v1833 = vrot.slane %v1832, 1
        %v1834 = vadd.f32 %v1832, %v1833
        %v1835 = vsel %vm305, %v1651, 0.0
        %v1836 = vsel %vm305, %v1655, 0.0
        %v1837 = vadd.f32 %v1835, %v1836
        %v1838 = vrot.slane %v1837, 4
        %v1839 = vadd.f32 %v1837, %v1838
        %v1840 = vrot.slane %v1839, 2
        %v1841 = vadd.f32 %v1839, %v1840
        %v1842 = vrot.slane %v1841, 1
        %v1843 = vadd.f32 %v1841, %v1842
        %v1844 = vsel %vm1255, %v1657, 0.0
        %v1845 = vsel %vm1255, %v1661, 0.0
        %v1846 = vadd.f32 %v1844, %v1845
        %v1847 = vrot.slane %v1846, 4
        %v1848 = vadd.f32 %v1846, %v1847
        %v1849 = vrot.slane %v1848, 2
        %v1850 = vadd.f32 %v1848, %v1849
        %v1851 = vrot.slane %v1850, 1
        %v1852 = vadd.f32 %v1850, %v1851
        %v1853 = vsel %vm305, %v1659, 0.0
        %v1854 = vsel %vm305, %v1663, 0.0
        %v1855 = vadd.f32 %v1853, %v1854
        %v1856 = vrot.slane %v1855, 4
        %v1857 = vadd.f32 %v1855, %v1856
        %v1858 = vrot.slane %v1857, 2
        %v1859 = vadd.f32 %v1857, %v1858
        %v1860 = vrot.slane %v1859, 1
        %v1861 = vadd.f32 %v1859, %v1860
        %v1862 = vsel %vm1255, %v1665, 0.0
        %v1863 = vsel %vm1255, %v1669, 0.0
        %v1864 = vadd.f32 %v1862, %v1863
        %v1865 = vrot.slane %v1864, 4
        %v1866 = vadd.f32 %v1864, %v1865
        %v1867 = vrot.slane %v1866, 2
        %v1868 = vadd.f32 %v1866, %v1867
        %v1869 = vrot.slane %v1868, 1
        %v1870 = vadd.f32 %v1868, %v1869
        %v1871 = vsel %vm305, %v1667, 0.0
        %v1872 = vsel %vm305, %v1671, 0.0
        %v1873 = vadd.f32 %v1871, %v1872
        %v1874 = vrot.slane %v1873, 4
        %v1875 = vadd.f32 %v1873, %v1874
        %v1876 = vrot.slane %v1875, 2
        %v1877 = vadd.f32 %v1875, %v1876
        %v1878 = vrot.slane %v1877, 1
        %v1879 = vadd.f32 %v1877, %v1878
        %v1880 = vsel %vm1255, %v1673, 0.0
        %v1881 = vsel %vm1255, %v1677, 0.0
        %v1882 = vadd.f32 %v1880, %v1881
        %v1883 = vrot.slane %v1882, 4
        %v1884 = vadd.f32 %v1882, %v1883
        %v1885 = vrot.slane %v1884, 2
        %v1886 = vadd.f32 %v1884, %v1885
        %v1887 = vrot.slane %v1886, 1
        %v1888 = vadd.f32 %v1886, %v1887
        %v1889 = vsel %vm305, %v1675, 0.0
        %v1890 = vsel %vm305, %v1679, 0.0
        %v1891 = vadd.f32 %v1889, %v1890
        %v1892 = vrot.slane %v1891, 4
        %v1893 = vadd.f32 %v1891, %v1892
        %v1894 = vrot.slane %v1893, 2
        %v1895 = vadd.f32 %v1893, %v1894
        %v1896 = vrot.slane %v1895, 1
        %v1897 = vadd.f32 %v1895, %v1896
        %v1898 = vsel %vm1255, %v1681, 0.0
        %v1899 = vsel %vm1255, %v1685, 0.0
        %v1900 = vadd.f32 %v1898, %v1899
        %v1901 = vrot.slane %v1900, 4
        %v1902 = vadd.f32 %v1900, %v1901
        %v1903 = vrot.slane %v1902, 2
        %v1904 = vadd.f32 %v1902, %v1903
        %v1905 = vrot.slane %v1904, 1
        %v1906 = vadd.f32 %v1904, %v1905
        %v1907 = vsel %vm305, %v1683, 0.0
        %v1908 = vsel %vm305, %v1687, 0.0
        %v1909 = vadd.f32 %v1907, %v1908
        %v1910 = vrot.slane %v1909, 4
        %v1911 = vadd.f32 %v1909, %v1910
        %v1912 = vrot.slane %v1911, 2
        %v1913 = vadd.f32 %v1911, %v1912
        %v1914 = vrot.slane %v1913, 1
        %v1915 = vadd.f32 %v1913, %v1914
        %v1916 = vsel %vm1255, %v1689, 0.0
        %v1917 = vsel %vm1255, %v1693, 0.0
        %v1918 = vadd.f32 %v1916, %v1917
        %v1919 = vrot.slane %v1918, 4
        %v1920 = vadd.f32 %v1918, %v1919
        %v1921 = vrot.slane %v1920, 2
        %v1922 = vadd.f32 %v1920, %v1921
        %v1923 = vrot.slane %v1922, 1
        %v1924 = vadd.f32 %v1922, %v1923
        %v1925 = vsel %vm305, %v1691, 0.0
        %v1926 = vsel %vm305, %v1695, 0.0
        %v1927 = vadd.f32 %v1925, %v1926
        %v1928 = vrot.slane %v1927, 4
        %v1929 = vadd.f32 %v1927, %v1928
        %v1930 = vrot.slane %v1929, 2
        %v1931 = vadd.f32 %v1929, %v1930
        %v1932 = vrot.slane %v1931, 1
        %v1933 = vadd.f32 %v1931, %v1932
        %v1934 = vsel %vm1255, %v1697, 0.0
        %v1935 = vsel %vm1255, %v1701, 0.0
        %v1936 = vadd.f32 %v1934, %v1935
        %v1937 = vrot.slane %v1936, 4
        %v1938 = vadd.f32 %v1936, %v1937
        %v1939 = vrot.slane %v1938, 2
        %v1940 = vadd.f32 %v1938, %v1939
        %v1941 = vrot.slane %v1940, 1
        %v1942 = vadd.f32 %v1940, %v1941
        %v1943 = vsel %vm305, %v1699, 0.0
        %v1944 = vsel %vm305, %v1703, 0.0
        %v1945 = vadd.f32 %v1943, %v1944
        %v1946 = vrot.slane %v1945, 4
        %v1947 = vadd.f32 %v1945, %v1946
        %v1948 = vrot.slane %v1947, 2
        %v1949 = vadd.f32 %v1947, %v1948
        %v1950 = vrot.slane %v1949, 1
        %v1951 = vadd.f32 %v1949, %v1950
        %v1952 = vsel %vm1255, %v1705, 0.0
        %v1953 = vsel %vm1255, %v1709, 0.0
        %v1954 = vadd.f32 %v1952, %v1953
        %v1955 = vrot.slane %v1954, 4
        %v1956 = vadd.f32 %v1954, %v1955
        %v1957 = vrot.slane %v1956, 2
        %v1958 = vadd.f32 %v1956, %v1957
        %v1959 = vrot.slane %v1958, 1
        %v1960 = vadd.f32 %v1958, %v1959
        %v1961 = vsel %vm305, %v1707, 0.0
        %v1962 = vsel %vm305, %v1711, 0.0
        %v1963 = vadd.f32 %v1961, %v1962
        %v1964 = vrot.slane %v1963, 4
        %v1965 = vadd.f32 %v1963, %v1964
        %v1966 = vrot.slane %v1965, 2
        %v1967 = vadd.f32 %v1965, %v1966
        %v1968 = vrot.slane %v1967, 1
        %v1969 = vadd.f32 %v1967, %v1968
        %v1970 = vsel %vm1255, %v1713, 0.0
        %v1971 = vsel %vm1255, %v1717, 0.0
        %v1972 = vadd.f32 %v1970, %v1971
        %v1973 = vrot.slane %v1972, 4
        %v1974 = vadd.f32 %v1972, %v1973
        %v1975 = vrot.slane %v1974, 2
        %v1976 = vadd.f32 %v1974, %v1975
        %v1977 = vrot.slane %v1976, 1
        %v1978 = vadd.f32 %v1976, %v1977
        %v1979 = vsel %vm305, %v1715, 0.0
        %v1980 = vsel %vm305, %v1719, 0.0
        %v1981 = vadd.f32 %v1979, %v1980
        %v1982 = vrot.slane %v1981, 4
        %v1983 = vadd.f32 %v1981, %v1982
        %v1984 = vrot.slane %v1983, 2
        %v1985 = vadd.f32 %v1983, %v1984
        %v1986 = vrot.slane %v1985, 1
        %v1987 = vadd.f32 %v1985, %v1986
        %v1988 = vsel %vm1255, %v1721, 0.0
        %v1989 = vsel %vm1255, %v1725, 0.0
        %v1990 = vadd.f32 %v1988, %v1989
        %v1991 = vrot.slane %v1990, 4
        %v1992 = vadd.f32 %v1990, %v1991
        %v1993 = vrot.slane %v1992, 2
        %v1994 = vadd.f32 %v1992, %v1993
        %v1995 = vrot.slane %v1994, 1
        %v1996 = vadd.f32 %v1994, %v1995
        %v1997 = vsel %vm305, %v1723, 0.0
        %v1998 = vsel %vm305, %v1727, 0.0
        %v1999 = vadd.f32 %v1997, %v1998
        %v2000 = vrot.slane %v1999, 4
        %v2001 = vadd.f32 %v1999, %v2000
        %v2002 = vrot.slane %v2001, 2
        %v2003 = vadd.f32 %v2001, %v2002
        %v2004 = vrot.slane %v2003, 1
        %v2005 = vadd.f32 %v2003, %v2004
        %v2006 = vsel %vm1255, %v1729, 0.0
        %v2007 = vsel %vm1255, %v1733, 0.0
        %v2008 = vadd.f32 %v2006, %v2007
        %v2009 = vrot.slane %v2008, 4
        %v2010 = vadd.f32 %v2008, %v2009
        %v2011 = vrot.slane %v2010, 2
        %v2012 = vadd.f32 %v2010, %v2011
        %v2013 = vrot.slane %v2012, 1
        %v2014 = vadd.f32 %v2012, %v2013
        %v2015 = vsel %vm305, %v1731, 0.0
        %v2016 = vsel %vm305, %v1735, 0.0
        %v2017 = vadd.f32 %v2015, %v2016
        %v2018 = vrot.slane %v2017, 4
        %v2019 = vadd.f32 %v2017, %v2018
        %v2020 = vrot.slane %v2019, 2
        %v2021 = vadd.f32 %v2019, %v2020
        %v2022 = vrot.slane %v2021, 1
        %v2023 = vadd.f32 %v2021, %v2022
        %v2024 = vrcp.pop %v1744
        %v2025 = vrcp.pop %v1753
        %v2026 = vrcp.pop %v1762
        %v2027 = vrcp.pop %v1771
        %v2028 = vrcp.pop %v1780
        %v2029 = vrcp.pop %v1789
        %v2030 = vrcp.pop %v1798
        %v2031 = vrcp.pop %v1807
        %v2032 = vrcp.pop %v1816
        %v2033 = vrcp.pop %v1825
        %v2034 = vrcp.pop %v1834
        %v2035 = vrcp.pop %v1843
        %v2036 = vrcp.pop %v1852
        %v2037 = vrcp.pop %v1861
        %v2038 = vrcp.pop %v1870
        %v2039 = vrcp.pop %v1879
        %v2040 = vrcp.pop %v1888
        %v2041 = vrcp.pop %v1897
        %v2042 = vrcp.pop %v1906
        %v2043 = vrcp.pop %v1915
        %v2044 = vrcp.pop %v1924
        %v2045 = vrcp.pop %v1933
        %v2046 = vrcp.pop %v1942
        %v2047 = vrcp.pop %v1951
        %v2048 = vrcp.pop %v1960
        %v2049 = vrcp.pop %v1969
        %v2050 = vrcp.pop %v1978
        %v2051 = vrcp.pop %v1987
        %v2052 = vrcp.pop %v1996
        %v2053 = vrcp.pop %v2005
        %v2054 = vrcp.pop %v2014
        %v2055 = vrcp.pop %v2023
        %v2056 = vmul.f32 %v1609, %v2024
        %v2057 = vmul.f32 %v1611, %v2025
        %v2058 = vmul.f32 %v1613, %v2024
        %v2059 = vmul.f32 %v1615, %v2025
        %v2060 = vmul.f32 %v1617, %v2026
        %v2061 = vmul.f32 %v1619, %v2027
        %v2062 = vmul.f32 %v1621, %v2026
        %v2063 = vmul.f32 %v1623, %v2027
        %v2064 = vmul.f32 %v1625, %v2028
        %v2065 = vmul.f32 %v1627, %v2029
        %v2066 = vmul.f32 %v1629, %v2028
        %v2067 = vmul.f32 %v1631, %v2029
        %v2068 = vmul.f32 %v1633, %v2030
        %v2069 = vmul.f32 %v1635, %v2031
        %v2070 = vmul.f32 %v1637, %v2030
        %v2071 = vmul.f32 %v1639, %v2031
        %v2072 = vmul.f32 %v1641, %v2032
        %v2073 = vmul.f32 %v1643, %v2033
        %v2074 = vmul.f32 %v1645, %v2032
        %v2075 = vmul.f32 %v1647, %v2033
        %v2076 = vmul.f32 %v1649, %v2034
        %v2077 = vmul.f32 %v1651, %v2035
        %v2078 = vmul.f32 %v1653, %v2034
        %v2079 = vmul.f32 %v1655, %v2035
        %v2080 = vmul.f32 %v1657, %v2036
        %v2081 = vmul.f32 %v1659, %v2037
        %v2082 = vmul.f32 %v1661, %v2036
        %v2083 = vmul.f32 %v1663, %v2037
        %v2084 = vmul.f32 %v1665, %v2038
        %v2085 = vmul.f32 %v1667, %v2039
        %v2086 = vmul.f32 %v1669, %v2038
        %v2087 = vmul.f32 %v1671, %v2039
        %v2088 = vmul.f32 %v1673, %v2040
        %v2089 = vmul.f32 %v1675, %v2041
        %v2090 = vmul.f32 %v1677, %v2040
        %v2091 = vmul.f32 %v1679, %v2041
        %v2092 = vmul.f32 %v1681, %v2042
        %v2093 = vmul.f32 %v1683, %v2043
        %v2094 = vmul.f32 %v1685, %v2042
        %v2095 = vmul.f32 %v1687, %v2043
        %v2096 = vmul.f32 %v1689, %v2044
        %v2097 = vmul.f32 %v1691, %v2045
        %v2098 = vmul.f32 %v1693, %v2044
        %v2099 = vmul.f32 %v1695, %v2045
        %v2100 = vmul.f32 %v1697, %v2046
        %v2101 = vmul.f32 %v1699, %v2047
        %v2102 = vmul.f32 %v1701, %v2046
        %v2103 = vmul.f32 %v1703, %v2047
        %v2104 = vmul.f32 %v1705, %v2048
        %v2105 = vmul.f32 %v1707, %v2049
        %v2106 = vmul.f32 %v1709, %v2048
        %v2107 = vmul.f32 %v1711, %v2049
        %v2108 = vmul.f32 %v1713, %v2050
        %v2109 = vmul.f32 %v1715, %v2051
        %v2110 = vmul.f32 %v1717, %v2050
        %v2111 = vmul.f32 %v1719, %v2051
        %v2112 = vmul.f32 %v1721, %v2052
        %v2113 = vmul.f32 %v1723, %v2053
        %v2114 = vmul.f32 %v1725, %v2052
        %v2115 = vmul.f32 %v1727, %v2053
        %v2116 = vmul.f32 %v1729, %v2054
        %v2117 = vmul.f32 %v1731, %v2055
        %v2118 = vmul.f32 %v1733, %v2054
        %v2119 = vmul.f32 %v1735, %v2055
        %v2120 = vld [vmem:[%s5] sm:$0xff]
        %v2121 = vld [vmem:[%s5 + $0x8] sm:$0xff]
        %v2122 = vld [vmem:[%s5 + $0x10] sm:$0xff]
        %v2123 = vld [vmem:[%s5 + $0x18] sm:$0xff]
        %v2124 = vld [vmem:[%s5 + $0x20] sm:$0xff]
        %v2125 = vld [vmem:[%s5 + $0x28] sm:$0xff]
        %v2126 = vld [vmem:[%s5 + $0x30] sm:$0xff]
        %v2127 = vld [vmem:[%s5 + $0x38] sm:$0xff]
        %v2128 = vld [vmem:[%s5 + $0x40] sm:$0xff]
        %v2129 = vld [vmem:[%s5 + $0x48] sm:$0xff]
        %v2130 = vld [vmem:[%s5 + $0x50] sm:$0xff]
        %v2131 = vld [vmem:[%s5 + $0x58] sm:$0xff]
        %v2132 = vld [vmem:[%s5 + $0x60] sm:$0xff]
        %v2133 = vld [vmem:[%s5 + $0x68] sm:$0xff]
        %v2134 = vld [vmem:[%s5 + $0x70] sm:$0xff]
        %v2135 = vld [vmem:[%s5 + $0x78] sm:$0xff]
        %2200 = vrot.lane.b32.xlu0 %v2056, 64
        %v2201 = vpop.permute.xlu0 %2200
        %2202 = vrot.lane.b32.xlu0 %v2057, 64
        %v2203 = vpop.permute.xlu0 %2202
        %2204 = vrot.lane.b32.xlu0 %v2058, 64
        %v2205 = vpop.permute.xlu0 %2204
        %2206 = vrot.lane.b32.xlu0 %v2059, 64
        %v2207 = vpop.permute.xlu0 %2206
        %2208 = vrot.lane.b32.xlu0 %v2060, 64
        %v2209 = vpop.permute.xlu0 %2208
        %2210 = vrot.lane.b32.xlu0 %v2061, 64
        %v2211 = vpop.permute.xlu0 %2210
        %2212 = vrot.lane.b32.xlu0 %v2062, 64
        %v2213 = vpop.permute.xlu0 %2212
        %2214 = vrot.lane.b32.xlu0 %v2063, 64
        %v2215 = vpop.permute.xlu0 %2214
        %2216 = vrot.lane.b32.xlu0 %v2064, 64
        %v2217 = vpop.permute.xlu0 %2216
        %2218 = vrot.lane.b32.xlu0 %v2065, 64
        %v2219 = vpop.permute.xlu0 %2218
        %2220 = vrot.lane.b32.xlu0 %v2066, 64
        %v2221 = vpop.permute.xlu0 %2220
        %2222 = vrot.lane.b32.xlu0 %v2067, 64
        %v2223 = vpop.permute.xlu0 %2222
        %2224 = vrot.lane.b32.xlu0 %v2068, 64
        %v2225 = vpop.permute.xlu0 %2224
        %2226 = vrot.lane.b32.xlu0 %v2069, 64
        %v2227 = vpop.permute.xlu0 %2226
        %2228 = vrot.lane.b32.xlu0 %v2070, 64
        %v2229 = vpop.permute.xlu0 %2228
        %2230 = vrot.lane.b32.xlu0 %v2071, 64
        %v2231 = vpop.permute.xlu0 %2230
        %2232 = vrot.lane.b32.xlu0 %v2072, 64
        %v2233 = vpop.permute.xlu0 %2232
        %2234 = vrot.lane.b32.xlu0 %v2073, 64
        %v2235 = vpop.permute.xlu0 %2234
        %2236 = vrot.lane.b32.xlu0 %v2074, 64
        %v2237 = vpop.permute.xlu0 %2236
        %2238 = vrot.lane.b32.xlu0 %v2075, 64
        %v2239 = vpop.permute.xlu0 %2238
        %2240 = vrot.lane.b32.xlu0 %v2076, 64
        %v2241 = vpop.permute.xlu0 %2240
        %2242 = vrot.lane.b32.xlu0 %v2077, 64
        %v2243 = vpop.permute.xlu0 %2242
        %2244 = vrot.lane.b32.xlu0 %v2078, 64
        %v2245 = vpop.permute.xlu0 %2244
        %2246 = vrot.lane.b32.xlu0 %v2079, 64
        %v2247 = vpop.permute.xlu0 %2246
        %2248 = vrot.lane.b32.xlu0 %v2080, 64
        %v2249 = vpop.permute.xlu0 %2248
        %2250 = vrot.lane.b32.xlu0 %v2081, 64
        %v2251 = vpop.permute.xlu0 %2250
        %2252 = vrot.lane.b32.xlu0 %v2082, 64
        %v2253 = vpop.permute.xlu0 %2252
        %2254 = vrot.lane.b32.xlu0 %v2083, 64
        %v2255 = vpop.permute.xlu0 %2254
        %2256 = vrot.lane.b32.xlu0 %v2084, 64
        %v2257 = vpop.permute.xlu0 %2256
        %2258 = vrot.lane.b32.xlu0 %v2085, 64
        %v2259 = vpop.permute.xlu0 %2258
        %2260 = vrot.lane.b32.xlu0 %v2086, 64
        %v2261 = vpop.permute.xlu0 %2260
        %2262 = vrot.lane.b32.xlu0 %v2087, 64
        %v2263 = vpop.permute.xlu0 %2262
        %2264 = vrot.lane.b32.xlu0 %v2088, 64
        %v2265 = vpop.permute.xlu0 %2264
        %2266 = vrot.lane.b32.xlu0 %v2089, 64
        %v2267 = vpop.permute.xlu0 %2266
        %2268 = vrot.lane.b32.xlu0 %v2090, 64
        %v2269 = vpop.permute.xlu0 %2268
        %2270 = vrot.lane.b32.xlu0 %v2091, 64
        %v2271 = vpop.permute.xlu0 %2270
        %2272 = vrot.lane.b32.xlu0 %v2092, 64
        %v2273 = vpop.permute.xlu0 %2272
        %2274 = vrot.lane.b32.xlu0 %v2093, 64
        %v2275 = vpop.permute.xlu0 %2274
        %2276 = vrot.lane.b32.xlu0 %v2094, 64
        %v2277 = vpop.permute.xlu0 %2276
        %2278 = vrot.lane.b32.xlu0 %v2095, 64
        %v2279 = vpop.permute.xlu0 %2278
        %2280 = vrot.lane.b32.xlu0 %v2096, 64
        %v2281 = vpop.permute.xlu0 %2280
        %2282 = vrot.lane.b32.xlu0 %v2097, 64
        %v2283 = vpop.permute.xlu0 %2282
        %2284 = vrot.lane.b32.xlu0 %v2098, 64
        %v2285 = vpop.permute.xlu0 %2284
        %2286 = vrot.lane.b32.xlu0 %v2099, 64
        %v2287 = vpop.permute.xlu0 %2286
        %2288 = vrot.lane.b32.xlu0 %v2100, 64
        %v2289 = vpop.permute.xlu0 %2288
        %2290 = vrot.lane.b32.xlu0 %v2101, 64
        %v2291 = vpop.permute.xlu0 %2290
        %2292 = vrot.lane.b32.xlu0 %v2102, 64
        %v2293 = vpop.permute.xlu0 %2292
        %2294 = vrot.lane.b32.xlu0 %v2103, 64
        %v2295 = vpop.permute.xlu0 %2294
        %2296 = vrot.lane.b32.xlu0 %v2104, 64
        %v2297 = vpop.permute.xlu0 %2296
        %2298 = vrot.lane.b32.xlu0 %v2105, 64
        %v2299 = vpop.permute.xlu0 %2298
        %2300 = vrot.lane.b32.xlu0 %v2106, 64
        %v2301 = vpop.permute.xlu0 %2300
        %2302 = vrot.lane.b32.xlu0 %v2107, 64
        %v2303 = vpop.permute.xlu0 %2302
        %2304 = vrot.lane.b32.xlu0 %v2108, 64
        %v2305 = vpop.permute.xlu0 %2304
        %2306 = vrot.lane.b32.xlu0 %v2109, 64
        %v2307 = vpop.permute.xlu0 %2306
        %2308 = vrot.lane.b32.xlu0 %v2110, 64
        %v2309 = vpop.permute.xlu0 %2308
        %2310 = vrot.lane.b32.xlu0 %v2111, 64
        %v2311 = vpop.permute.xlu0 %2310
        %2312 = vrot.lane.b32.xlu0 %v2112, 64
        %v2313 = vpop.permute.xlu0 %2312
        %2314 = vrot.lane.b32.xlu0 %v2113, 64
        %v2315 = vpop.permute.xlu0 %2314
        %2316 = vrot.lane.b32.xlu0 %v2114, 64
        %v2317 = vpop.permute.xlu0 %2316
        %2318 = vrot.lane.b32.xlu0 %v2115, 64
        %v2319 = vpop.permute.xlu0 %2318
        %2320 = vrot.lane.b32.xlu0 %v2116, 64
        %v2321 = vpop.permute.xlu0 %2320
        %2322 = vrot.lane.b32.xlu0 %v2117, 64
        %v2323 = vpop.permute.xlu0 %2322
        %2324 = vrot.lane.b32.xlu0 %v2118, 64
        %v2325 = vpop.permute.xlu0 %2324
        %2326 = vrot.lane.b32.xlu0 %v2119, 64
        %v2327 = vpop.permute.xlu0 %2326
        %v2328 = vsel %vm305, %v2201, %v2203
        %v2329 = vsel %vm305, %v2205, %v2207
        %v2330 = vsel %vm305, %v2209, %v2211
        %v2331 = vsel %vm305, %v2213, %v2215
        %v2332 = vsel %vm305, %v2217, %v2219
        %v2333 = vsel %vm305, %v2221, %v2223
        %v2334 = vsel %vm305, %v2225, %v2227
        %v2335 = vsel %vm305, %v2229, %v2231
        %v2336 = vsel %vm305, %v2233, %v2235
        %v2337 = vsel %vm305, %v2237, %v2239
        %v2338 = vsel %vm305, %v2241, %v2243
        %v2339 = vsel %vm305, %v2245, %v2247
        %v2340 = vsel %vm305, %v2249, %v2251
        %v2341 = vsel %vm305, %v2253, %v2255
        %v2342 = vsel %vm305, %v2257, %v2259
        %v2343 = vsel %vm305, %v2261, %v2263
        %v2344 = vsel %vm305, %v2265, %v2267
        %v2345 = vsel %vm305, %v2269, %v2271
        %v2346 = vsel %vm305, %v2273, %v2275
        %v2347 = vsel %vm305, %v2277, %v2279
        %v2348 = vsel %vm305, %v2281, %v2283
        %v2349 = vsel %vm305, %v2285, %v2287
        %v2350 = vsel %vm305, %v2289, %v2291
        %v2351 = vsel %vm305, %v2293, %v2295
        %v2352 = vsel %vm305, %v2297, %v2299
        %v2353 = vsel %vm305, %v2301, %v2303
        %v2354 = vsel %vm305, %v2305, %v2307
        %v2355 = vsel %vm305, %v2309, %v2311
        %v2356 = vsel %vm305, %v2313, %v2315
        %v2357 = vsel %vm305, %v2317, %v2319
        %v2358 = vsel %vm305, %v2321, %v2323
        %v2359 = vsel %vm305, %v2325, %v2327
        %2392 = vmatprep.subr.mxu0 0.0
        %2393 = vmatpush1.msra.mxu0 %v2120
        %2394 = vmatprep.subr.mxu0 0.0
        %2395 = vmatpush1.msra.mxu0 %v2121
        %2396 = vmatprep.subr.mxu0 0.0
        %2397 = vmatpush1.msra.mxu0 %v2122
        %2398 = vmatprep.subr.mxu0 0.0
        %2399 = vmatpush1.msra.mxu0 %v2123
        %2400 = vmatprep.subr.mxu0 0.0
        %2401 = vmatpush1.msra.mxu0 %v2124
        %2402 = vmatprep.subr.mxu0 0.0
        %2403 = vmatpush1.msra.mxu0 %v2125
        %2404 = vmatprep.subr.mxu0 0.0
        %2405 = vmatpush1.msra.mxu0 %v2126
        %2406 = vmatprep.subr.mxu0 0.0
        %2407 = vmatpush1.msra.mxu0 %v2127
        %2408 = vmatprep.subr.mxu0 0.0
        %2409 = vmatpush1.msra.mxu0 %v2128
        %2410 = vmatprep.subr.mxu0 0.0
        %2411 = vmatpush1.msra.mxu0 %v2129
        %2412 = vmatprep.subr.mxu0 0.0
        %2413 = vmatpush1.msra.mxu0 %v2130
        %2414 = vmatprep.subr.mxu0 0.0
        %2415 = vmatpush1.msra.mxu0 %v2131
        %2416 = vmatprep.subr.mxu0 0.0
        %2417 = vmatpush1.msra.mxu0 %v2132
        %2418 = vmatprep.subr.mxu0 0.0
        %2419 = vmatpush1.msra.mxu0 %v2133
        %2420 = vmatprep.subr.mxu0 0.0
        %2421 = vmatpush1.msra.mxu0 %v2134
        %2422 = vmatprep.subr.mxu0 0.0
        %2423 = vmatpush1.msra.mxu0 %v2135
        %2424 = vmatprep.subr.mxu0 0.0
        %2425 = vmatpush1.msra.mxu0 0.0
        %2426 = vmatprep.subr.mxu0 0.0
        %2427 = vmatpush1.msra.mxu0 0.0
        %2428 = vmatprep.subr.mxu0 0.0
        %2429 = vmatpush1.msra.mxu0 0.0
        %2430 = vmatprep.subr.mxu0 0.0
        %2431 = vmatpush1.msra.mxu0 0.0
        %2432 = vmatprep.subr.mxu0 0.0
        %2433 = vmatpush1.msra.mxu0 0.0
        %2434 = vmatprep.subr.mxu0 0.0
        %2435 = vmatpush1.msra.mxu0 0.0
        %2436 = vmatprep.subr.mxu0 0.0
        %2437 = vmatpush1.msra.mxu0 0.0
        %2438 = vmatprep.subr.mxu0 0.0
        %2439 = vmatpush1.msra.mxu0 0.0
        %2440 = vmatprep.subr.mxu0 0.0
        %2441 = vmatpush1.msra.mxu0 0.0
        %2442 = vmatprep.subr.mxu0 0.0
        %2443 = vmatpush1.msra.mxu0 0.0
        %2444 = vmatprep.subr.mxu0 0.0
        %2445 = vmatpush1.msra.mxu0 0.0
        %2446 = vmatprep.subr.mxu0 0.0
        %2447 = vmatpush1.msra.mxu0 0.0
        %2448 = vmatprep.subr.mxu0 0.0
        %2449 = vmatpush1.msra.mxu0 0.0
        %2450 = vmatprep.subr.mxu0 0.0
        %2451 = vmatpush1.msra.mxu0 0.0
        %2452 = vmatprep.subr.mxu0 0.0
        %2453 = vmatpush1.msra.mxu0 0.0
        %2454 = vmatprep.subr.mxu0 0.0
        %2455 = vmatpush1.msra.mxu0 0.0
        %2456 = vmatprep.mubr.f32.mxu0 0.0
        %2457 = vmatmul.mubr.f32.gmra.mrb[0].mxu0 %v2328
        %v2458 = vpop.f32.mrb[0].mxu0
        %v2459 = vadd.f32 0.0, %v2458
        %v2460 = vpop.f32.mrb[0].mxu0
        %2461 = vmatprep.mubr.f32.mxu0 0.0
        %2462 = vmatmul.mubr.f32.gmra.mrb[0].mxu0 %v2329
        %v2463 = vpop.f32.mrb[0].mxu0
        %v2464 = vadd.f32 0.0, %v2463
        %v2465 = vpop.f32.mrb[0].mxu0
        %2466 = vmatprep.mubr.f32.mxu0 0.0
        %2467 = vmatmul.mubr.f32.gmra.mrb[0].mxu0 %v2330
        %v2468 = vpop.f32.mrb[0].mxu0
        %v2469 = vadd.f32 0.0, %v2468
        %v2470 = vpop.f32.mrb[0].mxu0
        %2471 = vmatprep.mubr.f32.mxu0 0.0
        %2472 = vmatmul.mubr.f32.gmra.mrb[0].mxu0 %v2331
        %v2473 = vpop.f32.mrb[0].mxu0
        %v2474 = vadd.f32 0.0, %v2473
        %v2475 = vpop.f32.mrb[0].mxu0
        %2476 = vmatprep.mubr.f32.mxu0 0.0
        %2477 = vmatmul.mubr.f32.gmra.mrb[0].mxu0 %v2332
        %v2478 = vpop.f32.mrb[0].mxu0
        %v2479 = vadd.f32 0.0, %v2478
        %v2480 = vpop.f32.mrb[0].mxu0
        %2481 = vmatprep.mubr.f32.mxu0 0.0
        %2482 = vmatmul.mubr.f32.gmra.mrb[0].mxu0 %v2333
        %v2483 = vpop.f32.mrb[0].mxu0
        %v2484 = vadd.f32 0.0, %v2483
        %v2485 = vpop.f32.mrb[0].mxu0
        %2486 = vmatprep.mubr.f32.mxu0 0.0
        %2487 = vmatmul.mubr.f32.gmra.mrb[0].mxu0 %v2334
        %v2488 = vpop.f32.mrb[0].mxu0
        %v2489 = vadd.f32 0.0, %v2488
        %v2490 = vpop.f32.mrb[0].mxu0
        %2491 = vmatprep.mubr.f32.mxu0 0.0
        %2492 = vmatmul.mubr.f32.gmra.mrb[0].mxu0 %v2335
        %v2493 = vpop.f32.mrb[0].mxu0
        %v2494 = vadd.f32 0.0, %v2493
        %v2495 = vpop.f32.mrb[0].mxu0
        %2496 = vmatprep.mubr.f32.mxu0 0.0
        %2497 = vmatmul.mubr.f32.gmra.mrb[0].mxu0 %v2336
        %v2498 = vpop.f32.mrb[0].mxu0
        %v2499 = vadd.f32 0.0, %v2498
        %v2500 = vpop.f32.mrb[0].mxu0
        %2501 = vmatprep.mubr.f32.mxu0 0.0
        %2502 = vmatmul.mubr.f32.gmra.mrb[0].mxu0 %v2337
        %v2503 = vpop.f32.mrb[0].mxu0
        %v2504 = vadd.f32 0.0, %v2503
        %v2505 = vpop.f32.mrb[0].mxu0
        %2506 = vmatprep.mubr.f32.mxu0 0.0
        %2507 = vmatmul.mubr.f32.gmra.mrb[0].mxu0 %v2338
        %v2508 = vpop.f32.mrb[0].mxu0
        %v2509 = vadd.f32 0.0, %v2508
        %v2510 = vpop.f32.mrb[0].mxu0
        %2511 = vmatprep.mubr.f32.mxu0 0.0
        %2512 = vmatmul.mubr.f32.gmra.mrb[0].mxu0 %v2339
        %v2513 = vpop.f32.mrb[0].mxu0
        %v2514 = vadd.f32 0.0, %v2513
        %v2515 = vpop.f32.mrb[0].mxu0
        %2516 = vmatprep.mubr.f32.mxu0 0.0
        %2517 = vmatmul.mubr.f32.gmra.mrb[0].mxu0 %v2340
        %v2518 = vpop.f32.mrb[0].mxu0
        %v2519 = vadd.f32 0.0, %v2518
        %v2520 = vpop.f32.mrb[0].mxu0
        %2521 = vmatprep.mubr.f32.mxu0 0.0
        %2522 = vmatmul.mubr.f32.gmra.mrb[0].mxu0 %v2341
        %v2523 = vpop.f32.mrb[0].mxu0
        %v2524 = vadd.f32 0.0, %v2523
        %v2525 = vpop.f32.mrb[0].mxu0
        %2526 = vmatprep.mubr.f32.mxu0 0.0
        %2527 = vmatmul.mubr.f32.gmra.mrb[0].mxu0 %v2342
        %v2528 = vpop.f32.mrb[0].mxu0
        %v2529 = vadd.f32 0.0, %v2528
        %v2530 = vpop.f32.mrb[0].mxu0
        %2531 = vmatprep.mubr.f32.mxu0 0.0
        %2532 = vmatmul.mubr.f32.gmra.mrb[0].mxu0 %v2343
        %v2533 = vpop.f32.mrb[0].mxu0
        %v2534 = vadd.f32 0.0, %v2533
        %v2535 = vpop.f32.mrb[0].mxu0
        %2536 = vmatprep.mubr.f32.mxu0 0.0
        %2537 = vmatmul.mubr.f32.gmra.mrb[0].mxu0 %v2344
        %v2538 = vpop.f32.mrb[0].mxu0
        %v2539 = vadd.f32 0.0, %v2538
        %v2540 = vpop.f32.mrb[0].mxu0
        %2541 = vmatprep.mubr.f32.mxu0 0.0
        %2542 = vmatmul.mubr.f32.gmra.mrb[0].mxu0 %v2345
        %v2543 = vpop.f32.mrb[0].mxu0
        %v2544 = vadd.f32 0.0, %v2543
        %v2545 = vpop.f32.mrb[0].mxu0
        %2546 = vmatprep.mubr.f32.mxu0 0.0
        %2547 = vmatmul.mubr.f32.gmra.mrb[0].mxu0 %v2346
        %v2548 = vpop.f32.mrb[0].mxu0
        %v2549 = vadd.f32 0.0, %v2548
        %v2550 = vpop.f32.mrb[0].mxu0
        %2551 = vmatprep.mubr.f32.mxu0 0.0
        %2552 = vmatmul.mubr.f32.gmra.mrb[0].mxu0 %v2347
        %v2553 = vpop.f32.mrb[0].mxu0
        %v2554 = vadd.f32 0.0, %v2553
        %v2555 = vpop.f32.mrb[0].mxu0
        %2556 = vmatprep.mubr.f32.mxu0 0.0
        %2557 = vmatmul.mubr.f32.gmra.mrb[0].mxu0 %v2348
        %v2558 = vpop.f32.mrb[0].mxu0
        %v2559 = vadd.f32 0.0, %v2558
        %v2560 = vpop.f32.mrb[0].mxu0
        %2561 = vmatprep.mubr.f32.mxu0 0.0
        %2562 = vmatmul.mubr.f32.gmra.mrb[0].mxu0 %v2349
        %v2563 = vpop.f32.mrb[0].mxu0
        %v2564 = vadd.f32 0.0, %v2563
        %v2565 = vpop.f32.mrb[0].mxu0
        %2566 = vmatprep.mubr.f32.mxu0 0.0
        %2567 = vmatmul.mubr.f32.gmra.mrb[0].mxu0 %v2350
        %v2568 = vpop.f32.mrb[0].mxu0
        %v2569 = vadd.f32 0.0, %v2568
        %v2570 = vpop.f32.mrb[0].mxu0
        %2571 = vmatprep.mubr.f32.mxu0 0.0
        %2572 = vmatmul.mubr.f32.gmra.mrb[0].mxu0 %v2351
        %v2573 = vpop.f32.mrb[0].mxu0
        %v2574 = vadd.f32 0.0, %v2573
        %v2575 = vpop.f32.mrb[0].mxu0
        %2576 = vmatprep.mubr.f32.mxu0 0.0
        %2577 = vmatmul.mubr.f32.gmra.mrb[0].mxu0 %v2352
        %v2578 = vpop.f32.mrb[0].mxu0
        %v2579 = vadd.f32 0.0, %v2578
        %v2580 = vpop.f32.mrb[0].mxu0
        %2581 = vmatprep.mubr.f32.mxu0 0.0
        %2582 = vmatmul.mubr.f32.gmra.mrb[0].mxu0 %v2353
        %v2583 = vpop.f32.mrb[0].mxu0
        %v2584 = vadd.f32 0.0, %v2583
        %v2585 = vpop.f32.mrb[0].mxu0
        %2586 = vmatprep.mubr.f32.mxu0 0.0
        %2587 = vmatmul.mubr.f32.gmra.mrb[0].mxu0 %v2354
        %v2588 = vpop.f32.mrb[0].mxu0
        %v2589 = vadd.f32 0.0, %v2588
        %v2590 = vpop.f32.mrb[0].mxu0
        %2591 = vmatprep.mubr.f32.mxu0 0.0
        %2592 = vmatmul.mubr.f32.gmra.mrb[0].mxu0 %v2355
        %v2593 = vpop.f32.mrb[0].mxu0
        %v2594 = vadd.f32 0.0, %v2593
        %v2595 = vpop.f32.mrb[0].mxu0
        %2596 = vmatprep.mubr.f32.mxu0 0.0
        %2597 = vmatmul.mubr.f32.gmra.mrb[0].mxu0 %v2356
        %v2598 = vpop.f32.mrb[0].mxu0
        %v2599 = vadd.f32 0.0, %v2598
        %v2600 = vpop.f32.mrb[0].mxu0
        %2601 = vmatprep.mubr.f32.mxu0 0.0
        %2602 = vmatmul.mubr.f32.gmra.mrb[0].mxu0 %v2357
        %v2603 = vpop.f32.mrb[0].mxu0
        %v2604 = vadd.f32 0.0, %v2603
        %v2605 = vpop.f32.mrb[0].mxu0
        %2606 = vmatprep.mubr.f32.mxu0 0.0
        %2607 = vmatmul.mubr.f32.gmra.mrb[0].mxu0 %v2358
        %v2608 = vpop.f32.mrb[0].mxu0
        %v2609 = vadd.f32 0.0, %v2608
        %v2610 = vpop.f32.mrb[0].mxu0
        %2611 = vmatprep.mubr.f32.mxu0 0.0
        %2612 = vmatmul.mubr.f32.gmra.mrb[0].mxu0 %v2359
        %v2613 = vpop.f32.mrb[0].mxu0
        %v2614 = vadd.f32 0.0, %v2613
        %v2615 = vpop.f32.mrb[0].mxu0
        %2616 = vdwg.mxu0
        %v2617 = vmul.f32 %v2459, %v992
        %v2618 = vmul.f32 %v2464, %v998
        %v2619 = vmul.f32 %v2469, %v1004
        %v2620 = vmul.f32 %v2474, %v1010
        %v2621 = vmul.f32 %v2479, %v1016
        %v2622 = vmul.f32 %v2484, %v1022
        %v2623 = vmul.f32 %v2489, %v1028
        %v2624 = vmul.f32 %v2494, %v1034
        %v2625 = vmul.f32 %v2499, %v1040
        %v2626 = vmul.f32 %v2504, %v1046
        %v2627 = vmul.f32 %v2509, %v1052
        %v2628 = vmul.f32 %v2514, %v1058
        %v2629 = vmul.f32 %v2519, %v1064
        %v2630 = vmul.f32 %v2524, %v1070
        %v2631 = vmul.f32 %v2529, %v1076
        %v2632 = vmul.f32 %v2534, %v1082
        %v2633 = vmul.f32 %v2539, %v1088
        %v2634 = vmul.f32 %v2544, %v1094
        %v2635 = vmul.f32 %v2549, %v1100
        %v2636 = vmul.f32 %v2554, %v1106
        %v2637 = vmul.f32 %v2559, %v1112
        %v2638 = vmul.f32 %v2564, %v1118
        %v2639 = vmul.f32 %v2569, %v1124
        %v2640 = vmul.f32 %v2574, %v1130
        %v2641 = vmul.f32 %v2579, %v1136
        %v2642 = vmul.f32 %v2584, %v1142
        %v2643 = vmul.f32 %v2589, %v1148
        %v2644 = vmul.f32 %v2594, %v1154
        %v2645 = vmul.f32 %v2599, %v1160
        %v2646 = vmul.f32 %v2604, %v1166
        %v2647 = vmul.f32 %v2609, %v1172
        %v2648 = vmul.f32 %v2614, %v1178
        %v2649 = vsel %vm305, %v2617, 0.0
        %v2650 = vsel %vm305, %v2618, 0.0
        %v2651 = vadd.f32 %v2649, %v2650
        %v2652 = vrot.slane %v2651, 4
        %v2653 = vadd.f32 %v2651, %v2652
        %v2654 = vrot.slane %v2653, 2
        %v2655 = vadd.f32 %v2653, %v2654
        %v2656 = vrot.slane %v2655, 1
        %v2657 = vadd.f32 %v2655, %v2656
        %v2658 = vsel %vm305, %v2619, 0.0
        %v2659 = vsel %vm305, %v2620, 0.0
        %v2660 = vadd.f32 %v2658, %v2659
        %v2661 = vrot.slane %v2660, 4
        %v2662 = vadd.f32 %v2660, %v2661
        %v2663 = vrot.slane %v2662, 2
        %v2664 = vadd.f32 %v2662, %v2663
        %v2665 = vrot.slane %v2664, 1
        %v2666 = vadd.f32 %v2664, %v2665
        %v2667 = vsel %vm305, %v2621, 0.0
        %v2668 = vsel %vm305, %v2622, 0.0
        %v2669 = vadd.f32 %v2667, %v2668
        %v2670 = vrot.slane %v2669, 4
        %v2671 = vadd.f32 %v2669, %v2670
        %v2672 = vrot.slane %v2671, 2
        %v2673 = vadd.f32 %v2671, %v2672
        %v2674 = vrot.slane %v2673, 1
        %v2675 = vadd.f32 %v2673, %v2674
        %v2676 = vsel %vm305, %v2623, 0.0
        %v2677 = vsel %vm305, %v2624, 0.0
        %v2678 = vadd.f32 %v2676, %v2677
        %v2679 = vrot.slane %v2678, 4
        %v2680 = vadd.f32 %v2678, %v2679
        %v2681 = vrot.slane %v2680, 2
        %v2682 = vadd.f32 %v2680, %v2681
        %v2683 = vrot.slane %v2682, 1
        %v2684 = vadd.f32 %v2682, %v2683
        %v2685 = vsel %vm305, %v2625, 0.0
        %v2686 = vsel %vm305, %v2626, 0.0
        %v2687 = vadd.f32 %v2685, %v2686
        %v2688 = vrot.slane %v2687, 4
        %v2689 = vadd.f32 %v2687, %v2688
        %v2690 = vrot.slane %v2689, 2
        %v2691 = vadd.f32 %v2689, %v2690
        %v2692 = vrot.slane %v2691, 1
        %v2693 = vadd.f32 %v2691, %v2692
        %v2694 = vsel %vm305, %v2627, 0.0
        %v2695 = vsel %vm305, %v2628, 0.0
        %v2696 = vadd.f32 %v2694, %v2695
        %v2697 = vrot.slane %v2696, 4
        %v2698 = vadd.f32 %v2696, %v2697
        %v2699 = vrot.slane %v2698, 2
        %v2700 = vadd.f32 %v2698, %v2699
        %v2701 = vrot.slane %v2700, 1
        %v2702 = vadd.f32 %v2700, %v2701
        %v2703 = vsel %vm305, %v2629, 0.0
        %v2704 = vsel %vm305, %v2630, 0.0
        %v2705 = vadd.f32 %v2703, %v2704
        %v2706 = vrot.slane %v2705, 4
        %v2707 = vadd.f32 %v2705, %v2706
        %v2708 = vrot.slane %v2707, 2
        %v2709 = vadd.f32 %v2707, %v2708
        %v2710 = vrot.slane %v2709, 1
        %v2711 = vadd.f32 %v2709, %v2710
        %v2712 = vsel %vm305, %v2631, 0.0
        %v2713 = vsel %vm305, %v2632, 0.0
        %v2714 = vadd.f32 %v2712, %v2713
        %v2715 = vrot.slane %v2714, 4
        %v2716 = vadd.f32 %v2714, %v2715
        %v2717 = vrot.slane %v2716, 2
        %v2718 = vadd.f32 %v2716, %v2717
        %v2719 = vrot.slane %v2718, 1
        %v2720 = vadd.f32 %v2718, %v2719
        %v2721 = vsel %vm305, %v2633, 0.0
        %v2722 = vsel %vm305, %v2634, 0.0
        %v2723 = vadd.f32 %v2721, %v2722
        %v2724 = vrot.slane %v2723, 4
        %v2725 = vadd.f32 %v2723, %v2724
        %v2726 = vrot.slane %v2725, 2
        %v2727 = vadd.f32 %v2725, %v2726
        %v2728 = vrot.slane %v2727, 1
        %v2729 = vadd.f32 %v2727, %v2728
        %v2730 = vsel %vm305, %v2635, 0.0
        %v2731 = vsel %vm305, %v2636, 0.0
        %v2732 = vadd.f32 %v2730, %v2731
        %v2733 = vrot.slane %v2732, 4
        %v2734 = vadd.f32 %v2732, %v2733
        %v2735 = vrot.slane %v2734, 2
        %v2736 = vadd.f32 %v2734, %v2735
        %v2737 = vrot.slane %v2736, 1
        %v2738 = vadd.f32 %v2736, %v2737
        %v2739 = vsel %vm305, %v2637, 0.0
        %v2740 = vsel %vm305, %v2638, 0.0
        %v2741 = vadd.f32 %v2739, %v2740
        %v2742 = vrot.slane %v2741, 4
        %v2743 = vadd.f32 %v2741, %v2742
        %v2744 = vrot.slane %v2743, 2
        %v2745 = vadd.f32 %v2743, %v2744
        %v2746 = vrot.slane %v2745, 1
        %v2747 = vadd.f32 %v2745, %v2746
        %v2748 = vsel %vm305, %v2639, 0.0
        %v2749 = vsel %vm305, %v2640, 0.0
        %v2750 = vadd.f32 %v2748, %v2749
        %v2751 = vrot.slane %v2750, 4
        %v2752 = vadd.f32 %v2750, %v2751
        %v2753 = vrot.slane %v2752, 2
        %v2754 = vadd.f32 %v2752, %v2753
        %v2755 = vrot.slane %v2754, 1
        %v2756 = vadd.f32 %v2754, %v2755
        %v2757 = vsel %vm305, %v2641, 0.0
        %v2758 = vsel %vm305, %v2642, 0.0
        %v2759 = vadd.f32 %v2757, %v2758
        %v2760 = vrot.slane %v2759, 4
        %v2761 = vadd.f32 %v2759, %v2760
        %v2762 = vrot.slane %v2761, 2
        %v2763 = vadd.f32 %v2761, %v2762
        %v2764 = vrot.slane %v2763, 1
        %v2765 = vadd.f32 %v2763, %v2764
        %v2766 = vsel %vm305, %v2643, 0.0
        %v2767 = vsel %vm305, %v2644, 0.0
        %v2768 = vadd.f32 %v2766, %v2767
        %v2769 = vrot.slane %v2768, 4
        %v2770 = vadd.f32 %v2768, %v2769
        %v2771 = vrot.slane %v2770, 2
        %v2772 = vadd.f32 %v2770, %v2771
        %v2773 = vrot.slane %v2772, 1
        %v2774 = vadd.f32 %v2772, %v2773
        %v2775 = vsel %vm305, %v2645, 0.0
        %v2776 = vsel %vm305, %v2646, 0.0
        %v2777 = vadd.f32 %v2775, %v2776
        %v2778 = vrot.slane %v2777, 4
        %v2779 = vadd.f32 %v2777, %v2778
        %v2780 = vrot.slane %v2779, 2
        %v2781 = vadd.f32 %v2779, %v2780
        %v2782 = vrot.slane %v2781, 1
        %v2783 = vadd.f32 %v2781, %v2782
        %v2784 = vsel %vm305, %v2647, 0.0
        %v2785 = vsel %vm305, %v2648, 0.0
        %v2786 = vadd.f32 %v2784, %v2785
        %v2787 = vrot.slane %v2786, 4
        %v2788 = vadd.f32 %v2786, %v2787
        %v2789 = vrot.slane %v2788, 2
        %v2790 = vadd.f32 %v2788, %v2789
        %v2791 = vrot.slane %v2790, 1
        %v2792 = vadd.f32 %v2790, %v2791
        %vm2809 = vcmask 1041409
        %v2810 = vsel %vm2809, %v2666, %v2657
        %vm2811 = vcmask 1042434
        %v2812 = vsel %vm2811, %v2675, %v2810
        %vm2813 = vcmask 1043459
        %v2814 = vsel %vm2813, %v2684, %v2812
        %vm2815 = vcmask 1044484
        %v2816 = vsel %vm2815, %v2693, %v2814
        %vm2817 = vcmask 1045509
        %v2818 = vsel %vm2817, %v2702, %v2816
        %vm2819 = vcmask 1046534
        %v2820 = vsel %vm2819, %v2711, %v2818
        %vm2821 = vcmask 1047559
        %v2822 = vsel %vm2821, %v2720, %v2820
        %v2823 = vsel %vm2809, %v2738, %v2729
        %v2824 = vsel %vm2811, %v2747, %v2823
        %v2825 = vsel %vm2813, %v2756, %v2824
        %v2826 = vsel %vm2815, %v2765, %v2825
        %v2827 = vsel %vm2817, %v2774, %v2826
        %v2828 = vsel %vm2819, %v2783, %v2827
        %v2829 = vsel %vm2821, %v2792, %v2828
        %2832 = vst.msk [vmem:[%s270] sm:$0xff] %vm305, %v2822
        %2833 = vst.msk [vmem:[%s270 + $0x8] sm:$0xff] %vm305, %v2829
        %s2834 = sand.u32 %s162, 1
        %s2835 = scalar_lea.sflag [#allocation4], %s2834
        %s2836 = sand.u32 %s162, 1
        %s2837 = smul.addr %s2836, 16
        %s2838 = scalar_lea.vmem [#allocation5], %s2837
        // Predicated region
        $region49: #{tpu_custom_call.1} parent=43 // pred_check
          %p2839 = pneg %p172
        $region50: #{tpu_custom_call.1} parent=43 // pred_check_branch
          %2841 = sbr.rel (%p2839) target = $region52
        $region51: #{tpu_custom_call.1} parent=43 // pred_region
          %s2842 = smul.u32 2, %s23
          %s2844 = ssub.s32 256, 256
          %2845 = vsyncadd %s2835, %s2844
          %s2846 = smul.addr %s2842, 128
          %s2847 = scalar_lea.hbm %s6, %s2846
          %s2848 = sshll.u32 %s2838, 4
          %s2849 = int_to_ptr.vmem [resolvable:$true] %s2848
          %2854 = dma.vmem_to_hbm [thread:$0]  %s2849, 256, %s2847, %s2835, 128, 128, 8
        $region52: #{tpu_custom_call.1} parent=43 // pred_fallthru
          _
      $region44: #{tpu_custom_call.1} parent=5 // pred_fallthru
        _
      %p2855 = scmp.le.s32.totalorder 2, %s18
      // Predicated region
      $region53: #{tpu_custom_call.1} parent=5 // pred_check
        %p2856 = pneg %p2855
      $region54: #{tpu_custom_call.1} parent=5 // pred_check_branch
        %2858 = sbr.rel (%p2856) target = $region56
      $region55: #{tpu_custom_call.1} parent=5 // pred_region
        %s2859 = ssub.s32 %s18, 2
        // Predicated region
        $region57: #{tpu_custom_call.1} parent=55 // pred_check
          %p2860 = pneg %p178
        $region58: #{tpu_custom_call.1} parent=55 // pred_check_branch
          %2862 = sbr.rel (%p2860) target = $region60
        $region59: #{tpu_custom_call.1} parent=55 // pred_region
          %s2863 = sand.u32 %s163, 1
          %s2864 = scalar_lea.sflag [#allocation4], %s2863
          %s2865 = sand.u32 %s163, 1
          %s2866 = smul.addr %s2865, 16
          %s2867 = scalar_lea.vmem [#allocation5], %s2866
          %2868 = dma.done %s2864, 256
        $region60: #{tpu_custom_call.1} parent=55 // pred_fallthru
          _
      $region56: #{tpu_custom_call.1} parent=5 // pred_fallthru
        _
    $region6: #{tpu_custom_call.1} parent=1 // loop_footer
      %s22 = sadd.s32 1, %s18
    $region7: #{tpu_custom_call.1} parent=1 // loop_footer_branch
      %17 = sbr.rel target = $region3
    $region8: #{tpu_custom_call.1} parent=1 // loop_exit
      _
    %2869 = vsyncpa [#allocation3], 1
    %s2870 = scalar_lea.sflag [#allocation3], 1
    %2871 = vsyncpa %s2870, 1
    %2872 = vsyncpa [#allocation4], 1
    %s2873 = scalar_lea.sflag [#allocation4], 1
    %2874 = vsyncpa %s2873, 1

// kernel: tpu_custom_call.1
$region0: #{tpu_custom_call.1}
  #allocation0 [shape = 'u32[]', space=smem, size = 0x4, offset = 0x4, fixed_abs, tag = 'smem constant byte address 0x4 - core index']
  #allocation1 [shape = 'u32[144,128]{1,0:T(1,128)}', space=vmem, size = 0x12000, scoped, tag = 'internal scratch']
  %s0 = inlined_call_operand.hbm [shape: f32[32,16,64], index: 0, kind: input, shape index: {}]
  %s1 = inlined_call_operand.vmem [shape: f32[1,64], index: 1, kind: input, shape index: {}]
  %s2 = inlined_call_operand.vmem [shape: f32[1,64], index: 2, kind: input, shape index: {}]
  %s3 = inlined_call_operand.vmem [shape: f32[64,192], index: 3, kind: input, shape index: {}]
  %s4 = inlined_call_operand.vmem [shape: f32[1,192], index: 4, kind: input, shape index: {}]
  %s5 = inlined_call_operand.vmem [shape: f32[128,64], index: 5, kind: input, shape index: {}]
  %s6 = inlined_call_operand.hbm [shape: f32[32,64], index: 6, kind: output, shape index: {}]
  %s7 = sld [smem:[#allocation0]]
  $region61: #{tpu_custom_call.1} parent=0
    _
  %s9 = ssub.s32 1, %s7
  %s10 = scalar_select 0, %s9, %s7
  $region1: #{tpu_custom_call.1} parent=0
    #allocation2 [shape = 'u8[262144]{0}', space=vmem, size = 0x40000, scoped, tag = 'input window, operand 0']
    #allocation3 [shape = 's32[2]{0}', space=sflag, size = 0x8, scoped, tag = 'scoped memory for tpu_custom_call.1']
    #allocation4 [shape = 's32[2]{0}', space=sflag, size = 0x8, scoped, tag = 'scoped memory for tpu_custom_call.1']
    #allocation5 [shape = 'u8[16384]{0}', space=vmem, size = 0x4000, scoped, tag = 'output window, operand 0']
    %11 = vsyncpa [#allocation3], 0
    %s12 = scalar_lea.sflag [#allocation3], 1
    %13 = vsyncpa %s12, 0
    %14 = vsyncpa [#allocation4], 0
    %s15 = scalar_lea.sflag [#allocation4], 1
    %16 = vsyncpa %s15, 0
    loop: start=0, step=1, limit=4
    $region2: #{tpu_custom_call.1} parent=1 // loop_pre_header
      _
    $region3: #{tpu_custom_call.1} parent=1 // loop_header
      %s18 = sphi 0, %s22
      %p19 = scmp.ge.s32.totalorder %s18, 4
      %s28 = sphi 0, %s30
      %s31 = sphi 0, %s28
      %s32 = sphi 0, %s31
      %s48 = sphi 0, %s32
      %s52 = sphi 0, %s52
      %s54 = sphi 0, %s52
      %s55 = sphi 0, %s54
      %s69 = sphi 0, %s55
      %s73 = sphi 0, %s73
      %s75 = sphi 0, %s73
      %s76 = sphi 0, %s75
      %s90 = sphi 0, %s76
      %s94 = sphi 0, %s94
      %s96 = sphi 0, %s94
      %s97 = sphi 0, %s96
      %s111 = sphi 0, %s97
      %s115 = sphi 0, %s115
      %s117 = sphi 0, %s115
      %s118 = sphi 0, %s117
      %s132 = sphi 0, %s118
      %s136 = sphi 0, %s136
      %s138 = sphi 0, %s136
      %s139 = sphi 0, %s138
      %s153 = sphi 0, %s139
      %s159 = sphi 0, %s161
      %s162 = sphi 0, %s159
      %s163 = sphi 0, %s162
      %s179 = sphi 0, %s163
    $region4: #{tpu_custom_call.1} parent=1 // loop_header_branch
      %21 = sbr.rel (%p19) target = $region8
    $region5: #{tpu_custom_call.1} parent=1 // loop_body
      %s23 = ssub.s32 %s18, 1
      %s24 = ssub.s32 %s18, 2
      %s25 = sadd.s32 %s18, 1
      %s26 = ssub.s32 %s18, %s25
      %p27 = scmp.eq.s32.totalorder %s26, 0
      %s29 = sadd.s32 %s28, 1
      %s30 = scalar_select %p27, %s28, %s29
      %p33 = pneg %p27
      %p34 = scmp.eq.s32.totalorder %s18, 1
      %p35 = por %p33, %p34
      %p36 = scmp.ne.s32.totalorder %s28, %s31
      %p37 = scmp.eq.s32.totalorder %s18, 0
      %p38 = por %p36, %p37
      %p39 = scmp.ne.s32.totalorder %s28, %s31
      %p40 = scmp.eq.s32.totalorder %s23, 1
      %p41 = por %p39, %p40
      %p42 = scmp.ne.s32.totalorder %s31, %s32
      %p43 = scmp.eq.s32.totalorder %s23, 0
      %p44 = por %p42, %p43
      %p45 = scmp.ne.s32.totalorder %s31, %s32
      %p46 = scmp.eq.s32.totalorder %s24, 1
      %p47 = por %p45, %p46
      %p49 = scmp.ne.s32.totalorder %s32, %s48
      %p50 = scmp.eq.s32.totalorder %s24, 0
      %p51 = por %p49, %p50
      %s53 = sadd.s32 %s52, 1
      %p56 = scmp.eq.s32.totalorder %s18, 1
      %p57 = scmp.ne.s32.totalorder %s52, %s54
      %p58 = scmp.eq.s32.totalorder %s18, 0
      %p59 = por %p57, %p58
      %p60 = scmp.ne.s32.totalorder %s52, %s54
      %p61 = scmp.eq.s32.totalorder %s23, 1
      %p62 = por %p60, %p61
      %p63 = scmp.ne.s32.totalorder %s54, %s55
      %p64 = scmp.eq.s32.totalorder %s23, 0
      %p65 = por %p63, %p64
      %p66 = scmp.ne.s32.totalorder %s54, %s55
      %p67 = scmp.eq.s32.totalorder %s24, 1
      %p68 = por %p66, %p67
      %p70 = scmp.ne.s32.totalorder %s55, %s69
      %p71 = scmp.eq.s32.totalorder %s24, 0
      %p72 = por %p70, %p71
      %s74 = sadd.s32 %s73, 1
      %p77 = scmp.eq.s32.totalorder %s18, 1
      %p78 = scmp.ne.s32.totalorder %s73, %s75
      %p79 = scmp.eq.s32.totalorder %s18, 0
      %p80 = por %p78, %p79
      %p81 = scmp.ne.s32.totalorder %s73, %s75
      %p82 = scmp.eq.s32.totalorder %s23, 1
      %p83 = por %p81, %p82
      %p84 = scmp.ne.s32.totalorder %s75, %s76
      %p85 = scmp.eq.s32.totalorder %s23, 0
      %p86 = por %p84, %p85
      %p87 = scmp.ne.s32.totalorder %s75, %s76
      %p88 = scmp.eq.s32.totalorder %s24, 1
      %p89 = por %p87, %p88
      %p91 = scmp.ne.s32.totalorder %s76, %s90
      %p92 = scmp.eq.s32.totalorder %s24, 0
      %p93 = por %p91, %p92
      %s95 = sadd.s32 %s94, 1
      %p98 = scmp.eq.s32.totalorder %s18, 1
      %p99 = scmp.ne.s32.totalorder %s94, %s96
      %p100 = scmp.eq.s32.totalorder %s18, 0
      %p101 = por %p99, %p100
      %p102 = scmp.ne.s32.totalorder %s94, %s96
      %p103 = scmp.eq.s32.totalorder %s23, 1
      %p104 = por %p102, %p103
      %p105 = scmp.ne.s32.totalorder %s96, %s97
      %p106 = scmp.eq.s32.totalorder %s23, 0
      %p107 = por %p105, %p106
      %p108 = scmp.ne.s32.totalorder %s96, %s97
      %p109 = scmp.eq.s32.totalorder %s24, 1
      %p110 = por %p108, %p109
      %p112 = scmp.ne.s32.totalorder %s97, %s111
      %p113 = scmp.eq.s32.totalorder %s24, 0
      %p114 = por %p112, %p113
      %s116 = sadd.s32 %s115, 1
      %p119 = scmp.eq.s32.totalorder %s18, 1
      %p120 = scmp.ne.s32.totalorder %s115, %s117
      %p121 = scmp.eq.s32.totalorder %s18, 0
      %p122 = por %p120, %p121
      %p123 = scmp.ne.s32.totalorder %s115, %s117
      %p124 = scmp.eq.s32.totalorder %s23, 1
      %p125 = por %p123, %p124
      %p126 = scmp.ne.s32.totalorder %s117, %s118
      %p127 = scmp.eq.s32.totalorder %s23, 0
      %p128 = por %p126, %p127
      %p129 = scmp.ne.s32.totalorder %s117, %s118
      %p130 = scmp.eq.s32.totalorder %s24, 1
      %p131 = por %p129, %p130
      %p133 = scmp.ne.s32.totalorder %s118, %s132
      %p134 = scmp.eq.s32.totalorder %s24, 0
      %p135 = por %p133, %p134
      %s137 = sadd.s32 %s136, 1
      %p140 = scmp.eq.s32.totalorder %s18, 1
      %p141 = scmp.ne.s32.totalorder %s136, %s138
      %p142 = scmp.eq.s32.totalorder %s18, 0
      %p143 = por %p141, %p142
      %p144 = scmp.ne.s32.totalorder %s136, %s138
      %p145 = scmp.eq.s32.totalorder %s23, 1
      %p146 = por %p144, %p145
      %p147 = scmp.ne.s32.totalorder %s138, %s139
      %p148 = scmp.eq.s32.totalorder %s23, 0
      %p149 = por %p147, %p148
      %p150 = scmp.ne.s32.totalorder %s138, %s139
      %p151 = scmp.eq.s32.totalorder %s24, 1
      %p152 = por %p150, %p151
      %p154 = scmp.ne.s32.totalorder %s139, %s153
      %p155 = scmp.eq.s32.totalorder %s24, 0
      %p156 = por %p154, %p155
      %s157 = ssub.s32 %s18, %s25
      %p158 = scmp.eq.s32.totalorder %s157, 0
      %s160 = sadd.s32 %s159, 1
      %s161 = scalar_select %p158, %s159, %s160
      %p164 = pneg %p158
      %p165 = scmp.eq.s32.totalorder %s18, 1
      %p166 = por %p164, %p165
      %p167 = scmp.ne.s32.totalorder %s159, %s162
      %p168 = scmp.eq.s32.totalorder %s18, 0
      %p169 = por %p167, %p168
      %p170 = scmp.ne.s32.totalorder %s159, %s162
      %p171 = scmp.eq.s32.totalorder %s23, 1
      %p172 = por %p170, %p171
      %p173 = scmp.ne.s32.totalorder %s162, %s163
      %p174 = scmp.eq.s32.totalorder %s23, 0
      %p175 = por %p173, %p174
      %p176 = scmp.ne.s32.totalorder %s162, %s163
      %p177 = scmp.eq.s32.totalorder %s24, 1
      %p178 = por %p176, %p177
      %p180 = scmp.ne.s32.totalorder %s163, %s179
      %p181 = scmp.eq.s32.totalorder %s24, 0
      %p182 = por %p180, %p181
      %p183 = scmp.le.s32.totalorder 1, %s18
      %p184 = scmp.lt.s32.totalorder %s18, 3
      %p185 = pnand %p183, %p184
      %p186 = pneg %p185
      // Predicated region
      $region9: #{tpu_custom_call.1} parent=5 // pred_check
        _
      $region10: #{tpu_custom_call.1} parent=5 // pred_check_branch
        %188 = sbr.rel (%p185) target = $region12
      $region11: #{tpu_custom_call.1} parent=5 // pred_region
        %s189 = ssub.s32 %s18, 1
        // Predicated region
        $region13: #{tpu_custom_call.1} parent=11 // pred_check
          %p190 = pneg %p65
        $region14: #{tpu_custom_call.1} parent=11 // pred_check_branch
          %192 = sbr.rel (%p190) target = $region16
        $region15: #{tpu_custom_call.1} parent=11 // pred_region
          _
        $region16: #{tpu_custom_call.1} parent=11 // pred_fallthru
          _
        // Predicated region
        $region17: #{tpu_custom_call.1} parent=11 // pred_check
          %p193 = pneg %p86
        $region18: #{tpu_custom_call.1} parent=11 // pred_check_branch
          %195 = sbr.rel (%p193) target = $region20
        $region19: #{tpu_custom_call.1} parent=11 // pred_region
          _
        $region20: #{tpu_custom_call.1} parent=11 // pred_fallthru
          _
        // Predicated region
        $region21: #{tpu_custom_call.1} parent=11 // pred_check
          %p196 = pneg %p107
        $region22: #{tpu_custom_call.1} parent=11 // pred_check_branch
          %198 = sbr.rel (%p196) target = $region24
        $region23: #{tpu_custom_call.1} parent=11 // pred_region
          _
        $region24: #{tpu_custom_call.1} parent=11 // pred_fallthru
          _
        // Predicated region
        $region25: #{tpu_custom_call.1} parent=11 // pred_check
          %p199 = pneg %p128
        $region26: #{tpu_custom_call.1} parent=11 // pred_check_branch
          %201 = sbr.rel (%p199) target = $region28
        $region27: #{tpu_custom_call.1} parent=11 // pred_region
          _
        $region28: #{tpu_custom_call.1} parent=11 // pred_fallthru
          _
        // Predicated region
        $region29: #{tpu_custom_call.1} parent=11 // pred_check
          %p202 = pneg %p149
        $region30: #{tpu_custom_call.1} parent=11 // pred_check_branch
          %204 = sbr.rel (%p202) target = $region32
        $region31: #{tpu_custom_call.1} parent=11 // pred_region
          _
        $region32: #{tpu_custom_call.1} parent=11 // pred_fallthru
          _
      $region12: #{tpu_custom_call.1} parent=5 // pred_fallthru
        _
      %p205 = scmp.lt.s32.totalorder %s18, 2
      // Predicated region
      $region33: #{tpu_custom_call.1} parent=5 // pred_check
        %p206 = pneg %p205
      $region34: #{tpu_custom_call.1} parent=5 // pred_check_branch
        %208 = sbr.rel (%p206) target = $region36
      $region35: #{tpu_custom_call.1} parent=5 // pred_region
        // Predicated region
        $region37: #{tpu_custom_call.1} parent=35 // pred_check
          %p209 = pneg %p38
        $region38: #{tpu_custom_call.1} parent=35 // pred_check_branch
          %211 = sbr.rel (%p209) target = $region40
        $region39: #{tpu_custom_call.1} parent=35 // pred_region
          %s212 = sand.u32 %s28, 1
          %s213 = scalar_lea.sflag [#allocation3], %s212
          %s214 = sand.u32 %s28, 1
          %s215 = smul.addr %s214, 256
          %s216 = scalar_lea.vmem [#allocation2], %s215
          %s217 = smul.u32 16, %s18
          %s219 = ssub.s32 4096, 4096
          %220 = vsyncadd %s213, %s219
          %s221 = smul.addr %s217, 2
          %s222 = smul.addr %s221, 128
          %s223 = scalar_lea.hbm %s0, %s222
          %s224 = sshll.u32 %s216, 4
          %s225 = int_to_ptr.vmem [resolvable:$true] %s224
          %230 = dma.hbm_to_vmem [thread:$0]  %s223, 4096, %s225, %s213, 128, 128, 8
        $region40: #{tpu_custom_call.1} parent=35 // pred_fallthru
          _
      $region36: #{tpu_custom_call.1} parent=5 // pred_fallthru
        _
      %p231 = scmp.le.s32.totalorder 1, %s18
      %p232 = scmp.lt.s32.totalorder %s18, 3
      %p233 = pnand %p231, %p232
      %p234 = pneg %p233
      // Predicated region
      $region41: #{tpu_custom_call.1} parent=5 // pred_check
        _
      $region42: #{tpu_custom_call.1} parent=5 // pred_check_branch
        %236 = sbr.rel (%p233) target = $region44
      $region43: #{tpu_custom_call.1} parent=5 // pred_region
        %s237 = ssub.s32 %s18, 1
        %s238 = sand.u32 %s31, 1
        %s239 = scalar_lea.sflag [#allocation3], %s238
        %s240 = sand.u32 %s31, 1
        %s241 = smul.addr %s240, 256
        %s242 = scalar_lea.vmem [#allocation2], %s241
        // Predicated region
        $region45: #{tpu_custom_call.1} parent=43 // pred_check
          %p243 = pneg %p44
        $region46: #{tpu_custom_call.1} parent=43 // pred_check_branch
          %245 = sbr.rel (%p243) target = $region48
        $region47: #{tpu_custom_call.1} parent=43 // pred_region
          %246 = dma.done %s239, 4096
        $region48: #{tpu_custom_call.1} parent=43 // pred_fallthru
          _
        %s247 = sand.u32 %s31, 1
        %s248 = scalar_lea.sflag [#allocation3], %s247
        %s249 = sand.u32 %s31, 1
        %s250 = smul.addr %s249, 256
        %s251 = scalar_lea.vmem [#allocation2], %s250
        %p252 = pneg %p44
        %p253 = pneg %p41
        %p254 = pneg %p65
        %p255 = pneg %p62
        %p256 = pneg %p86
        %p257 = pneg %p83
        %p258 = pneg %p107
        %p259 = pneg %p104
        %p260 = pneg %p128
        %p261 = pneg %p125
        %p262 = pneg %p149
        %p263 = pneg %p146
        %p264 = pneg %p175
        %p265 = pneg %p172
        %s266 = sand.u32 %s162, 1
        %s267 = scalar_lea.sflag [#allocation4], %s266
        %s268 = sand.u32 %s162, 1
        %s269 = smul.addr %s268, 16
        %s270 = scalar_lea.vmem [#allocation5], %s269
        %s271 = smul.u32 16, %s23
        %s272 = smul.u32 2, %s23
        %v273 = vld [vmem:[%s242] sm:$0xff]
        %v274 = vld [vmem:[%s242 + $0x8] sm:$0xff]
        %v275 = vld [vmem:[%s242 + $0x10] sm:$0xff]
        %v276 = vld [vmem:[%s242 + $0x18] sm:$0xff]
        %v277 = vld [vmem:[%s242 + $0x20] sm:$0xff]
        %v278 = vld [vmem:[%s242 + $0x28] sm:$0xff]
        %v279 = vld [vmem:[%s242 + $0x30] sm:$0xff]
        %v280 = vld [vmem:[%s242 + $0x38] sm:$0xff]
        %v281 = vld [vmem:[%s242 + $0x40] sm:$0xff]
        %v282 = vld [vmem:[%s242 + $0x48] sm:$0xff]
        %v283 = vld [vmem:[%s242 + $0x50] sm:$0xff]
        %v284 = vld [vmem:[%s242 + $0x58] sm:$0xff]
        %v285 = vld [vmem:[%s242 + $0x60] sm:$0xff]
        %v286 = vld [vmem:[%s242 + $0x68] sm:$0xff]
        %v287 = vld [vmem:[%s242 + $0x70] sm:$0xff]
        %v288 = vld [vmem:[%s242 + $0x78] sm:$0xff]
        %v289 = vld [vmem:[%s242 + $0x80] sm:$0xff]
        %v290 = vld [vmem:[%s242 + $0x88] sm:$0xff]
        %v291 = vld [vmem:[%s242 + $0x90] sm:$0xff]
        %v292 = vld [vmem:[%s242 + $0x98] sm:$0xff]
        %v293 = vld [vmem:[%s242 + $0xa0] sm:$0xff]
        %v294 = vld [vmem:[%s242 + $0xa8] sm:$0xff]
        %v295 = vld [vmem:[%s242 + $0xb0] sm:$0xff]
        %v296 = vld [vmem:[%s242 + $0xb8] sm:$0xff]
        %v297 = vld [vmem:[%s242 + $0xc0] sm:$0xff]
        %v298 = vld [vmem:[%s242 + $0xc8] sm:$0xff]
        %v299 = vld [vmem:[%s242 + $0xd0] sm:$0xff]
        %v300 = vld [vmem:[%s242 + $0xd8] sm:$0xff]
        %v301 = vld [vmem:[%s242 + $0xe0] sm:$0xff]
        %v302 = vld [vmem:[%s242 + $0xe8] sm:$0xff]
        %v303 = vld [vmem:[%s242 + $0xf0] sm:$0xff]
        %v304 = vld [vmem:[%s242 + $0xf8] sm:$0xff]
        %vm305 = vcmask 523264
        %v306 = vsel %vm305, %v273, 0.0
        %307 = vadd.xlane.f32.xlu0 %v306
        %v308 = vpop.xlane.xlu0 %307
        %v309 = vsel %vm305, %v274, 0.0
        %310 = vadd.xlane.f32.xlu0 %v309
        %v311 = vpop.xlane.xlu0 %310
        %v312 = vsel %vm305, %v275, 0.0
        %313 = vadd.xlane.f32.xlu0 %v312
        %v314 = vpop.xlane.xlu0 %313
        %v315 = vsel %vm305, %v276, 0.0
        %316 = vadd.xlane.f32.xlu0 %v315
        %v317 = vpop.xlane.xlu0 %316
        %v318 = vsel %vm305, %v277, 0.0
        %319 = vadd.xlane.f32.xlu0 %v318
        %v320 = vpop.xlane.xlu0 %319
        %v321 = vsel %vm305, %v278, 0.0
        %322 = vadd.xlane.f32.xlu0 %v321
        %v323 = vpop.xlane.xlu0 %322
        %v324 = vsel %vm305, %v279, 0.0
        %325 = vadd.xlane.f32.xlu0 %v324
        %v326 = vpop.xlane.xlu0 %325
        %v327 = vsel %vm305, %v280, 0.0
        %328 = vadd.xlane.f32.xlu0 %v327
        %v329 = vpop.xlane.xlu0 %328
        %v330 = vsel %vm305, %v281, 0.0
        %331 = vadd.xlane.f32.xlu0 %v330
        %v332 = vpop.xlane.xlu0 %331
        %v333 = vsel %vm305, %v282, 0.0
        %334 = vadd.xlane.f32.xlu0 %v333
        %v335 = vpop.xlane.xlu0 %334
        %v336 = vsel %vm305, %v283, 0.0
        %337 = vadd.xlane.f32.xlu0 %v336
        %v338 = vpop.xlane.xlu0 %337
        %v339 = vsel %vm305, %v284, 0.0
        %340 = vadd.xlane.f32.xlu0 %v339
        %v341 = vpop.xlane.xlu0 %340
        %v342 = vsel %vm305, %v285, 0.0
        %343 = vadd.xlane.f32.xlu0 %v342
        %v344 = vpop.xlane.xlu0 %343
        %v345 = vsel %vm305, %v286, 0.0
        %346 = vadd.xlane.f32.xlu0 %v345
        %v347 = vpop.xlane.xlu0 %346
        %v348 = vsel %vm305, %v287, 0.0
        %349 = vadd.xlane.f32.xlu0 %v348
        %v350 = vpop.xlane.xlu0 %349
        %v351 = vsel %vm305, %v288, 0.0
        %352 = vadd.xlane.f32.xlu0 %v351
        %v353 = vpop.xlane.xlu0 %352
        %v354 = vsel %vm305, %v289, 0.0
        %355 = vadd.xlane.f32.xlu0 %v354
        %v356 = vpop.xlane.xlu0 %355
        %v357 = vsel %vm305, %v290, 0.0
        %358 = vadd.xlane.f32.xlu0 %v357
        %v359 = vpop.xlane.xlu0 %358
        %v360 = vsel %vm305, %v291, 0.0
        %361 = vadd.xlane.f32.xlu0 %v360
        %v362 = vpop.xlane.xlu0 %361
        %v363 = vsel %vm305, %v292, 0.0
        %364 = vadd.xlane.f32.xlu0 %v363
        %v365 = vpop.xlane.xlu0 %364
        %v366 = vsel %vm305, %v293, 0.0
        %367 = vadd.xlane.f32.xlu0 %v366
        %v368 = vpop.xlane.xlu0 %367
        %v369 = vsel %vm305, %v294, 0.0
        %370 = vadd.xlane.f32.xlu0 %v369
        %v371 = vpop.xlane.xlu0 %370
        %v372 = vsel %vm305, %v295, 0.0
        %373 = vadd.xlane.f32.xlu0 %v372
        %v374 = vpop.xlane.xlu0 %373
        %v375 = vsel %vm305, %v296, 0.0
        %376 = vadd.xlane.f32.xlu0 %v375
        %v377 = vpop.xlane.xlu0 %376
        %v378 = vsel %vm305, %v297, 0.0
        %379 = vadd.xlane.f32.xlu0 %v378
        %v380 = vpop.xlane.xlu0 %379
        %v381 = vsel %vm305, %v298, 0.0
        %382 = vadd.xlane.f32.xlu0 %v381
        %v383 = vpop.xlane.xlu0 %382
        %v384 = vsel %vm305, %v299, 0.0
        %385 = vadd.xlane.f32.xlu0 %v384
        %v386 = vpop.xlane.xlu0 %385
        %v387 = vsel %vm305, %v300, 0.0
        %388 = vadd.xlane.f32.xlu0 %v387
        %v389 = vpop.xlane.xlu0 %388
        %v390 = vsel %vm305, %v301, 0.0
        %391 = vadd.xlane.f32.xlu0 %v390
        %v392 = vpop.xlane.xlu0 %391
        %v393 = vsel %vm305, %v302, 0.0
        %394 = vadd.xlane.f32.xlu0 %v393
        %v395 = vpop.xlane.xlu0 %394
        %v396 = vsel %vm305, %v303, 0.0
        %397 = vadd.xlane.f32.xlu0 %v396
        %v398 = vpop.xlane.xlu0 %397
        %v399 = vsel %vm305, %v304, 0.0
        %400 = vadd.xlane.f32.xlu0 %v399
        %v401 = vpop.xlane.xlu0 %400
        %v402 = vrcp.pop 64.0
        %v403 = vmul.f32 %v308, %v402
        %v404 = vmul.f32 %v311, %v402
        %v405 = vmul.f32 %v314, %v402
        %v406 = vmul.f32 %v317, %v402
        %v407 = vmul.f32 %v320, %v402
        %v408 = vmul.f32 %v323, %v402
        %v409 = vmul.f32 %v326, %v402
        %v410 = vmul.f32 %v329, %v402
        %v411 = vmul.f32 %v332, %v402
        %v412 = vmul.f32 %v335, %v402
        %v413 = vmul.f32 %v338, %v402
        %v414 = vmul.f32 %v341, %v402
        %v415 = vmul.f32 %v344, %v402
        %v416 = vmul.f32 %v347, %v402
        %v417 = vmul.f32 %v350, %v402
        %v418 = vmul.f32 %v353, %v402
        %v419 = vmul.f32 %v356, %v402
        %v420 = vmul.f32 %v359, %v402
        %v421 = vmul.f32 %v362, %v402
        %v422 = vmul.f32 %v365, %v402
        %v423 = vmul.f32 %v368, %v402
        %v424 = vmul.f32 %v371, %v402
        %v425 = vmul.f32 %v374, %v402
        %v426 = vmul.f32 %v377, %v402
        %v427 = vmul.f32 %v380, %v402
        %v428 = vmul.f32 %v383, %v402
        %v429 = vmul.f32 %v386, %v402
        %v430 = vmul.f32 %v389, %v402
        %v431 = vmul.f32 %v392, %v402
        %v432 = vmul.f32 %v395, %v402
        %v433 = vmul.f32 %v398, %v402
        %v434 = vmul.f32 %v401, %v402
        %v435 = vsub.f32 %v273, %v403
        %v436 = vsub.f32 %v274, %v404
        %v437 = vsub.f32 %v275, %v405
        %v438 = vsub.f32 %v276, %v406
        %v439 = vsub.f32 %v277, %v407
        %v440 = vsub.f32 %v278, %v408
        %v441 = vsub.f32 %v279, %v409
        %v442 = vsub.f32 %v280, %v410
        %v443 = vsub.f32 %v281, %v411
        %v444 = vsub.f32 %v282, %v412
        %v445 = vsub.f32 %v283, %v413
        %v446 = vsub.f32 %v284, %v414
        %v447 = vsub.f32 %v285, %v415
        %v448 = vsub.f32 %v286, %v416
        %v449 = vsub.f32 %v287, %v417
        %v450 = vsub.f32 %v288, %v418
        %v451 = vsub.f32 %v289, %v419
        %v452 = vsub.f32 %v290, %v420
        %v453 = vsub.f32 %v291, %v421
        %v454 = vsub.f32 %v292, %v422
        %v455 = vsub.f32 %v293, %v423
        %v456 = vsub.f32 %v294, %v424
        %v457 = vsub.f32 %v295, %v425
        %v458 = vsub.f32 %v296, %v426
        %v459 = vsub.f32 %v297, %v427
        %v460 = vsub.f32 %v298, %v428
        %v461 = vsub.f32 %v299, %v429
        %v462 = vsub.f32 %v300, %v430
        %v463 = vsub.f32 %v301, %v431
        %v464 = vsub.f32 %v302, %v432
        %v465 = vsub.f32 %v303, %v433
        %v466 = vsub.f32 %v304, %v434
        %v467 = vmul.f32 %v435, %v435
        %v468 = vmul.f32 %v436, %v436
        %v469 = vmul.f32 %v437, %v437
        %v470 = vmul.f32 %v438, %v438
        %v471 = vmul.f32 %v439, %v439
        %v472 = vmul.f32 %v440, %v440
        %v473 = vmul.f32 %v441, %v441
        %v474 = vmul.f32 %v442, %v442
        %v475 = vmul.f32 %v443, %v443
        %v476 = vmul.f32 %v444, %v444
        %v477 = vmul.f32 %v445, %v445
        %v478 = vmul.f32 %v446, %v446
        %v479 = vmul.f32 %v447, %v447
        %v480 = vmul.f32 %v448, %v448
        %v481 = vmul.f32 %v449, %v449
        %v482 = vmul.f32 %v450, %v450
        %v483 = vmul.f32 %v451, %v451
        %v484 = vmul.f32 %v452, %v452
        %v485 = vmul.f32 %v453, %v453
        %v486 = vmul.f32 %v454, %v454
        %v487 = vmul.f32 %v455, %v455
        %v488 = vmul.f32 %v456, %v456
        %v489 = vmul.f32 %v457, %v457
        %v490 = vmul.f32 %v458, %v458
        %v491 = vmul.f32 %v459, %v459
        %v492 = vmul.f32 %v460, %v460
        %v493 = vmul.f32 %v461, %v461
        %v494 = vmul.f32 %v462, %v462
        %v495 = vmul.f32 %v463, %v463
        %v496 = vmul.f32 %v464, %v464
        %v497 = vmul.f32 %v465, %v465
        %v498 = vmul.f32 %v466, %v466
        %v499 = vsel %vm305, %v467, 0.0
        %500 = vadd.xlane.f32.xlu0 %v499
        %v501 = vpop.xlane.xlu0 %500
        %v502 = vsel %vm305, %v468, 0.0
        %503 = vadd.xlane.f32.xlu0 %v502
        %v504 = vpop.xlane.xlu0 %503
        %v505 = vsel %vm305, %v469, 0.0
        %506 = vadd.xlane.f32.xlu0 %v505
        %v507 = vpop.xlane.xlu0 %506
        %v508 = vsel %vm305, %v470, 0.0
        %509 = vadd.xlane.f32.xlu0 %v508
        %v510 = vpop.xlane.xlu0 %509
        %v511 = vsel %vm305, %v471, 0.0
        %512 = vadd.xlane.f32.xlu0 %v511
        %v513 = vpop.xlane.xlu0 %512
        %v514 = vsel %vm305, %v472, 0.0
        %515 = vadd.xlane.f32.xlu0 %v514
        %v516 = vpop.xlane.xlu0 %515
        %v517 = vsel %vm305, %v473, 0.0
        %518 = vadd.xlane.f32.xlu0 %v517
        %v519 = vpop.xlane.xlu0 %518
        %v520 = vsel %vm305, %v474, 0.0
        %521 = vadd.xlane.f32.xlu0 %v520
        %v522 = vpop.xlane.xlu0 %521
        %v523 = vsel %vm305, %v475, 0.0
        %524 = vadd.xlane.f32.xlu0 %v523
        %v525 = vpop.xlane.xlu0 %524
        %v526 = vsel %vm305, %v476, 0.0
        %527 = vadd.xlane.f32.xlu0 %v526
        %v528 = vpop.xlane.xlu0 %527
        %v529 = vsel %vm305, %v477, 0.0
        %530 = vadd.xlane.f32.xlu0 %v529
        %v531 = vpop.xlane.xlu0 %530
        %v532 = vsel %vm305, %v478, 0.0
        %533 = vadd.xlane.f32.xlu0 %v532
        %v534 = vpop.xlane.xlu0 %533
        %v535 = vsel %vm305, %v479, 0.0
        %536 = vadd.xlane.f32.xlu0 %v535
        %v537 = vpop.xlane.xlu0 %536
        %v538 = vsel %vm305, %v480, 0.0
        %539 = vadd.xlane.f32.xlu0 %v538
        %v540 = vpop.xlane.xlu0 %539
        %v541 = vsel %vm305, %v481, 0.0
        %542 = vadd.xlane.f32.xlu0 %v541
        %v543 = vpop.xlane.xlu0 %542
        %v544 = vsel %vm305, %v482, 0.0
        %545 = vadd.xlane.f32.xlu0 %v544
        %v546 = vpop.xlane.xlu0 %545
        %v547 = vsel %vm305, %v483, 0.0
        %548 = vadd.xlane.f32.xlu0 %v547
        %v549 = vpop.xlane.xlu0 %548
        %v550 = vsel %vm305, %v484, 0.0
        %551 = vadd.xlane.f32.xlu0 %v550
        %v552 = vpop.xlane.xlu0 %551
        %v553 = vsel %vm305, %v485, 0.0
        %554 = vadd.xlane.f32.xlu0 %v553
        %v555 = vpop.xlane.xlu0 %554
        %v556 = vsel %vm305, %v486, 0.0
        %557 = vadd.xlane.f32.xlu0 %v556
        %v558 = vpop.xlane.xlu0 %557
        %v559 = vsel %vm305, %v487, 0.0
        %560 = vadd.xlane.f32.xlu0 %v559
        %v561 = vpop.xlane.xlu0 %560
        %v562 = vsel %vm305, %v488, 0.0
        %563 = vadd.xlane.f32.xlu0 %v562
        %v564 = vpop.xlane.xlu0 %563
        %v565 = vsel %vm305, %v489, 0.0
        %566 = vadd.xlane.f32.xlu0 %v565
        %v567 = vpop.xlane.xlu0 %566
        %v568 = vsel %vm305, %v490, 0.0
        %569 = vadd.xlane.f32.xlu0 %v568
        %v570 = vpop.xlane.xlu0 %569
        %v571 = vsel %vm305, %v491, 0.0
        %572 = vadd.xlane.f32.xlu0 %v571
        %v573 = vpop.xlane.xlu0 %572
        %v574 = vsel %vm305, %v492, 0.0
        %575 = vadd.xlane.f32.xlu0 %v574
        %v576 = vpop.xlane.xlu0 %575
        %v577 = vsel %vm305, %v493, 0.0
        %578 = vadd.xlane.f32.xlu0 %v577
        %v579 = vpop.xlane.xlu0 %578
        %v580 = vsel %vm305, %v494, 0.0
        %581 = vadd.xlane.f32.xlu0 %v580
        %v582 = vpop.xlane.xlu0 %581
        %v583 = vsel %vm305, %v495, 0.0
        %584 = vadd.xlane.f32.xlu0 %v583
        %v585 = vpop.xlane.xlu0 %584
        %v586 = vsel %vm305, %v496, 0.0
        %587 = vadd.xlane.f32.xlu0 %v586
        %v588 = vpop.xlane.xlu0 %587
        %v589 = vsel %vm305, %v497, 0.0
        %590 = vadd.xlane.f32.xlu0 %v589
        %v591 = vpop.xlane.xlu0 %590
        %v592 = vsel %vm305, %v498, 0.0
        %593 = vadd.xlane.f32.xlu0 %v592
        %v594 = vpop.xlane.xlu0 %593
        %v595 = vmul.f32 %v501, %v402
        %v596 = vmul.f32 %v504, %v402
        %v597 = vmul.f32 %v507, %v402
        %v598 = vmul.f32 %v510, %v402
        %v599 = vmul.f32 %v513, %v402
        %v600 = vmul.f32 %v516, %v402
        %v601 = vmul.f32 %v519, %v402
        %v602 = vmul.f32 %v522, %v402
        %v603 = vmul.f32 %v525, %v402
        %v604 = vmul.f32 %v528, %v402
        %v605 = vmul.f32 %v531, %v402
        %v606 = vmul.f32 %v534, %v402
        %v607 = vmul.f32 %v537, %v402
        %v608 = vmul.f32 %v540, %v402
        %v609 = vmul.f32 %v543, %v402
        %v610 = vmul.f32 %v546, %v402
        %v611 = vmul.f32 %v549, %v402
        %v612 = vmul.f32 %v552, %v402
        %v613 = vmul.f32 %v555, %v402
        %v614 = vmul.f32 %v558, %v402
        %v615 = vmul.f32 %v561, %v402
        %v616 = vmul.f32 %v564, %v402
        %v617 = vmul.f32 %v567, %v402
        %v618 = vmul.f32 %v570, %v402
        %v619 = vmul.f32 %v573, %v402
        %v620 = vmul.f32 %v576, %v402
        %v621 = vmul.f32 %v579, %v402
        %v622 = vmul.f32 %v582, %v402
        %v623 = vmul.f32 %v585, %v402
        %v624 = vmul.f32 %v588, %v402
        %v625 = vmul.f32 %v591, %v402
        %v626 = vmul.f32 %v594, %v402
        %v627 = vadd.f32 %v595, 1e-06
        %v628 = vadd.f32 %v596, 1e-06
        %v629 = vadd.f32 %v597, 1e-06
        %v630 = vadd.f32 %v598, 1e-06
        %v631 = vadd.f32 %v599, 1e-06
        %v632 = vadd.f32 %v600, 1e-06
        %v633 = vadd.f32 %v601, 1e-06
        %v634 = vadd.f32 %v602, 1e-06
        %v635 = vadd.f32 %v603, 1e-06
        %v636 = vadd.f32 %v604, 1e-06
        %v637 = vadd.f32 %v605, 1e-06
        %v638 = vadd.f32 %v606, 1e-06
        %v639 = vadd.f32 %v607, 1e-06
        %v640 = vadd.f32 %v608, 1e-06
        %v641 = vadd.f32 %v609, 1e-06
        %v642 = vadd.f32 %v610, 1e-06
        %v643 = vadd.f32 %v611, 1e-06
        %v644 = vadd.f32 %v612, 1e-06
        %v645 = vadd.f32 %v613, 1e-06
        %v646 = vadd.f32 %v614, 1e-06
        %v647 = vadd.f32 %v615, 1e-06
        %v648 = vadd.f32 %v616, 1e-06
        %v649 = vadd.f32 %v617, 1e-06
        %v650 = vadd.f32 %v618, 1e-06
        %v651 = vadd.f32 %v619, 1e-06
        %v652 = vadd.f32 %v620, 1e-06
        %v653 = vadd.f32 %v621, 1e-06
        %v654 = vadd.f32 %v622, 1e-06
        %v655 = vadd.f32 %v623, 1e-06
        %v656 = vadd.f32 %v624, 1e-06
        %v657 = vadd.f32 %v625, 1e-06
        %v658 = vadd.f32 %v626, 1e-06
        %v659 = vrsqrt.pop %v627
        %v660 = vrsqrt.pop %v628
        %v661 = vrsqrt.pop %v629
        %v662 = vrsqrt.pop %v630
        %v663 = vrsqrt.pop %v631
        %v664 = vrsqrt.pop %v632
        %v665 = vrsqrt.pop %v633
        %v666 = vrsqrt.pop %v634
        %v667 = vrsqrt.pop %v635
        %v668 = vrsqrt.pop %v636
        %v669 = vrsqrt.pop %v637
        %v670 = vrsqrt.pop %v638
        %v671 = vrsqrt.pop %v639
        %v672 = vrsqrt.pop %v640
        %v673 = vrsqrt.pop %v641
        %v674 = vrsqrt.pop %v642
        %v675 = vrsqrt.pop %v643
        %v676 = vrsqrt.pop %v644
        %v677 = vrsqrt.pop %v645
        %v678 = vrsqrt.pop %v646
        %v679 = vrsqrt.pop %v647
        %v680 = vrsqrt.pop %v648
        %v681 = vrsqrt.pop %v649
        %v682 = vrsqrt.pop %v650
        %v683 = vrsqrt.pop %v651
        %v684 = vrsqrt.pop %v652
        %v685 = vrsqrt.pop %v653
        %v686 = vrsqrt.pop %v654
        %v687 = vrsqrt.pop %v655
        %v688 = vrsqrt.pop %v656
        %v689 = vrsqrt.pop %v657
        %v690 = vrsqrt.pop %v658
        %v691 = vmul.f32 %v435, %v659
        %v692 = vmul.f32 %v436, %v660
        %v693 = vmul.f32 %v437, %v661
        %v694 = vmul.f32 %v438, %v662
        %v695 = vmul.f32 %v439, %v663
        %v696 = vmul.f32 %v440, %v664
        %v697 = vmul.f32 %v441, %v665
        %v698 = vmul.f32 %v442, %v666
        %v699 = vmul.f32 %v443, %v667
        %v700 = vmul.f32 %v444, %v668
        %v701 = vmul.f32 %v445, %v669
        %v702 = vmul.f32 %v446, %v670
        %v703 = vmul.f32 %v447, %v671
        %v704 = vmul.f32 %v448, %v672
        %v705 = vmul.f32 %v449, %v673
        %v706 = vmul.f32 %v450, %v674
        %v707 = vmul.f32 %v451, %v675
        %v708 = vmul.f32 %v452, %v676
        %v709 = vmul.f32 %v453, %v677
        %v710 = vmul.f32 %v454, %v678
        %v711 = vmul.f32 %v455, %v679
        %v712 = vmul.f32 %v456, %v680
        %v713 = vmul.f32 %v457, %v681
        %v714 = vmul.f32 %v458, %v682
        %v715 = vmul.f32 %v459, %v683
        %v716 = vmul.f32 %v460, %v684
        %v717 = vmul.f32 %v461, %v685
        %v718 = vmul.f32 %v462, %v686
        %v719 = vmul.f32 %v463, %v687
        %v720 = vmul.f32 %v464, %v688
        %v721 = vmul.f32 %v465, %v689
        %v722 = vmul.f32 %v466, %v690
        %v723 = vld [vmem:[%s1] sm:$0x1]
        %v725 = vlaneseq
        %v726 = vshrl.u32 %v725, 7
        %v727 = vsub.s32 0, %v726
        %v728 = vrot.slane %v723, %v727
        %v730 = vmul.f32 %v691, %v728
        %v731 = vmul.f32 %v692, %v728
        %v732 = vmul.f32 %v693, %v728
        %v733 = vmul.f32 %v694, %v728
        %v734 = vmul.f32 %v695, %v728
        %v735 = vmul.f32 %v696, %v728
        %v736 = vmul.f32 %v697, %v728
        %v737 = vmul.f32 %v698, %v728
        %v738 = vmul.f32 %v699, %v728
        %v739 = vmul.f32 %v700, %v728
        %v740 = vmul.f32 %v701, %v728
        %v741 = vmul.f32 %v702, %v728
        %v742 = vmul.f32 %v703, %v728
        %v743 = vmul.f32 %v704, %v728
        %v744 = vmul.f32 %v705, %v728
        %v745 = vmul.f32 %v706, %v728
        %v746 = vmul.f32 %v707, %v728
        %v747 = vmul.f32 %v708, %v728
        %v748 = vmul.f32 %v709, %v728
        %v749 = vmul.f32 %v710, %v728
        %v750 = vmul.f32 %v711, %v728
        %v751 = vmul.f32 %v712, %v728
        %v752 = vmul.f32 %v713, %v728
        %v753 = vmul.f32 %v714, %v728
        %v754 = vmul.f32 %v715, %v728
        %v755 = vmul.f32 %v716, %v728
        %v756 = vmul.f32 %v717, %v728
        %v757 = vmul.f32 %v718, %v728
        %v758 = vmul.f32 %v719, %v728
        %v759 = vmul.f32 %v720, %v728
        %v760 = vmul.f32 %v721, %v728
        %v761 = vmul.f32 %v722, %v728
        %v762 = vld [vmem:[%s2] sm:$0x1]
        %v764 = vlaneseq
        %v765 = vshrl.u32 %v764, 7
        %v766 = vsub.s32 0, %v765
        %v767 = vrot.slane %v762, %v766
        %v769 = vadd.f32 %v730, %v767
        %v770 = vadd.f32 %v731, %v767
        %v771 = vadd.f32 %v732, %v767
        %v772 = vadd.f32 %v733, %v767
        %v773 = vadd.f32 %v734, %v767
        %v774 = vadd.f32 %v735, %v767
        %v775 = vadd.f32 %v736, %v767
        %v776 = vadd.f32 %v737, %v767
        %v777 = vadd.f32 %v738, %v767
        %v778 = vadd.f32 %v739, %v767
        %v779 = vadd.f32 %v740, %v767
        %v780 = vadd.f32 %v741, %v767
        %v781 = vadd.f32 %v742, %v767
        %v782 = vadd.f32 %v743, %v767
        %v783 = vadd.f32 %v744, %v767
        %v784 = vadd.f32 %v745, %v767
        %v785 = vadd.f32 %v746, %v767
        %v786 = vadd.f32 %v747, %v767
        %v787 = vadd.f32 %v748, %v767
        %v788 = vadd.f32 %v749, %v767
        %v789 = vadd.f32 %v750, %v767
        %v790 = vadd.f32 %v751, %v767
        %v791 = vadd.f32 %v752, %v767
        %v792 = vadd.f32 %v753, %v767
        %v793 = vadd.f32 %v754, %v767
        %v794 = vadd.f32 %v755, %v767
        %v795 = vadd.f32 %v756, %v767
        %v796 = vadd.f32 %v757, %v767
        %v797 = vadd.f32 %v758, %v767
        %v798 = vadd.f32 %v759, %v767
        %v799 = vadd.f32 %v760, %v767
        %v800 = vadd.f32 %v761, %v767
        %v801 = vld [vmem:[%s3] sm:$0xff]
        %v802 = vld [vmem:[%s3 + $0x8] sm:$0xff]
        %v803 = vld [vmem:[%s3 + $0x10] sm:$0xff]
        %v804 = vld [vmem:[%s3 + $0x18] sm:$0xff]
        %v805 = vld [vmem:[%s3 + $0x20] sm:$0xff]
        %v806 = vld [vmem:[%s3 + $0x28] sm:$0xff]
        %v807 = vld [vmem:[%s3 + $0x30] sm:$0xff]
        %v808 = vld [vmem:[%s3 + $0x38] sm:$0xff]
        %v809 = vld [vmem:[%s3 + $0x40] sm:$0xff]
        %v810 = vld [vmem:[%s3 + $0x48] sm:$0xff]
        %v811 = vld [vmem:[%s3 + $0x50] sm:$0xff]
        %v812 = vld [vmem:[%s3 + $0x58] sm:$0xff]
        %v813 = vld [vmem:[%s3 + $0x60] sm:$0xff]
        %v814 = vld [vmem:[%s3 + $0x68] sm:$0xff]
        %v815 = vld [vmem:[%s3 + $0x70] sm:$0xff]
        %v816 = vld [vmem:[%s3 + $0x78] sm:$0xff]
        %v817 = vld [vmem:[%s4] sm:$0x3]
        %v819 = vlaneseq
        %v820 = vshrl.u32 %v819, 7
        %v821 = vsub.s32 0, %v820
        %v822 = vrot.slane %v817, %v821
        %v823 = vlaneseq
        %v824 = vshrl.u32 %v823, 7
        %v825 = vsub.s32 1, %v824
        %v826 = vrot.slane %v817, %v825
        %v830 = vsel %vm305, %v769, 0
        %v833 = vsel %vm305, %v770, 0
        %v836 = vsel %vm305, %v771, 0
        %v839 = vsel %vm305, %v772, 0
        %v842 = vsel %vm305, %v773, 0
        %v845 = vsel %vm305, %v774, 0
        %v848 = vsel %vm305, %v775, 0
        %v851 = vsel %vm305, %v776, 0
        %v854 = vsel %vm305, %v777, 0
        %v857 = vsel %vm305, %v778, 0
        %v860 = vsel %vm305, %v779, 0
        %v863 = vsel %vm305, %v780, 0
        %v866 = vsel %vm305, %v781, 0
        %v869 = vsel %vm305, %v782, 0
        %v872 = vsel %vm305, %v783, 0
        %v875 = vsel %vm305, %v784, 0
        %v878 = vsel %vm305, %v785, 0
        %v881 = vsel %vm305, %v786, 0
        %v884 = vsel %vm305, %v787, 0
        %v887 = vsel %vm305, %v788, 0
        %v890 = vsel %vm305, %v789, 0
        %v893 = vsel %vm305, %v790, 0
        %v896 = vsel %vm305, %v791, 0
        %v899 = vsel %vm305, %v792, 0
        %v902 = vsel %vm305, %v793, 0
        %v905 = vsel %vm305, %v794, 0
        %v908 = vsel %vm305, %v795, 0
        %v911 = vsel %vm305, %v796, 0
        %v914 = vsel %vm305, %v797, 0
        %v917 = vsel %vm305, %v798, 0
        %v920 = vsel %vm305, %v799, 0
        %v923 = vsel %vm305, %v800, 0
        %925 = vmatprep.subr.mxu0 %v802
        %926 = vmatpush1.msra.mxu0 %v801
        %927 = vmatprep.subr.mxu0 %v804
        %928 = vmatpush1.msra.mxu0 %v803
        %929 = vmatprep.subr.mxu0 %v806
        %930 = vmatpush1.msra.mxu0 %v805
        %931 = vmatprep.subr.mxu0 %v808
        %932 = vmatpush1.msra.mxu0 %v807
        %933 = vmatprep.subr.mxu0 %v810
        %934 = vmatpush1.msra.mxu0 %v809
        %935 = vmatprep.subr.mxu0 %v812
        %936 = vmatpush1.msra.mxu0 %v811
        %937 = vmatprep.subr.mxu0 %v814
        %938 = vmatpush1.msra.mxu0 %v813
        %939 = vmatprep.subr.mxu0 %v816
        %940 = vmatpush1.msra.mxu0 %v815
        %941 = vmatprep.subr.mxu0 0.0
        %942 = vmatpush1.msra.mxu0 0.0
        %943 = vmatprep.subr.mxu0 0.0
        %944 = vmatpush1.msra.mxu0 0.0
        %945 = vmatprep.subr.mxu0 0.0
        %946 = vmatpush1.msra.mxu0 0.0
        %947 = vmatprep.subr.mxu0 0.0
        %948 = vmatpush1.msra.mxu0 0.0
        %949 = vmatprep.subr.mxu0 0.0
        %950 = vmatpush1.msra.mxu0 0.0
        %951 = vmatprep.subr.mxu0 0.0
        %952 = vmatpush1.msra.mxu0 0.0
        %953 = vmatprep.subr.mxu0 0.0
        %954 = vmatpush1.msra.mxu0 0.0
        %955 = vmatprep.subr.mxu0 0.0
        %956 = vmatpush1.msra.mxu0 0.0
        %957 = vmatprep.subr.mxu0 0.0
        %958 = vmatpush1.msra.mxu0 0.0
        %959 = vmatprep.subr.mxu0 0.0
        %960 = vmatpush1.msra.mxu0 0.0
        %961 = vmatprep.subr.mxu0 0.0
        %962 = vmatpush1.msra.mxu0 0.0
        %963 = vmatprep.subr.mxu0 0.0
        %964 = vmatpush1.msra.mxu0 0.0
        %965 = vmatprep.subr.mxu0 0.0
        %966 = vmatpush1.msra.mxu0 0.0
        %967 = vmatprep.subr.mxu0 0.0
        %968 = vmatpush1.msra.mxu0 0.0
        %969 = vmatprep.subr.mxu0 0.0
        %970 = vmatpush1.msra.mxu0 0.0
        %971 = vmatprep.subr.mxu0 0.0
        %972 = vmatpush1.msra.mxu0 0.0
        %973 = vmatprep.subr.mxu0 0.0
        %974 = vmatpush1.msra.mxu0 0.0
        %975 = vmatprep.subr.mxu0 0.0
        %976 = vmatpush1.msra.mxu0 0.0
        %977 = vmatprep.subr.mxu0 0.0
        %978 = vmatpush1.msra.mxu0 0.0
        %979 = vmatprep.subr.mxu0 0.0
        %980 = vmatpush1.msra.mxu0 0.0
        %981 = vmatprep.subr.mxu0 0.0
        %982 = vmatpush1.msra.mxu0 0.0
        %983 = vmatprep.subr.mxu0 0.0
        %984 = vmatpush1.msra.mxu0 0.0
        %985 = vmatprep.subr.mxu0 0.0
        %986 = vmatpush1.msra.mxu0 0.0
        %987 = vmatprep.subr.mxu0 0.0
        %988 = vmatpush1.msra.mxu0 0.0
        %989 = vmatprep.mubr.f32.mxu0 0.0
        %990 = vmatmul.mubr.f32.gmra.mrb[0].mxu0 %v830
        %v991 = vpop.f32.mrb[0].mxu0
        %v992 = vadd.f32 %v822, %v991
        %v993 = vpop.f32.mrb[0].mxu0
        %v994 = vadd.f32 %v826, %v993
        %995 = vmatprep.mubr.f32.mxu0 0.0
        %996 = vmatmul.mubr.f32.gmra.mrb[0].mxu0 %v833
        %v997 = vpop.f32.mrb[0].mxu0
        %v998 = vadd.f32 %v822, %v997
        %v999 = vpop.f32.mrb[0].mxu0
        %v1000 = vadd.f32 %v826, %v999
        %1001 = vmatprep.mubr.f32.mxu0 0.0
        %1002 = vmatmul.mubr.f32.gmra.mrb[0].mxu0 %v836
        %v1003 = vpop.f32.mrb[0].mxu0
        %v1004 = vadd.f32 %v822, %v1003
        %v1005 = vpop.f32.mrb[0].mxu0
        %v1006 = vadd.f32 %v826, %v1005
        %1007 = vmatprep.mubr.f32.mxu0 0.0
        %1008 = vmatmul.mubr.f32.gmra.mrb[0].mxu0 %v839
        %v1009 = vpop.f32.mrb[0].mxu0
        %v1010 = vadd.f32 %v822, %v1009
        %v1011 = vpop.f32.mrb[0].mxu0
        %v1012 = vadd.f32 %v826, %v1011
        %1013 = vmatprep.mubr.f32.mxu0 0.0
        %1014 = vmatmul.mubr.f32.gmra.mrb[0].mxu0 %v842
        %v1015 = vpop.f32.mrb[0].mxu0
        %v1016 = vadd.f32 %v822, %v1015
        %v1017 = vpop.f32.mrb[0].mxu0
        %v1018 = vadd.f32 %v826, %v1017
        %1019 = vmatprep.mubr.f32.mxu0 0.0
        %1020 = vmatmul.mubr.f32.gmra.mrb[0].mxu0 %v845
        %v1021 = vpop.f32.mrb[0].mxu0
        %v1022 = vadd.f32 %v822, %v1021
        %v1023 = vpop.f32.mrb[0].mxu0
        %v1024 = vadd.f32 %v826, %v1023
        %1025 = vmatprep.mubr.f32.mxu0 0.0
        %1026 = vmatmul.mubr.f32.gmra.mrb[0].mxu0 %v848
        %v1027 = vpop.f32.mrb[0].mxu0
        %v1028 = vadd.f32 %v822, %v1027
        %v1029 = vpop.f32.mrb[0].mxu0
        %v1030 = vadd.f32 %v826, %v1029
        %1031 = vmatprep.mubr.f32.mxu0 0.0
        %1032 = vmatmul.mubr.f32.gmra.mrb[0].mxu0 %v851
        %v1033 = vpop.f32.mrb[0].mxu0
        %v1034 = vadd.f32 %v822, %v1033
        %v1035 = vpop.f32.mrb[0].mxu0
        %v1036 = vadd.f32 %v826, %v1035
        %1037 = vmatprep.mubr.f32.mxu0 0.0
        %1038 = vmatmul.mubr.f32.gmra.mrb[0].mxu0 %v854
        %v1039 = vpop.f32.mrb[0].mxu0
        %v1040 = vadd.f32 %v822, %v1039
        %v1041 = vpop.f32.mrb[0].mxu0
        %v1042 = vadd.f32 %v826, %v1041
        %1043 = vmatprep.mubr.f32.mxu0 0.0
        %1044 = vmatmul.mubr.f32.gmra.mrb[0].mxu0 %v857
        %v1045 = vpop.f32.mrb[0].mxu0
        %v1046 = vadd.f32 %v822, %v1045
        %v1047 = vpop.f32.mrb[0].mxu0
        %v1048 = vadd.f32 %v826, %v1047
        %1049 = vmatprep.mubr.f32.mxu0 0.0
        %1050 = vmatmul.mubr.f32.gmra.mrb[0].mxu0 %v860
        %v1051 = vpop.f32.mrb[0].mxu0
        %v1052 = vadd.f32 %v822, %v1051
        %v1053 = vpop.f32.mrb[0].mxu0
        %v1054 = vadd.f32 %v826, %v1053
        %1055 = vmatprep.mubr.f32.mxu0 0.0
        %1056 = vmatmul.mubr.f32.gmra.mrb[0].mxu0 %v863
        %v1057 = vpop.f32.mrb[0].mxu0
        %v1058 = vadd.f32 %v822, %v1057
        %v1059 = vpop.f32.mrb[0].mxu0
        %v1060 = vadd.f32 %v826, %v1059
        %1061 = vmatprep.mubr.f32.mxu0 0.0
        %1062 = vmatmul.mubr.f32.gmra.mrb[0].mxu0 %v866
        %v1063 = vpop.f32.mrb[0].mxu0
        %v1064 = vadd.f32 %v822, %v1063
        %v1065 = vpop.f32.mrb[0].mxu0
        %v1066 = vadd.f32 %v826, %v1065
        %1067 = vmatprep.mubr.f32.mxu0 0.0
        %1068 = vmatmul.mubr.f32.gmra.mrb[0].mxu0 %v869
        %v1069 = vpop.f32.mrb[0].mxu0
        %v1070 = vadd.f32 %v822, %v1069
        %v1071 = vpop.f32.mrb[0].mxu0
        %v1072 = vadd.f32 %v826, %v1071
        %1073 = vmatprep.mubr.f32.mxu0 0.0
        %1074 = vmatmul.mubr.f32.gmra.mrb[0].mxu0 %v872
        %v1075 = vpop.f32.mrb[0].mxu0
        %v1076 = vadd.f32 %v822, %v1075
        %v1077 = vpop.f32.mrb[0].mxu0
        %v1078 = vadd.f32 %v826, %v1077
        %1079 = vmatprep.mubr.f32.mxu0 0.0
        %1080 = vmatmul.mubr.f32.gmra.mrb[0].mxu0 %v875
        %v1081 = vpop.f32.mrb[0].mxu0
        %v1082 = vadd.f32 %v822, %v1081
        %v1083 = vpop.f32.mrb[0].mxu0
        %v1084 = vadd.f32 %v826, %v1083
        %1085 = vmatprep.mubr.f32.mxu0 0.0
        %1086 = vmatmul.mubr.f32.gmra.mrb[0].mxu0 %v878
        %v1087 = vpop.f32.mrb[0].mxu0
        %v1088 = vadd.f32 %v822, %v1087
        %v1089 = vpop.f32.mrb[0].mxu0
        %v1090 = vadd.f32 %v826, %v1089
        %1091 = vmatprep.mubr.f32.mxu0 0.0
        %1092 = vmatmul.mubr.f32.gmra.mrb[0].mxu0 %v881
        %v1093 = vpop.f32.mrb[0].mxu0
        %v1094 = vadd.f32 %v822, %v1093
        %v1095 = vpop.f32.mrb[0].mxu0
        %v1096 = vadd.f32 %v826, %v1095
        %1097 = vmatprep.mubr.f32.mxu0 0.0
        %1098 = vmatmul.mubr.f32.gmra.mrb[0].mxu0 %v884
        %v1099 = vpop.f32.mrb[0].mxu0
        %v1100 = vadd.f32 %v822, %v1099
        %v1101 = vpop.f32.mrb[0].mxu0
        %v1102 = vadd.f32 %v826, %v1101
        %1103 = vmatprep.mubr.f32.mxu0 0.0
        %1104 = vmatmul.mubr.f32.gmra.mrb[0].mxu0 %v887
        %v1105 = vpop.f32.mrb[0].mxu0
        %v1106 = vadd.f32 %v822, %v1105
        %v1107 = vpop.f32.mrb[0].mxu0
        %v1108 = vadd.f32 %v826, %v1107
        %1109 = vmatprep.mubr.f32.mxu0 0.0
        %1110 = vmatmul.mubr.f32.gmra.mrb[0].mxu0 %v890
        %v1111 = vpop.f32.mrb[0].mxu0
        %v1112 = vadd.f32 %v822, %v1111
        %v1113 = vpop.f32.mrb[0].mxu0
        %v1114 = vadd.f32 %v826, %v1113
        %1115 = vmatprep.mubr.f32.mxu0 0.0
        %1116 = vmatmul.mubr.f32.gmra.mrb[0].mxu0 %v893
        %v1117 = vpop.f32.mrb[0].mxu0
        %v1118 = vadd.f32 %v822, %v1117
        %v1119 = vpop.f32.mrb[0].mxu0
        %v1120 = vadd.f32 %v826, %v1119
        %1121 = vmatprep.mubr.f32.mxu0 0.0
        %1122 = vmatmul.mubr.f32.gmra.mrb[0].mxu0 %v896
        %v1123 = vpop.f32.mrb[0].mxu0
        %v1124 = vadd.f32 %v822, %v1123
        %v1125 = vpop.f32.mrb[0].mxu0
        %v1126 = vadd.f32 %v826, %v1125
        %1127 = vmatprep.mubr.f32.mxu0 0.0
        %1128 = vmatmul.mubr.f32.gmra.mrb[0].mxu0 %v899
        %v1129 = vpop.f32.mrb[0].mxu0
        %v1130 = vadd.f32 %v822, %v1129
        %v1131 = vpop.f32.mrb[0].mxu0
        %v1132 = vadd.f32 %v826, %v1131
        %1133 = vmatprep.mubr.f32.mxu0 0.0
        %1134 = vmatmul.mubr.f32.gmra.mrb[0].mxu0 %v902
        %v1135 = vpop.f32.mrb[0].mxu0
        %v1136 = vadd.f32 %v822, %v1135
        %v1137 = vpop.f32.mrb[0].mxu0
        %v1138 = vadd.f32 %v826, %v1137
        %1139 = vmatprep.mubr.f32.mxu0 0.0
        %1140 = vmatmul.mubr.f32.gmra.mrb[0].mxu0 %v905
        %v1141 = vpop.f32.mrb[0].mxu0
        %v1142 = vadd.f32 %v822, %v1141
        %v1143 = vpop.f32.mrb[0].mxu0
        %v1144 = vadd.f32 %v826, %v1143
        %1145 = vmatprep.mubr.f32.mxu0 0.0
        %1146 = vmatmul.mubr.f32.gmra.mrb[0].mxu0 %v908
        %v1147 = vpop.f32.mrb[0].mxu0
        %v1148 = vadd.f32 %v822, %v1147
        %v1149 = vpop.f32.mrb[0].mxu0
        %v1150 = vadd.f32 %v826, %v1149
        %1151 = vmatprep.mubr.f32.mxu0 0.0
        %1152 = vmatmul.mubr.f32.gmra.mrb[0].mxu0 %v911
        %v1153 = vpop.f32.mrb[0].mxu0
        %v1154 = vadd.f32 %v822, %v1153
        %v1155 = vpop.f32.mrb[0].mxu0
        %v1156 = vadd.f32 %v826, %v1155
        %1157 = vmatprep.mubr.f32.mxu0 0.0
        %1158 = vmatmul.mubr.f32.gmra.mrb[0].mxu0 %v914
        %v1159 = vpop.f32.mrb[0].mxu0
        %v1160 = vadd.f32 %v822, %v1159
        %v1161 = vpop.f32.mrb[0].mxu0
        %v1162 = vadd.f32 %v826, %v1161
        %1163 = vmatprep.mubr.f32.mxu0 0.0
        %1164 = vmatmul.mubr.f32.gmra.mrb[0].mxu0 %v917
        %v1165 = vpop.f32.mrb[0].mxu0
        %v1166 = vadd.f32 %v822, %v1165
        %v1167 = vpop.f32.mrb[0].mxu0
        %v1168 = vadd.f32 %v826, %v1167
        %1169 = vmatprep.mubr.f32.mxu0 0.0
        %1170 = vmatmul.mubr.f32.gmra.mrb[0].mxu0 %v920
        %v1171 = vpop.f32.mrb[0].mxu0
        %v1172 = vadd.f32 %v822, %v1171
        %v1173 = vpop.f32.mrb[0].mxu0
        %v1174 = vadd.f32 %v826, %v1173
        %1175 = vmatprep.mubr.f32.mxu0 0.0
        %1176 = vmatmul.mubr.f32.gmra.mrb[0].mxu0 %v923
        %v1177 = vpop.f32.mrb[0].mxu0
        %v1178 = vadd.f32 %v822, %v1177
        %v1179 = vpop.f32.mrb[0].mxu0
        %v1180 = vadd.f32 %v826, %v1179
        %1181 = vdwg.mxu0
        %v1182 = vlaneseq
        %v1183 = vshrl.u32 %v1182, 7
        %v1184 = vadd.s32 %v1183, 8
        %vm1185 = vcmp.lt.s32.totalorder %v1183, 13
        %vm1186 = vcmp.lt.s32.totalorder %v1184, 13
        %v1187 = vsel %vm1185, 1, 0
        %v1188 = vsel %vm1186, 1, 0
        %vm1189 = vcmp.eq.s32.totalorder %v1187, 1
        %vm1190 = vcmp.eq.s32.totalorder %v1188, 1
        %v1191 = vsel %vm1189, %v992, -1e+30
        %v1192 = vsel %vm1189, %v994, -1e+30
        %v1193 = vsel %vm1190, %v998, -1e+30
        %v1194 = vsel %vm1190, %v1000, -1e+30
        %v1195 = vsel %vm1189, %v1004, -1e+30
        %v1196 = vsel %vm1189, %v1006, -1e+30
        %v1197 = vsel %vm1190, %v1010, -1e+30
        %v1198 = vsel %vm1190, %v1012, -1e+30
        %v1199 = vsel %vm1189, %v1016, -1e+30
        %v1200 = vsel %vm1189, %v1018, -1e+30
        %v1201 = vsel %vm1190, %v1022, -1e+30
        %v1202 = vsel %vm1190, %v1024, -1e+30
        %v1203 = vsel %vm1189, %v1028, -1e+30
        %v1204 = vsel %vm1189, %v1030, -1e+30
        %v1205 = vsel %vm1190, %v1034, -1e+30
        %v1206 = vsel %vm1190, %v1036, -1e+30
        %v1207 = vsel %vm1189, %v1040, -1e+30
        %v1208 = vsel %vm1189, %v1042, -1e+30
        %v1209 = vsel %vm1190, %v1046, -1e+30
        %v1210 = vsel %vm1190, %v1048, -1e+30
        %v1211 = vsel %vm1189, %v1052, -1e+30
        %v1212 = vsel %vm1189, %v1054, -1e+30
        %v1213 = vsel %vm1190, %v1058, -1e+30
        %v1214 = vsel %vm1190, %v1060, -1e+30
        %v1215 = vsel %vm1189, %v1064, -1e+30
        %v1216 = vsel %vm1189, %v1066, -1e+30
        %v1217 = vsel %vm1190, %v1070, -1e+30
        %v1218 = vsel %vm1190, %v1072, -1e+30
        %v1219 = vsel %vm1189, %v1076, -1e+30
        %v1220 = vsel %vm1189, %v1078, -1e+30
        %v1221 = vsel %vm1190, %v1082, -1e+30
        %v1222 = vsel %vm1190, %v1084, -1e+30
        %v1223 = vsel %vm1189, %v1088, -1e+30
        %v1224 = vsel %vm1189, %v1090, -1e+30
        %v1225 = vsel %vm1190, %v1094, -1e+30
        %v1226 = vsel %vm1190, %v1096, -1e+30
        %v1227 = vsel %vm1189, %v1100, -1e+30
        %v1228 = vsel %vm1189, %v1102, -1e+30
        %v1229 = vsel %vm1190, %v1106, -1e+30
        %v1230 = vsel %vm1190, %v1108, -1e+30
        %v1231 = vsel %vm1189, %v1112, -1e+30
        %v1232 = vsel %vm1189, %v1114, -1e+30
        %v1233 = vsel %vm1190, %v1118, -1e+30
        %v1234 = vsel %vm1190, %v1120, -1e+30
        %v1235 = vsel %vm1189, %v1124, -1e+30
        %v1236 = vsel %vm1189, %v1126, -1e+30
        %v1237 = vsel %vm1190, %v1130, -1e+30
        %v1238 = vsel %vm1190, %v1132, -1e+30
        %v1239 = vsel %vm1189, %v1136, -1e+30
        %v1240 = vsel %vm1189, %v1138, -1e+30
        %v1241 = vsel %vm1190, %v1142, -1e+30
        %v1242 = vsel %vm1190, %v1144, -1e+30
        %v1243 = vsel %vm1189, %v1148, -1e+30
        %v1244 = vsel %vm1189, %v1150, -1e+30
        %v1245 = vsel %vm1190, %v1154, -1e+30
        %v1246 = vsel %vm1190, %v1156, -1e+30
        %v1247 = vsel %vm1189, %v1160, -1e+30
        %v1248 = vsel %vm1189, %v1162, -1e+30
        %v1249 = vsel %vm1190, %v1166, -1e+30
        %v1250 = vsel %vm1190, %v1168, -1e+30
        %v1251 = vsel %vm1189, %v1172, -1e+30
        %v1252 = vsel %vm1189, %v1174, -1e+30
        %v1253 = vsel %vm1190, %v1178, -1e+30
        %v1254 = vsel %vm1190, %v1180, -1e+30
        %vm1255 = vcmask 1048064
        %v1256 = vsel %vm1255, %v1191, -inf
        %v1257 = vsel %vm1255, %v1193, -inf
        %v1258 = vmax.f32 %v1256, %v1257
        %v1259 = vrot.slane %v1258, 4
        %v1260 = vmax.f32 %v1258, %v1259
        %v1261 = vrot.slane %v1260, 2
        %v1262 = vmax.f32 %v1260, %v1261
        %v1263 = vrot.slane %v1262, 1
        %v1264 = vmax.f32 %v1262, %v1263
        %v1265 = vsel %vm305, %v1192, -inf
        %v1266 = vsel %vm305, %v1194, -inf
        %v1267 = vmax.f32 %v1265, %v1266
        %v1268 = vrot.slane %v1267, 4
        %v1269 = vmax.f32 %v1267, %v1268
        %v1270 = vrot.slane %v1269, 2
        %v1271 = vmax.f32 %v1269, %v1270
        %v1272 = vrot.slane %v1271, 1
        %v1273 = vmax.f32 %v1271, %v1272
        %v1274 = vsel %vm1255, %v1195, -inf
        %v1275 = vsel %vm1255, %v1197, -inf
        %v1276 = vmax.f32 %v1274, %v1275
        %v1277 = vrot.slane %v1276, 4
        %v1278 = vmax.f32 %v1276, %v1277
        %v1279 = vrot.slane %v1278, 2
        %v1280 = vmax.f32 %v1278, %v1279
        %v1281 = vrot.slane %v1280, 1
        %v1282 = vmax.f32 %v1280, %v1281
        %v1283 = vsel %vm305, %v1196, -inf
        %v1284 = vsel %vm305, %v1198, -inf
        %v1285 = vmax.f32 %v1283, %v1284
        %v1286 = vrot.slane %v1285, 4
        %v1287 = vmax.f32 %v1285, %v1286
        %v1288 = vrot.slane %v1287, 2
        %v1289 = vmax.f32 %v1287, %v1288
        %v1290 = vrot.slane %v1289, 1
        %v1291 = vmax.f32 %v1289, %v1290
        %v1292 = vsel %vm1255, %v1199, -inf
        %v1293 = vsel %vm1255, %v1201, -inf
        %v1294 = vmax.f32 %v1292, %v1293
        %v1295 = vrot.slane %v1294, 4
        %v1296 = vmax.f32 %v1294, %v1295
        %v1297 = vrot.slane %v1296, 2
        %v1298 = vmax.f32 %v1296, %v1297
        %v1299 = vrot.slane %v1298, 1
        %v1300 = vmax.f32 %v1298, %v1299
        %v1301 = vsel %vm305, %v1200, -inf
        %v1302 = vsel %vm305, %v1202, -inf
        %v1303 = vmax.f32 %v1301, %v1302
        %v1304 = vrot.slane %v1303, 4
        %v1305 = vmax.f32 %v1303, %v1304
        %v1306 = vrot.slane %v1305, 2
        %v1307 = vmax.f32 %v1305, %v1306
        %v1308 = vrot.slane %v1307, 1
        %v1309 = vmax.f32 %v1307, %v1308
        %v1310 = vsel %vm1255, %v1203, -inf
        %v1311 = vsel %vm1255, %v1205, -inf
        %v1312 = vmax.f32 %v1310, %v1311
        %v1313 = vrot.slane %v1312, 4
        %v1314 = vmax.f32 %v1312, %v1313
        %v1315 = vrot.slane %v1314, 2
        %v1316 = vmax.f32 %v1314, %v1315
        %v1317 = vrot.slane %v1316, 1
        %v1318 = vmax.f32 %v1316, %v1317
        %v1319 = vsel %vm305, %v1204, -inf
        %v1320 = vsel %vm305, %v1206, -inf
        %v1321 = vmax.f32 %v1319, %v1320
        %v1322 = vrot.slane %v1321, 4
        %v1323 = vmax.f32 %v1321, %v1322
        %v1324 = vrot.slane %v1323, 2
        %v1325 = vmax.f32 %v1323, %v1324
        %v1326 = vrot.slane %v1325, 1
        %v1327 = vmax.f32 %v1325, %v1326
        %v1328 = vsel %vm1255, %v1207, -inf
        %v1329 = vsel %vm1255, %v1209, -inf
        %v1330 = vmax.f32 %v1328, %v1329
        %v1331 = vrot.slane %v1330, 4
        %v1332 = vmax.f32 %v1330, %v1331
        %v1333 = vrot.slane %v1332, 2
        %v1334 = vmax.f32 %v1332, %v1333
        %v1335 = vrot.slane %v1334, 1
        %v1336 = vmax.f32 %v1334, %v1335
        %v1337 = vsel %vm305, %v1208, -inf
        %v1338 = vsel %vm305, %v1210, -inf
        %v1339 = vmax.f32 %v1337, %v1338
        %v1340 = vrot.slane %v1339, 4
        %v1341 = vmax.f32 %v1339, %v1340
        %v1342 = vrot.slane %v1341, 2
        %v1343 = vmax.f32 %v1341, %v1342
        %v1344 = vrot.slane %v1343, 1
        %v1345 = vmax.f32 %v1343, %v1344
        %v1346 = vsel %vm1255, %v1211, -inf
        %v1347 = vsel %vm1255, %v1213, -inf
        %v1348 = vmax.f32 %v1346, %v1347
        %v1349 = vrot.slane %v1348, 4
        %v1350 = vmax.f32 %v1348, %v1349
        %v1351 = vrot.slane %v1350, 2
        %v1352 = vmax.f32 %v1350, %v1351
        %v1353 = vrot.slane %v1352, 1
        %v1354 = vmax.f32 %v1352, %v1353
        %v1355 = vsel %vm305, %v1212, -inf
        %v1356 = vsel %vm305, %v1214, -inf
        %v1357 = vmax.f32 %v1355, %v1356
        %v1358 = vrot.slane %v1357, 4
        %v1359 = vmax.f32 %v1357, %v1358
        %v1360 = vrot.slane %v1359, 2
        %v1361 = vmax.f32 %v1359, %v1360
        %v1362 = vrot.slane %v1361, 1
        %v1363 = vmax.f32 %v1361, %v1362
        %v1364 = vsel %vm1255, %v1215, -inf
        %v1365 = vsel %vm1255, %v1217, -inf
        %v1366 = vmax.f32 %v1364, %v1365
        %v1367 = vrot.slane %v1366, 4
        %v1368 = vmax.f32 %v1366, %v1367
        %v1369 = vrot.slane %v1368, 2
        %v1370 = vmax.f32 %v1368, %v1369
        %v1371 = vrot.slane %v1370, 1
        %v1372 = vmax.f32 %v1370, %v1371
        %v1373 = vsel %vm305, %v1216, -inf
        %v1374 = vsel %vm305, %v1218, -inf
        %v1375 = vmax.f32 %v1373, %v1374
        %v1376 = vrot.slane %v1375, 4
        %v1377 = vmax.f32 %v1375, %v1376
        %v1378 = vrot.slane %v1377, 2
        %v1379 = vmax.f32 %v1377, %v1378
        %v1380 = vrot.slane %v1379, 1
        %v1381 = vmax.f32 %v1379, %v1380
        %v1382 = vsel %vm1255, %v1219, -inf
        %v1383 = vsel %vm1255, %v1221, -inf
        %v1384 = vmax.f32 %v1382, %v1383
        %v1385 = vrot.slane %v1384, 4
        %v1386 = vmax.f32 %v1384, %v1385
        %v1387 = vrot.slane %v1386, 2
        %v1388 = vmax.f32 %v1386, %v1387
        %v1389 = vrot.slane %v1388, 1
        %v1390 = vmax.f32 %v1388, %v1389
        %v1391 = vsel %vm305, %v1220, -inf
        %v1392 = vsel %vm305, %v1222, -inf
        %v1393 = vmax.f32 %v1391, %v1392
        %v1394 = vrot.slane %v1393, 4
        %v1395 = vmax.f32 %v1393, %v1394
        %v1396 = vrot.slane %v1395, 2
        %v1397 = vmax.f32 %v1395, %v1396
        %v1398 = vrot.slane %v1397, 1
        %v1399 = vmax.f32 %v1397, %v1398
        %v1400 = vsel %vm1255, %v1223, -inf
        %v1401 = vsel %vm1255, %v1225, -inf
        %v1402 = vmax.f32 %v1400, %v1401
        %v1403 = vrot.slane %v1402, 4
        %v1404 = vmax.f32 %v1402, %v1403
        %v1405 = vrot.slane %v1404, 2
        %v1406 = vmax.f32 %v1404, %v1405
        %v1407 = vrot.slane %v1406, 1
        %v1408 = vmax.f32 %v1406, %v1407
        %v1409 = vsel %vm305, %v1224, -inf
        %v1410 = vsel %vm305, %v1226, -inf
        %v1411 = vmax.f32 %v1409, %v1410
        %v1412 = vrot.slane %v1411, 4
        %v1413 = vmax.f32 %v1411, %v1412
        %v1414 = vrot.slane %v1413, 2
        %v1415 = vmax.f32 %v1413, %v1414
        %v1416 = vrot.slane %v1415, 1
        %v1417 = vmax.f32 %v1415, %v1416
        %v1418 = vsel %vm1255, %v1227, -inf
        %v1419 = vsel %vm1255, %v1229, -inf
        %v1420 = vmax.f32 %v1418, %v1419
        %v1421 = vrot.slane %v1420, 4
        %v1422 = vmax.f32 %v1420, %v1421
        %v1423 = vrot.slane %v1422, 2
        %v1424 = vmax.f32 %v1422, %v1423
        %v1425 = vrot.slane %v1424, 1
        %v1426 = vmax.f32 %v1424, %v1425
        %v1427 = vsel %vm305, %v1228, -inf
        %v1428 = vsel %vm305, %v1230, -inf
        %v1429 = vmax.f32 %v1427, %v1428
        %v1430 = vrot.slane %v1429, 4
        %v1431 = vmax.f32 %v1429, %v1430
        %v1432 = vrot.slane %v1431, 2
        %v1433 = vmax.f32 %v1431, %v1432
        %v1434 = vrot.slane %v1433, 1
        %v1435 = vmax.f32 %v1433, %v1434
        %v1436 = vsel %vm1255, %v1231, -inf
        %v1437 = vsel %vm1255, %v1233, -inf
        %v1438 = vmax.f32 %v1436, %v1437
        %v1439 = vrot.slane %v1438, 4
        %v1440 = vmax.f32 %v1438, %v1439
        %v1441 = vrot.slane %v1440, 2
        %v1442 = vmax.f32 %v1440, %v1441
        %v1443 = vrot.slane %v1442, 1
        %v1444 = vmax.f32 %v1442, %v1443
        %v1445 = vsel %vm305, %v1232, -inf
        %v1446 = vsel %vm305, %v1234, -inf
        %v1447 = vmax.f32 %v1445, %v1446
        %v1448 = vrot.slane %v1447, 4
        %v1449 = vmax.f32 %v1447, %v1448
        %v1450 = vrot.slane %v1449, 2
        %v1451 = vmax.f32 %v1449, %v1450
        %v1452 = vrot.slane %v1451, 1
        %v1453 = vmax.f32 %v1451, %v1452
        %v1454 = vsel %vm1255, %v1235, -inf
        %v1455 = vsel %vm1255, %v1237, -inf
        %v1456 = vmax.f32 %v1454, %v1455
        %v1457 = vrot.slane %v1456, 4
        %v1458 = vmax.f32 %v1456, %v1457
        %v1459 = vrot.slane %v1458, 2
        %v1460 = vmax.f32 %v1458, %v1459
        %v1461 = vrot.slane %v1460, 1
        %v1462 = vmax.f32 %v1460, %v1461
        %v1463 = vsel %vm305, %v1236, -inf
        %v1464 = vsel %vm305, %v1238, -inf
        %v1465 = vmax.f32 %v1463, %v1464
        %v1466 = vrot.slane %v1465, 4
        %v1467 = vmax.f32 %v1465, %v1466
        %v1468 = vrot.slane %v1467, 2
        %v1469 = vmax.f32 %v1467, %v1468
        %v1470 = vrot.slane %v1469, 1
        %v1471 = vmax.f32 %v1469, %v1470
        %v1472 = vsel %vm1255, %v1239, -inf
        %v1473 = vsel %vm1255, %v1241, -inf
        %v1474 = vmax.f32 %v1472, %v1473
        %v1475 = vrot.slane %v1474, 4
        %v1476 = vmax.f32 %v1474, %v1475
        %v1477 = vrot.slane %v1476, 2
        %v1478 = vmax.f32 %v1476, %v1477
        %v1479 = vrot.slane %v1478, 1
        %v1480 = vmax.f32 %v1478, %v1479
        %v1481 = vsel %vm305, %v1240, -inf
        %v1482 = vsel %vm305, %v1242, -inf
        %v1483 = vmax.f32 %v1481, %v1482
        %v1484 = vrot.slane %v1483, 4
        %v1485 = vmax.f32 %v1483, %v1484
        %v1486 = vrot.slane %v1485, 2
        %v1487 = vmax.f32 %v1485, %v1486
        %v1488 = vrot.slane %v1487, 1
        %v1489 = vmax.f32 %v1487, %v1488
        %v1490 = vsel %vm1255, %v1243, -inf
        %v1491 = vsel %vm1255, %v1245, -inf
        %v1492 = vmax.f32 %v1490, %v1491
        %v1493 = vrot.slane %v1492, 4
        %v1494 = vmax.f32 %v1492, %v1493
        %v1495 = vrot.slane %v1494, 2
        %v1496 = vmax.f32 %v1494, %v1495
        %v1497 = vrot.slane %v1496, 1
        %v1498 = vmax.f32 %v1496, %v1497
        %v1499 = vsel %vm305, %v1244, -inf
        %v1500 = vsel %vm305, %v1246, -inf
        %v1501 = vmax.f32 %v1499, %v1500
        %v1502 = vrot.slane %v1501, 4
        %v1503 = vmax.f32 %v1501, %v1502
        %v1504 = vrot.slane %v1503, 2
        %v1505 = vmax.f32 %v1503, %v1504
        %v1506 = vrot.slane %v1505, 1
        %v1507 = vmax.f32 %v1505, %v1506
        %v1508 = vsel %vm1255, %v1247, -inf
        %v1509 = vsel %vm1255, %v1249, -inf
        %v1510 = vmax.f32 %v1508, %v1509
        %v1511 = vrot.slane %v1510, 4
        %v1512 = vmax.f32 %v1510, %v1511
        %v1513 = vrot.slane %v1512, 2
        %v1514 = vmax.f32 %v1512, %v1513
        %v1515 = vrot.slane %v1514, 1
        %v1516 = vmax.f32 %v1514, %v1515
        %v1517 = vsel %vm305, %v1248, -inf
        %v1518 = vsel %vm305, %v1250, -inf
        %v1519 = vmax.f32 %v1517, %v1518
        %v1520 = vrot.slane %v1519, 4
        %v1521 = vmax.f32 %v1519, %v1520
        %v1522 = vrot.slane %v1521, 2
        %v1523 = vmax.f32 %v1521, %v1522
        %v1524 = vrot.slane %v1523, 1
        %v1525 = vmax.f32 %v1523, %v1524
        %v1526 = vsel %vm1255, %v1251, -inf
        %v1527 = vsel %vm1255, %v1253, -inf
        %v1528 = vmax.f32 %v1526, %v1527
        %v1529 = vrot.slane %v1528, 4
        %v1530 = vmax.f32 %v1528, %v1529
        %v1531 = vrot.slane %v1530, 2
        %v1532 = vmax.f32 %v1530, %v1531
        %v1533 = vrot.slane %v1532, 1
        %v1534 = vmax.f32 %v1532, %v1533
        %v1535 = vsel %vm305, %v1252, -inf
        %v1536 = vsel %vm305, %v1254, -inf
        %v1537 = vmax.f32 %v1535, %v1536
        %v1538 = vrot.slane %v1537, 4
        %v1539 = vmax.f32 %v1537, %v1538
        %v1540 = vrot.slane %v1539, 2
        %v1541 = vmax.f32 %v1539, %v1540
        %v1542 = vrot.slane %v1541, 1
        %v1543 = vmax.f32 %v1541, %v1542
        %v1544 = vsub.f32 %v1191, %v1264
        %v1545 = vsub.f32 %v1192, %v1273
        %v1546 = vsub.f32 %v1193, %v1264
        %v1547 = vsub.f32 %v1194, %v1273
        %v1548 = vsub.f32 %v1195, %v1282
        %v1549 = vsub.f32 %v1196, %v1291
        %v1550 = vsub.f32 %v1197, %v1282
        %v1551 = vsub.f32 %v1198, %v1291
        %v1552 = vsub.f32 %v1199, %v1300
        %v1553 = vsub.f32 %v1200, %v1309
        %v1554 = vsub.f32 %v1201, %v1300
        %v1555 = vsub.f32 %v1202, %v1309
        %v1556 = vsub.f32 %v1203, %v1318
        %v1557 = vsub.f32 %v1204, %v1327
        %v1558 = vsub.f32 %v1205, %v1318
        %v1559 = vsub.f32 %v1206, %v1327
        %v1560 = vsub.f32 %v1207, %v1336
        %v1561 = vsub.f32 %v1208, %v1345
        %v1562 = vsub.f32 %v1209, %v1336
        %v1563 = vsub.f32 %v1210, %v1345
        %v1564 = vsub.f32 %v1211, %v1354
        %v1565 = vsub.f32 %v1212, %v1363
        %v1566 = vsub.f32 %v1213, %v1354
        %v1567 = vsub.f32 %v1214, %v1363
        %v1568 = vsub.f32 %v1215, %v1372
        %v1569 = vsub.f32 %v1216, %v1381
        %v1570 = vsub.f32 %v1217, %v1372
        %v1571 = vsub.f32 %v1218, %v1381
        %v1572 = vsub.f32 %v1219, %v1390
        %v1573 = vsub.f32 %v1220, %v1399
        %v1574 = vsub.f32 %v1221, %v1390
        %v1575 = vsub.f32 %v1222, %v1399
        %v1576 = vsub.f32 %v1223, %v1408
        %v1577 = vsub.f32 %v1224, %v1417
        %v1578 = vsub.f32 %v1225, %v1408
        %v1579 = vsub.f32 %v1226, %v1417
        %v1580 = vsub.f32 %v1227, %v1426
        %v1581 = vsub.f32 %v1228, %v1435
        %v1582 = vsub.f32 %v1229, %v1426
        %v1583 = vsub.f32 %v1230, %v1435
        %v1584 = vsub.f32 %v1231, %v1444
        %v1585 = vsub.f32 %v1232, %v1453
        %v1586 = vsub.f32 %v1233, %v1444
        %v1587 = vsub.f32 %v1234, %v1453
        %v1588 = vsub.f32 %v1235, %v1462
        %v1589 = vsub.f32 %v1236, %v1471
        %v1590 = vsub.f32 %v1237, %v1462
        %v1591 = vsub.f32 %v1238, %v1471
        %v1592 = vsub.f32 %v1239, %v1480
        %v1593 = vsub.f32 %v1240, %v1489
        %v1594 = vsub.f32 %v1241, %v1480
        %v1595 = vsub.f32 %v1242, %v1489
        %v1596 = vsub.f32 %v1243, %v1498
        %v1597 = vsub.f32 %v1244, %v1507
        %v1598 = vsub.f32 %v1245, %v1498
        %v1599 = vsub.f32 %v1246, %v1507
        %v1600 = vsub.f32 %v1247, %v1516
        %v1601 = vsub.f32 %v1248, %v1525
        %v1602 = vsub.f32 %v1249, %v1516
        %v1603 = vsub.f32 %v1250, %v1525
        %v1604 = vsub.f32 %v1251, %v1534
        %v1605 = vsub.f32 %v1252, %v1543
        %v1606 = vsub.f32 %v1253, %v1534
        %v1607 = vsub.f32 %v1254, %v1543
        %v1608 = vmul.f32 %v1544, 1.442695
        %v1609 = vpow.pop %v1608
        %v1610 = vmul.f32 %v1545, 1.442695
        %v1611 = vpow.pop %v1610
        %v1612 = vmul.f32 %v1546, 1.442695
        %v1613 = vpow.pop %v1612
        %v1614 = vmul.f32 %v1547, 1.442695
        %v1615 = vpow.pop %v1614
        %v1616 = vmul.f32 %v1548, 1.442695
        %v1617 = vpow.pop %v1616
        %v1618 = vmul.f32 %v1549, 1.442695
        %v1619 = vpow.pop %v1618
        %v1620 = vmul.f32 %v1550, 1.442695
        %v1621 = vpow.pop %v1620
        %v1622 = vmul.f32 %v1551, 1.442695
        %v1623 = vpow.pop %v1622
        %v1624 = vmul.f32 %v1552, 1.442695
        %v1625 = vpow.pop %v1624
        %v1626 = vmul.f32 %v1553, 1.442695
        %v1627 = vpow.pop %v1626
        %v1628 = vmul.f32 %v1554, 1.442695
        %v1629 = vpow.pop %v1628
        %v1630 = vmul.f32 %v1555, 1.442695
        %v1631 = vpow.pop %v1630
        %v1632 = vmul.f32 %v1556, 1.442695
        %v1633 = vpow.pop %v1632
        %v1634 = vmul.f32 %v1557, 1.442695
        %v1635 = vpow.pop %v1634
        %v1636 = vmul.f32 %v1558, 1.442695
        %v1637 = vpow.pop %v1636
        %v1638 = vmul.f32 %v1559, 1.442695
        %v1639 = vpow.pop %v1638
        %v1640 = vmul.f32 %v1560, 1.442695
        %v1641 = vpow.pop %v1640
        %v1642 = vmul.f32 %v1561, 1.442695
        %v1643 = vpow.pop %v1642
        %v1644 = vmul.f32 %v1562, 1.442695
        %v1645 = vpow.pop %v1644
        %v1646 = vmul.f32 %v1563, 1.442695
        %v1647 = vpow.pop %v1646
        %v1648 = vmul.f32 %v1564, 1.442695
        %v1649 = vpow.pop %v1648
        %v1650 = vmul.f32 %v1565, 1.442695
        %v1651 = vpow.pop %v1650
        %v1652 = vmul.f32 %v1566, 1.442695
        %v1653 = vpow.pop %v1652
        %v1654 = vmul.f32 %v1567, 1.442695
        %v1655 = vpow.pop %v1654
        %v1656 = vmul.f32 %v1568, 1.442695
        %v1657 = vpow.pop %v1656
        %v1658 = vmul.f32 %v1569, 1.442695
        %v1659 = vpow.pop %v1658
        %v1660 = vmul.f32 %v1570, 1.442695
        %v1661 = vpow.pop %v1660
        %v1662 = vmul.f32 %v1571, 1.442695
        %v1663 = vpow.pop %v1662
        %v1664 = vmul.f32 %v1572, 1.442695
        %v1665 = vpow.pop %v1664
        %v1666 = vmul.f32 %v1573, 1.442695
        %v1667 = vpow.pop %v1666
        %v1668 = vmul.f32 %v1574, 1.442695
        %v1669 = vpow.pop %v1668
        %v1670 = vmul.f32 %v1575, 1.442695
        %v1671 = vpow.pop %v1670
        %v1672 = vmul.f32 %v1576, 1.442695
        %v1673 = vpow.pop %v1672
        %v1674 = vmul.f32 %v1577, 1.442695
        %v1675 = vpow.pop %v1674
        %v1676 = vmul.f32 %v1578, 1.442695
        %v1677 = vpow.pop %v1676
        %v1678 = vmul.f32 %v1579, 1.442695
        %v1679 = vpow.pop %v1678
        %v1680 = vmul.f32 %v1580, 1.442695
        %v1681 = vpow.pop %v1680
        %v1682 = vmul.f32 %v1581, 1.442695
        %v1683 = vpow.pop %v1682
        %v1684 = vmul.f32 %v1582, 1.442695
        %v1685 = vpow.pop %v1684
        %v1686 = vmul.f32 %v1583, 1.442695
        %v1687 = vpow.pop %v1686
        %v1688 = vmul.f32 %v1584, 1.442695
        %v1689 = vpow.pop %v1688
        %v1690 = vmul.f32 %v1585, 1.442695
        %v1691 = vpow.pop %v1690
        %v1692 = vmul.f32 %v1586, 1.442695
        %v1693 = vpow.pop %v1692
        %v1694 = vmul.f32 %v1587, 1.442695
        %v1695 = vpow.pop %v1694
        %v1696 = vmul.f32 %v1588, 1.442695
        %v1697 = vpow.pop %v1696
        %v1698 = vmul.f32 %v1589, 1.442695
        %v1699 = vpow.pop %v1698
        %v1700 = vmul.f32 %v1590, 1.442695
        %v1701 = vpow.pop %v1700
        %v1702 = vmul.f32 %v1591, 1.442695
        %v1703 = vpow.pop %v1702
        %v1704 = vmul.f32 %v1592, 1.442695
        %v1705 = vpow.pop %v1704
        %v1706 = vmul.f32 %v1593, 1.442695
        %v1707 = vpow.pop %v1706
        %v1708 = vmul.f32 %v1594, 1.442695
        %v1709 = vpow.pop %v1708
        %v1710 = vmul.f32 %v1595, 1.442695
        %v1711 = vpow.pop %v1710
        %v1712 = vmul.f32 %v1596, 1.442695
        %v1713 = vpow.pop %v1712
        %v1714 = vmul.f32 %v1597, 1.442695
        %v1715 = vpow.pop %v1714
        %v1716 = vmul.f32 %v1598, 1.442695
        %v1717 = vpow.pop %v1716
        %v1718 = vmul.f32 %v1599, 1.442695
        %v1719 = vpow.pop %v1718
        %v1720 = vmul.f32 %v1600, 1.442695
        %v1721 = vpow.pop %v1720
        %v1722 = vmul.f32 %v1601, 1.442695
        %v1723 = vpow.pop %v1722
        %v1724 = vmul.f32 %v1602, 1.442695
        %v1725 = vpow.pop %v1724
        %v1726 = vmul.f32 %v1603, 1.442695
        %v1727 = vpow.pop %v1726
        %v1728 = vmul.f32 %v1604, 1.442695
        %v1729 = vpow.pop %v1728
        %v1730 = vmul.f32 %v1605, 1.442695
        %v1731 = vpow.pop %v1730
        %v1732 = vmul.f32 %v1606, 1.442695
        %v1733 = vpow.pop %v1732
        %v1734 = vmul.f32 %v1607, 1.442695
        %v1735 = vpow.pop %v1734
        %v1736 = vsel %vm1255, %v1609, 0.0
        %v1737 = vsel %vm1255, %v1613, 0.0
        %v1738 = vadd.f32 %v1736, %v1737
        %v1739 = vrot.slane %v1738, 4
        %v1740 = vadd.f32 %v1738, %v1739
        %v1741 = vrot.slane %v1740, 2
        %v1742 = vadd.f32 %v1740, %v1741
        %v1743 = vrot.slane %v1742, 1
        %v1744 = vadd.f32 %v1742, %v1743
        %v1745 = vsel %vm305, %v1611, 0.0
        %v1746 = vsel %vm305, %v1615, 0.0
        %v1747 = vadd.f32 %v1745, %v1746
        %v1748 = vrot.slane %v1747, 4
        %v1749 = vadd.f32 %v1747, %v1748
        %v1750 = vrot.slane %v1749, 2
        %v1751 = vadd.f32 %v1749, %v1750
        %v1752 = vrot.slane %v1751, 1
        %v1753 = vadd.f32 %v1751, %v1752
        %v1754 = vsel %vm1255, %v1617, 0.0
        %v1755 = vsel %vm1255, %v1621, 0.0
        %v1756 = vadd.f32 %v1754, %v1755
        %v1757 = vrot.slane %v1756, 4
        %v1758 = vadd.f32 %v1756, %v1757
        %v1759 = vrot.slane %v1758, 2
        %v1760 = vadd.f32 %v1758, %v1759
        %v1761 = vrot.slane %v1760, 1
        %v1762 = vadd.f32 %v1760, %v1761
        %v1763 = vsel %vm305, %v1619, 0.0
        %v1764 = vsel %vm305, %v1623, 0.0
        %v1765 = vadd.f32 %v1763, %v1764
        %v1766 = vrot.slane %v1765, 4
        %v1767 = vadd.f32 %v1765, %v1766
        %v1768 = vrot.slane %v1767, 2
        %v1769 = vadd.f32 %v1767, %v1768
        %v1770 = vrot.slane %v1769, 1
        %v1771 = vadd.f32 %v1769, %v1770
        %v1772 = vsel %vm1255, %v1625, 0.0
        %v1773 = vsel %vm1255, %v1629, 0.0
        %v1774 = vadd.f32 %v1772, %v1773
        %v1775 = vrot.slane %v1774, 4
        %v1776 = vadd.f32 %v1774, %v1775
        %v1777 = vrot.slane %v1776, 2
        %v1778 = vadd.f32 %v1776, %v1777
        %v1779 = vrot.slane %v1778, 1
        %v1780 = vadd.f32 %v1778, %v1779
        %v1781 = vsel %vm305, %v1627, 0.0
        %v1782 = vsel %vm305, %v1631, 0.0
        %v1783 = vadd.f32 %v1781, %v1782
        %v1784 = vrot.slane %v1783, 4
        %v1785 = vadd.f32 %v1783, %v1784
        %v1786 = vrot.slane %v1785, 2
        %v1787 = vadd.f32 %v1785, %v1786
        %v1788 = vrot.slane %v1787, 1
        %v1789 = vadd.f32 %v1787, %v1788
        %v1790 = vsel %vm1255, %v1633, 0.0
        %v1791 = vsel %vm1255, %v1637, 0.0
        %v1792 = vadd.f32 %v1790, %v1791
        %v1793 = vrot.slane %v1792, 4
        %v1794 = vadd.f32 %v1792, %v1793
        %v1795 = vrot.slane %v1794, 2
        %v1796 = vadd.f32 %v1794, %v1795
        %v1797 = vrot.slane %v1796, 1
        %v1798 = vadd.f32 %v1796, %v1797
        %v1799 = vsel %vm305, %v1635, 0.0
        %v1800 = vsel %vm305, %v1639, 0.0
        %v1801 = vadd.f32 %v1799, %v1800
        %v1802 = vrot.slane %v1801, 4
        %v1803 = vadd.f32 %v1801, %v1802
        %v1804 = vrot.slane %v1803, 2
        %v1805 = vadd.f32 %v1803, %v1804
        %v1806 = vrot.slane %v1805, 1
        %v1807 = vadd.f32 %v1805, %v1806
        %v1808 = vsel %vm1255, %v1641, 0.0
        %v1809 = vsel %vm1255, %v1645, 0.0
        %v1810 = vadd.f32 %v1808, %v1809
        %v1811 = vrot.slane %v1810, 4
        %v1812 = vadd.f32 %v1810, %v1811
        %v1813 = vrot.slane %v1812, 2
        %v1814 = vadd.f32 %v1812, %v1813
        %v1815 = vrot.slane %v1814, 1
        %v1816 = vadd.f32 %v1814, %v1815
        %v1817 = vsel %vm305, %v1643, 0.0
        %v1818 = vsel %vm305, %v1647, 0.0
        %v1819 = vadd.f32 %v1817, %v1818
        %v1820 = vrot.slane %v1819, 4
        %v1821 = vadd.f32 %v1819, %v1820
        %v1822 = vrot.slane %v1821, 2
        %v1823 = vadd.f32 %v1821, %v1822
        %v1824 = vrot.slane %v1823, 1
        %v1825 = vadd.f32 %v1823, %v1824
        %v1826 = vsel %vm1255, %v1649, 0.0
        %v1827 = vsel %vm1255, %v1653, 0.0
        %v1828 = vadd.f32 %v1826, %v1827
        %v1829 = vrot.slane %v1828, 4
        %v1830 = vadd.f32 %v1828, %v1829
        %v1831 = vrot.slane %v1830, 2
        %v1832 = vadd.f32 %v1830, %v1831
        %v1833 = vrot.slane %v1832, 1
        %v1834 = vadd.f32 %v1832, %v1833
        %v1835 = vsel %vm305, %v1651, 0.0
        %v1836 = vsel %vm305, %v1655, 0.0
        %v1837 = vadd.f32 %v1835, %v1836
        %v1838 = vrot.slane %v1837, 4
        %v1839 = vadd.f32 %v1837, %v1838
        %v1840 = vrot.slane %v1839, 2
        %v1841 = vadd.f32 %v1839, %v1840
        %v1842 = vrot.slane %v1841, 1
        %v1843 = vadd.f32 %v1841, %v1842
        %v1844 = vsel %vm1255, %v1657, 0.0
        %v1845 = vsel %vm1255, %v1661, 0.0
        %v1846 = vadd.f32 %v1844, %v1845
        %v1847 = vrot.slane %v1846, 4
        %v1848 = vadd.f32 %v1846, %v1847
        %v1849 = vrot.slane %v1848, 2
        %v1850 = vadd.f32 %v1848, %v1849
        %v1851 = vrot.slane %v1850, 1
        %v1852 = vadd.f32 %v1850, %v1851
        %v1853 = vsel %vm305, %v1659, 0.0
        %v1854 = vsel %vm305, %v1663, 0.0
        %v1855 = vadd.f32 %v1853, %v1854
        %v1856 = vrot.slane %v1855, 4
        %v1857 = vadd.f32 %v1855, %v1856
        %v1858 = vrot.slane %v1857, 2
        %v1859 = vadd.f32 %v1857, %v1858
        %v1860 = vrot.slane %v1859, 1
        %v1861 = vadd.f32 %v1859, %v1860
        %v1862 = vsel %vm1255, %v1665, 0.0
        %v1863 = vsel %vm1255, %v1669, 0.0
        %v1864 = vadd.f32 %v1862, %v1863
        %v1865 = vrot.slane %v1864, 4
        %v1866 = vadd.f32 %v1864, %v1865
        %v1867 = vrot.slane %v1866, 2
        %v1868 = vadd.f32 %v1866, %v1867
        %v1869 = vrot.slane %v1868, 1
        %v1870 = vadd.f32 %v1868, %v1869
        %v1871 = vsel %vm305, %v1667, 0.0
        %v1872 = vsel %vm305, %v1671, 0.0
        %v1873 = vadd.f32 %v1871, %v1872
        %v1874 = vrot.slane %v1873, 4
        %v1875 = vadd.f32 %v1873, %v1874
        %v1876 = vrot.slane %v1875, 2
        %v1877 = vadd.f32 %v1875, %v1876
        %v1878 = vrot.slane %v1877, 1
        %v1879 = vadd.f32 %v1877, %v1878
        %v1880 = vsel %vm1255, %v1673, 0.0
        %v1881 = vsel %vm1255, %v1677, 0.0
        %v1882 = vadd.f32 %v1880, %v1881
        %v1883 = vrot.slane %v1882, 4
        %v1884 = vadd.f32 %v1882, %v1883
        %v1885 = vrot.slane %v1884, 2
        %v1886 = vadd.f32 %v1884, %v1885
        %v1887 = vrot.slane %v1886, 1
        %v1888 = vadd.f32 %v1886, %v1887
        %v1889 = vsel %vm305, %v1675, 0.0
        %v1890 = vsel %vm305, %v1679, 0.0
        %v1891 = vadd.f32 %v1889, %v1890
        %v1892 = vrot.slane %v1891, 4
        %v1893 = vadd.f32 %v1891, %v1892
        %v1894 = vrot.slane %v1893, 2
        %v1895 = vadd.f32 %v1893, %v1894
        %v1896 = vrot.slane %v1895, 1
        %v1897 = vadd.f32 %v1895, %v1896
        %v1898 = vsel %vm1255, %v1681, 0.0
        %v1899 = vsel %vm1255, %v1685, 0.0
        %v1900 = vadd.f32 %v1898, %v1899
        %v1901 = vrot.slane %v1900, 4
        %v1902 = vadd.f32 %v1900, %v1901
        %v1903 = vrot.slane %v1902, 2
        %v1904 = vadd.f32 %v1902, %v1903
        %v1905 = vrot.slane %v1904, 1
        %v1906 = vadd.f32 %v1904, %v1905
        %v1907 = vsel %vm305, %v1683, 0.0
        %v1908 = vsel %vm305, %v1687, 0.0
        %v1909 = vadd.f32 %v1907, %v1908
        %v1910 = vrot.slane %v1909, 4
        %v1911 = vadd.f32 %v1909, %v1910
        %v1912 = vrot.slane %v1911, 2
        %v1913 = vadd.f32 %v1911, %v1912
        %v1914 = vrot.slane %v1913, 1
        %v1915 = vadd.f32 %v1913, %v1914
        %v1916 = vsel %vm1255, %v1689, 0.0
        %v1917 = vsel %vm1255, %v1693, 0.0
        %v1918 = vadd.f32 %v1916, %v1917
        %v1919 = vrot.slane %v1918, 4
        %v1920 = vadd.f32 %v1918, %v1919
        %v1921 = vrot.slane %v1920, 2
        %v1922 = vadd.f32 %v1920, %v1921
        %v1923 = vrot.slane %v1922, 1
        %v1924 = vadd.f32 %v1922, %v1923
        %v1925 = vsel %vm305, %v1691, 0.0
        %v1926 = vsel %vm305, %v1695, 0.0
        %v1927 = vadd.f32 %v1925, %v1926
        %v1928 = vrot.slane %v1927, 4
        %v1929 = vadd.f32 %v1927, %v1928
        %v1930 = vrot.slane %v1929, 2
        %v1931 = vadd.f32 %v1929, %v1930
        %v1932 = vrot.slane %v1931, 1
        %v1933 = vadd.f32 %v1931, %v1932
        %v1934 = vsel %vm1255, %v1697, 0.0
        %v1935 = vsel %vm1255, %v1701, 0.0
        %v1936 = vadd.f32 %v1934, %v1935
        %v1937 = vrot.slane %v1936, 4
        %v1938 = vadd.f32 %v1936, %v1937
        %v1939 = vrot.slane %v1938, 2
        %v1940 = vadd.f32 %v1938, %v1939
        %v1941 = vrot.slane %v1940, 1
        %v1942 = vadd.f32 %v1940, %v1941
        %v1943 = vsel %vm305, %v1699, 0.0
        %v1944 = vsel %vm305, %v1703, 0.0
        %v1945 = vadd.f32 %v1943, %v1944
        %v1946 = vrot.slane %v1945, 4
        %v1947 = vadd.f32 %v1945, %v1946
        %v1948 = vrot.slane %v1947, 2
        %v1949 = vadd.f32 %v1947, %v1948
        %v1950 = vrot.slane %v1949, 1
        %v1951 = vadd.f32 %v1949, %v1950
        %v1952 = vsel %vm1255, %v1705, 0.0
        %v1953 = vsel %vm1255, %v1709, 0.0
        %v1954 = vadd.f32 %v1952, %v1953
        %v1955 = vrot.slane %v1954, 4
        %v1956 = vadd.f32 %v1954, %v1955
        %v1957 = vrot.slane %v1956, 2
        %v1958 = vadd.f32 %v1956, %v1957
        %v1959 = vrot.slane %v1958, 1
        %v1960 = vadd.f32 %v1958, %v1959
        %v1961 = vsel %vm305, %v1707, 0.0
        %v1962 = vsel %vm305, %v1711, 0.0
        %v1963 = vadd.f32 %v1961, %v1962
        %v1964 = vrot.slane %v1963, 4
        %v1965 = vadd.f32 %v1963, %v1964
        %v1966 = vrot.slane %v1965, 2
        %v1967 = vadd.f32 %v1965, %v1966
        %v1968 = vrot.slane %v1967, 1
        %v1969 = vadd.f32 %v1967, %v1968
        %v1970 = vsel %vm1255, %v1713, 0.0
        %v1971 = vsel %vm1255, %v1717, 0.0
        %v1972 = vadd.f32 %v1970, %v1971
        %v1973 = vrot.slane %v1972, 4
        %v1974 = vadd.f32 %v1972, %v1973
        %v1975 = vrot.slane %v1974, 2
        %v1976 = vadd.f32 %v1974, %v1975
        %v1977 = vrot.slane %v1976, 1
        %v1978 = vadd.f32 %v1976, %v1977
        %v1979 = vsel %vm305, %v1715, 0.0
        %v1980 = vsel %vm305, %v1719, 0.0
        %v1981 = vadd.f32 %v1979, %v1980
        %v1982 = vrot.slane %v1981, 4
        %v1983 = vadd.f32 %v1981, %v1982
        %v1984 = vrot.slane %v1983, 2
        %v1985 = vadd.f32 %v1983, %v1984
        %v1986 = vrot.slane %v1985, 1
        %v1987 = vadd.f32 %v1985, %v1986
        %v1988 = vsel %vm1255, %v1721, 0.0
        %v1989 = vsel %vm1255, %v1725, 0.0
        %v1990 = vadd.f32 %v1988, %v1989
        %v1991 = vrot.slane %v1990, 4
        %v1992 = vadd.f32 %v1990, %v1991
        %v1993 = vrot.slane %v1992, 2
        %v1994 = vadd.f32 %v1992, %v1993
        %v1995 = vrot.slane %v1994, 1
        %v1996 = vadd.f32 %v1994, %v1995
        %v1997 = vsel %vm305, %v1723, 0.0
        %v1998 = vsel %vm305, %v1727, 0.0
        %v1999 = vadd.f32 %v1997, %v1998
        %v2000 = vrot.slane %v1999, 4
        %v2001 = vadd.f32 %v1999, %v2000
        %v2002 = vrot.slane %v2001, 2
        %v2003 = vadd.f32 %v2001, %v2002
        %v2004 = vrot.slane %v2003, 1
        %v2005 = vadd.f32 %v2003, %v2004
        %v2006 = vsel %vm1255, %v1729, 0.0
        %v2007 = vsel %vm1255, %v1733, 0.0
        %v2008 = vadd.f32 %v2006, %v2007
        %v2009 = vrot.slane %v2008, 4
        %v2010 = vadd.f32 %v2008, %v2009
        %v2011 = vrot.slane %v2010, 2
        %v2012 = vadd.f32 %v2010, %v2011
        %v2013 = vrot.slane %v2012, 1
        %v2014 = vadd.f32 %v2012, %v2013
        %v2015 = vsel %vm305, %v1731, 0.0
        %v2016 = vsel %vm305, %v1735, 0.0
        %v2017 = vadd.f32 %v2015, %v2016
        %v2018 = vrot.slane %v2017, 4
        %v2019 = vadd.f32 %v2017, %v2018
        %v2020 = vrot.slane %v2019, 2
        %v2021 = vadd.f32 %v2019, %v2020
        %v2022 = vrot.slane %v2021, 1
        %v2023 = vadd.f32 %v2021, %v2022
        %v2024 = vrcp.pop %v1744
        %v2025 = vrcp.pop %v1753
        %v2026 = vrcp.pop %v1762
        %v2027 = vrcp.pop %v1771
        %v2028 = vrcp.pop %v1780
        %v2029 = vrcp.pop %v1789
        %v2030 = vrcp.pop %v1798
        %v2031 = vrcp.pop %v1807
        %v2032 = vrcp.pop %v1816
        %v2033 = vrcp.pop %v1825
        %v2034 = vrcp.pop %v1834
        %v2035 = vrcp.pop %v1843
        %v2036 = vrcp.pop %v1852
        %v2037 = vrcp.pop %v1861
        %v2038 = vrcp.pop %v1870
        %v2039 = vrcp.pop %v1879
        %v2040 = vrcp.pop %v1888
        %v2041 = vrcp.pop %v1897
        %v2042 = vrcp.pop %v1906
        %v2043 = vrcp.pop %v1915
        %v2044 = vrcp.pop %v1924
        %v2045 = vrcp.pop %v1933
        %v2046 = vrcp.pop %v1942
        %v2047 = vrcp.pop %v1951
        %v2048 = vrcp.pop %v1960
        %v2049 = vrcp.pop %v1969
        %v2050 = vrcp.pop %v1978
        %v2051 = vrcp.pop %v1987
        %v2052 = vrcp.pop %v1996
        %v2053 = vrcp.pop %v2005
        %v2054 = vrcp.pop %v2014
        %v2055 = vrcp.pop %v2023
        %v2056 = vmul.f32 %v1609, %v2024
        %v2057 = vmul.f32 %v1611, %v2025
        %v2058 = vmul.f32 %v1613, %v2024
        %v2059 = vmul.f32 %v1615, %v2025
        %v2060 = vmul.f32 %v1617, %v2026
        %v2061 = vmul.f32 %v1619, %v2027
        %v2062 = vmul.f32 %v1621, %v2026
        %v2063 = vmul.f32 %v1623, %v2027
        %v2064 = vmul.f32 %v1625, %v2028
        %v2065 = vmul.f32 %v1627, %v2029
        %v2066 = vmul.f32 %v1629, %v2028
        %v2067 = vmul.f32 %v1631, %v2029
        %v2068 = vmul.f32 %v1633, %v2030
        %v2069 = vmul.f32 %v1635, %v2031
        %v2070 = vmul.f32 %v1637, %v2030
        %v2071 = vmul.f32 %v1639, %v2031
        %v2072 = vmul.f32 %v1641, %v2032
        %v2073 = vmul.f32 %v1643, %v2033
        %v2074 = vmul.f32 %v1645, %v2032
        %v2075 = vmul.f32 %v1647, %v2033
        %v2076 = vmul.f32 %v1649, %v2034
        %v2077 = vmul.f32 %v1651, %v2035
        %v2078 = vmul.f32 %v1653, %v2034
        %v2079 = vmul.f32 %v1655, %v2035
        %v2080 = vmul.f32 %v1657, %v2036
        %v2081 = vmul.f32 %v1659, %v2037
        %v2082 = vmul.f32 %v1661, %v2036
        %v2083 = vmul.f32 %v1663, %v2037
        %v2084 = vmul.f32 %v1665, %v2038
        %v2085 = vmul.f32 %v1667, %v2039
        %v2086 = vmul.f32 %v1669, %v2038
        %v2087 = vmul.f32 %v1671, %v2039
        %v2088 = vmul.f32 %v1673, %v2040
        %v2089 = vmul.f32 %v1675, %v2041
        %v2090 = vmul.f32 %v1677, %v2040
        %v2091 = vmul.f32 %v1679, %v2041
        %v2092 = vmul.f32 %v1681, %v2042
        %v2093 = vmul.f32 %v1683, %v2043
        %v2094 = vmul.f32 %v1685, %v2042
        %v2095 = vmul.f32 %v1687, %v2043
        %v2096 = vmul.f32 %v1689, %v2044
        %v2097 = vmul.f32 %v1691, %v2045
        %v2098 = vmul.f32 %v1693, %v2044
        %v2099 = vmul.f32 %v1695, %v2045
        %v2100 = vmul.f32 %v1697, %v2046
        %v2101 = vmul.f32 %v1699, %v2047
        %v2102 = vmul.f32 %v1701, %v2046
        %v2103 = vmul.f32 %v1703, %v2047
        %v2104 = vmul.f32 %v1705, %v2048
        %v2105 = vmul.f32 %v1707, %v2049
        %v2106 = vmul.f32 %v1709, %v2048
        %v2107 = vmul.f32 %v1711, %v2049
        %v2108 = vmul.f32 %v1713, %v2050
        %v2109 = vmul.f32 %v1715, %v2051
        %v2110 = vmul.f32 %v1717, %v2050
        %v2111 = vmul.f32 %v1719, %v2051
        %v2112 = vmul.f32 %v1721, %v2052
        %v2113 = vmul.f32 %v1723, %v2053
        %v2114 = vmul.f32 %v1725, %v2052
        %v2115 = vmul.f32 %v1727, %v2053
        %v2116 = vmul.f32 %v1729, %v2054
        %v2117 = vmul.f32 %v1731, %v2055
        %v2118 = vmul.f32 %v1733, %v2054
        %v2119 = vmul.f32 %v1735, %v2055
        %v2120 = vld [vmem:[%s5] sm:$0xff]
        %v2121 = vld [vmem:[%s5 + $0x8] sm:$0xff]
        %v2122 = vld [vmem:[%s5 + $0x10] sm:$0xff]
        %v2123 = vld [vmem:[%s5 + $0x18] sm:$0xff]
        %v2124 = vld [vmem:[%s5 + $0x20] sm:$0xff]
        %v2125 = vld [vmem:[%s5 + $0x28] sm:$0xff]
        %v2126 = vld [vmem:[%s5 + $0x30] sm:$0xff]
        %v2127 = vld [vmem:[%s5 + $0x38] sm:$0xff]
        %v2128 = vld [vmem:[%s5 + $0x40] sm:$0xff]
        %v2129 = vld [vmem:[%s5 + $0x48] sm:$0xff]
        %v2130 = vld [vmem:[%s5 + $0x50] sm:$0xff]
        %v2131 = vld [vmem:[%s5 + $0x58] sm:$0xff]
        %v2132 = vld [vmem:[%s5 + $0x60] sm:$0xff]
        %v2133 = vld [vmem:[%s5 + $0x68] sm:$0xff]
        %v2134 = vld [vmem:[%s5 + $0x70] sm:$0xff]
        %v2135 = vld [vmem:[%s5 + $0x78] sm:$0xff]
        %2200 = vrot.lane.b32.xlu0 %v2056, 64
        %v2201 = vpop.permute.xlu0 %2200
        %2202 = vrot.lane.b32.xlu0 %v2057, 64
        %v2203 = vpop.permute.xlu0 %2202
        %2204 = vrot.lane.b32.xlu0 %v2058, 64
        %v2205 = vpop.permute.xlu0 %2204
        %2206 = vrot.lane.b32.xlu0 %v2059, 64
        %v2207 = vpop.permute.xlu0 %2206
        %2208 = vrot.lane.b32.xlu0 %v2060, 64
        %v2209 = vpop.permute.xlu0 %2208
        %2210 = vrot.lane.b32.xlu0 %v2061, 64
        %v2211 = vpop.permute.xlu0 %2210
        %2212 = vrot.lane.b32.xlu0 %v2062, 64
        %v2213 = vpop.permute.xlu0 %2212
        %2214 = vrot.lane.b32.xlu0 %v2063, 64
        %v2215 = vpop.permute.xlu0 %2214
        %2216 = vrot.lane.b32.xlu0 %v2064, 64
        %v2217 = vpop.permute.xlu0 %2216
        %2218 = vrot.lane.b32.xlu0 %v2065, 64
        %v2219 = vpop.permute.xlu0 %2218
        %2220 = vrot.lane.b32.xlu0 %v2066, 64
        %v2221 = vpop.permute.xlu0 %2220
        %2222 = vrot.lane.b32.xlu0 %v2067, 64
        %v2223 = vpop.permute.xlu0 %2222
        %2224 = vrot.lane.b32.xlu0 %v2068, 64
        %v2225 = vpop.permute.xlu0 %2224
        %2226 = vrot.lane.b32.xlu0 %v2069, 64
        %v2227 = vpop.permute.xlu0 %2226
        %2228 = vrot.lane.b32.xlu0 %v2070, 64
        %v2229 = vpop.permute.xlu0 %2228
        %2230 = vrot.lane.b32.xlu0 %v2071, 64
        %v2231 = vpop.permute.xlu0 %2230
        %2232 = vrot.lane.b32.xlu0 %v2072, 64
        %v2233 = vpop.permute.xlu0 %2232
        %2234 = vrot.lane.b32.xlu0 %v2073, 64
        %v2235 = vpop.permute.xlu0 %2234
        %2236 = vrot.lane.b32.xlu0 %v2074, 64
        %v2237 = vpop.permute.xlu0 %2236
        %2238 = vrot.lane.b32.xlu0 %v2075, 64
        %v2239 = vpop.permute.xlu0 %2238
        %2240 = vrot.lane.b32.xlu0 %v2076, 64
        %v2241 = vpop.permute.xlu0 %2240
        %2242 = vrot.lane.b32.xlu0 %v2077, 64
        %v2243 = vpop.permute.xlu0 %2242
        %2244 = vrot.lane.b32.xlu0 %v2078, 64
        %v2245 = vpop.permute.xlu0 %2244
        %2246 = vrot.lane.b32.xlu0 %v2079, 64
        %v2247 = vpop.permute.xlu0 %2246
        %2248 = vrot.lane.b32.xlu0 %v2080, 64
        %v2249 = vpop.permute.xlu0 %2248
        %2250 = vrot.lane.b32.xlu0 %v2081, 64
        %v2251 = vpop.permute.xlu0 %2250
        %2252 = vrot.lane.b32.xlu0 %v2082, 64
        %v2253 = vpop.permute.xlu0 %2252
        %2254 = vrot.lane.b32.xlu0 %v2083, 64
        %v2255 = vpop.permute.xlu0 %2254
        %2256 = vrot.lane.b32.xlu0 %v2084, 64
        %v2257 = vpop.permute.xlu0 %2256
        %2258 = vrot.lane.b32.xlu0 %v2085, 64
        %v2259 = vpop.permute.xlu0 %2258
        %2260 = vrot.lane.b32.xlu0 %v2086, 64
        %v2261 = vpop.permute.xlu0 %2260
        %2262 = vrot.lane.b32.xlu0 %v2087, 64
        %v2263 = vpop.permute.xlu0 %2262
        %2264 = vrot.lane.b32.xlu0 %v2088, 64
        %v2265 = vpop.permute.xlu0 %2264
        %2266 = vrot.lane.b32.xlu0 %v2089, 64
        %v2267 = vpop.permute.xlu0 %2266
        %2268 = vrot.lane.b32.xlu0 %v2090, 64
        %v2269 = vpop.permute.xlu0 %2268
        %2270 = vrot.lane.b32.xlu0 %v2091, 64
        %v2271 = vpop.permute.xlu0 %2270
        %2272 = vrot.lane.b32.xlu0 %v2092, 64
        %v2273 = vpop.permute.xlu0 %2272
        %2274 = vrot.lane.b32.xlu0 %v2093, 64
        %v2275 = vpop.permute.xlu0 %2274
        %2276 = vrot.lane.b32.xlu0 %v2094, 64
        %v2277 = vpop.permute.xlu0 %2276
        %2278 = vrot.lane.b32.xlu0 %v2095, 64
        %v2279 = vpop.permute.xlu0 %2278
        %2280 = vrot.lane.b32.xlu0 %v2096, 64
        %v2281 = vpop.permute.xlu0 %2280
        %2282 = vrot.lane.b32.xlu0 %v2097, 64
        %v2283 = vpop.permute.xlu0 %2282
        %2284 = vrot.lane.b32.xlu0 %v2098, 64
        %v2285 = vpop.permute.xlu0 %2284
        %2286 = vrot.lane.b32.xlu0 %v2099, 64
        %v2287 = vpop.permute.xlu0 %2286
        %2288 = vrot.lane.b32.xlu0 %v2100, 64
        %v2289 = vpop.permute.xlu0 %2288
        %2290 = vrot.lane.b32.xlu0 %v2101, 64
        %v2291 = vpop.permute.xlu0 %2290
        %2292 = vrot.lane.b32.xlu0 %v2102, 64
        %v2293 = vpop.permute.xlu0 %2292
        %2294 = vrot.lane.b32.xlu0 %v2103, 64
        %v2295 = vpop.permute.xlu0 %2294
        %2296 = vrot.lane.b32.xlu0 %v2104, 64
        %v2297 = vpop.permute.xlu0 %2296
        %2298 = vrot.lane.b32.xlu0 %v2105, 64
        %v2299 = vpop.permute.xlu0 %2298
        %2300 = vrot.lane.b32.xlu0 %v2106, 64
        %v2301 = vpop.permute.xlu0 %2300
        %2302 = vrot.lane.b32.xlu0 %v2107, 64
        %v2303 = vpop.permute.xlu0 %2302
        %2304 = vrot.lane.b32.xlu0 %v2108, 64
        %v2305 = vpop.permute.xlu0 %2304
        %2306 = vrot.lane.b32.xlu0 %v2109, 64
        %v2307 = vpop.permute.xlu0 %2306
        %2308 = vrot.lane.b32.xlu0 %v2110, 64
        %v2309 = vpop.permute.xlu0 %2308
        %2310 = vrot.lane.b32.xlu0 %v2111, 64
        %v2311 = vpop.permute.xlu0 %2310
        %2312 = vrot.lane.b32.xlu0 %v2112, 64
        %v2313 = vpop.permute.xlu0 %2312
        %2314 = vrot.lane.b32.xlu0 %v2113, 64
        %v2315 = vpop.permute.xlu0 %2314
        %2316 = vrot.lane.b32.xlu0 %v2114, 64
        %v2317 = vpop.permute.xlu0 %2316
        %2318 = vrot.lane.b32.xlu0 %v2115, 64
        %v2319 = vpop.permute.xlu0 %2318
        %2320 = vrot.lane.b32.xlu0 %v2116, 64
        %v2321 = vpop.permute.xlu0 %2320
        %2322 = vrot.lane.b32.xlu0 %v2117, 64
        %v2323 = vpop.permute.xlu0 %2322
        %2324 = vrot.lane.b32.xlu0 %v2118, 64
        %v2325 = vpop.permute.xlu0 %2324
        %2326 = vrot.lane.b32.xlu0 %v2119, 64
        %v2327 = vpop.permute.xlu0 %2326
        %v2328 = vsel %vm305, %v2201, %v2203
        %v2329 = vsel %vm305, %v2205, %v2207
        %v2330 = vsel %vm305, %v2209, %v2211
        %v2331 = vsel %vm305, %v2213, %v2215
        %v2332 = vsel %vm305, %v2217, %v2219
        %v2333 = vsel %vm305, %v2221, %v2223
        %v2334 = vsel %vm305, %v2225, %v2227
        %v2335 = vsel %vm305, %v2229, %v2231
        %v2336 = vsel %vm305, %v2233, %v2235
        %v2337 = vsel %vm305, %v2237, %v2239
        %v2338 = vsel %vm305, %v2241, %v2243
        %v2339 = vsel %vm305, %v2245, %v2247
        %v2340 = vsel %vm305, %v2249, %v2251
        %v2341 = vsel %vm305, %v2253, %v2255
        %v2342 = vsel %vm305, %v2257, %v2259
        %v2343 = vsel %vm305, %v2261, %v2263
        %v2344 = vsel %vm305, %v2265, %v2267
        %v2345 = vsel %vm305, %v2269, %v2271
        %v2346 = vsel %vm305, %v2273, %v2275
        %v2347 = vsel %vm305, %v2277, %v2279
        %v2348 = vsel %vm305, %v2281, %v2283
        %v2349 = vsel %vm305, %v2285, %v2287
        %v2350 = vsel %vm305, %v2289, %v2291
        %v2351 = vsel %vm305, %v2293, %v2295
        %v2352 = vsel %vm305, %v2297, %v2299
        %v2353 = vsel %vm305, %v2301, %v2303
        %v2354 = vsel %vm305, %v2305, %v2307
        %v2355 = vsel %vm305, %v2309, %v2311
        %v2356 = vsel %vm305, %v2313, %v2315
        %v2357 = vsel %vm305, %v2317, %v2319
        %v2358 = vsel %vm305, %v2321, %v2323
        %v2359 = vsel %vm305, %v2325, %v2327
        %2392 = vmatprep.subr.mxu0 0.0
        %2393 = vmatpush1.msra.mxu0 %v2120
        %2394 = vmatprep.subr.mxu0 0.0
        %2395 = vmatpush1.msra.mxu0 %v2121
        %2396 = vmatprep.subr.mxu0 0.0
        %2397 = vmatpush1.msra.mxu0 %v2122
        %2398 = vmatprep.subr.mxu0 0.0
        %2399 = vmatpush1.msra.mxu0 %v2123
        %2400 = vmatprep.subr.mxu0 0.0
        %2401 = vmatpush1.msra.mxu0 %v2124
        %2402 = vmatprep.subr.mxu0 0.0
        %2403 = vmatpush1.msra.mxu0 %v2125
        %2404 = vmatprep.subr.mxu0 0.0
        %2405 = vmatpush1.msra.mxu0 %v2126
        %2406 = vmatprep.subr.mxu0 0.0
        %2407 = vmatpush1.msra.mxu0 %v2127
        %2408 = vmatprep.subr.mxu0 0.0
        %2409 = vmatpush1.msra.mxu0 %v2128
        %2410 = vmatprep.subr.mxu0 0.0
        %2411 = vmatpush1.msra.mxu0 %v2129
        %2412 = vmatprep.subr.mxu0 0.0
        %2413 = vmatpush1.msra.mxu0 %v2130
        %2414 = vmatprep.subr.mxu0 0.0
        %2415 = vmatpush1.msra.mxu0 %v2131
        %2416 = vmatprep.subr.mxu0 0.0
        %2417 = vmatpush1.msra.mxu0 %v2132
        %2418 = vmatprep.subr.mxu0 0.0
        %2419 = vmatpush1.msra.mxu0 %v2133
        %2420 = vmatprep.subr.mxu0 0.0
        %2421 = vmatpush1.msra.mxu0 %v2134
        %2422 = vmatprep.subr.mxu0 0.0
        %2423 = vmatpush1.msra.mxu0 %v2135
        %2424 = vmatprep.subr.mxu0 0.0
        %2425 = vmatpush1.msra.mxu0 0.0
        %2426 = vmatprep.subr.mxu0 0.0
        %2427 = vmatpush1.msra.mxu0 0.0
        %2428 = vmatprep.subr.mxu0 0.0
        %2429 = vmatpush1.msra.mxu0 0.0
        %2430 = vmatprep.subr.mxu0 0.0
        %2431 = vmatpush1.msra.mxu0 0.0
        %2432 = vmatprep.subr.mxu0 0.0
        %2433 = vmatpush1.msra.mxu0 0.0
        %2434 = vmatprep.subr.mxu0 0.0
        %2435 = vmatpush1.msra.mxu0 0.0
        %2436 = vmatprep.subr.mxu0 0.0
        %2437 = vmatpush1.msra.mxu0 0.0
        %2438 = vmatprep.subr.mxu0 0.0
        %2439 = vmatpush1.msra.mxu0 0.0
        %2440 = vmatprep.subr.mxu0 0.0
        %2441 = vmatpush1.msra.mxu0 0.0
        %2442 = vmatprep.subr.mxu0 0.0
        %2443 = vmatpush1.msra.mxu0 0.0
        %2444 = vmatprep.subr.mxu0 0.0
        %2445 = vmatpush1.msra.mxu0 0.0
        %2446 = vmatprep.subr.mxu0 0.0
        %2447 = vmatpush1.msra.mxu0 0.0
        %2448 = vmatprep.subr.mxu0 0.0
        %2449 = vmatpush1.msra.mxu0 0.0
        %2450 = vmatprep.subr.mxu0 0.0
        %2451 = vmatpush1.msra.mxu0 0.0
        %2452 = vmatprep.subr.mxu0 0.0
        %2453 = vmatpush1.msra.mxu0 0.0
        %2454 = vmatprep.subr.mxu0 0.0
        %2455 = vmatpush1.msra.mxu0 0.0
        %2456 = vmatprep.mubr.f32.mxu0 0.0
        %2457 = vmatmul.mubr.f32.gmra.mrb[0].mxu0 %v2328
        %v2458 = vpop.f32.mrb[0].mxu0
        %v2459 = vadd.f32 0.0, %v2458
        %v2460 = vpop.f32.mrb[0].mxu0
        %2461 = vmatprep.mubr.f32.mxu0 0.0
        %2462 = vmatmul.mubr.f32.gmra.mrb[0].mxu0 %v2329
        %v2463 = vpop.f32.mrb[0].mxu0
        %v2464 = vadd.f32 0.0, %v2463
        %v2465 = vpop.f32.mrb[0].mxu0
        %2466 = vmatprep.mubr.f32.mxu0 0.0
        %2467 = vmatmul.mubr.f32.gmra.mrb[0].mxu0 %v2330
        %v2468 = vpop.f32.mrb[0].mxu0
        %v2469 = vadd.f32 0.0, %v2468
        %v2470 = vpop.f32.mrb[0].mxu0
        %2471 = vmatprep.mubr.f32.mxu0 0.0
        %2472 = vmatmul.mubr.f32.gmra.mrb[0].mxu0 %v2331
        %v2473 = vpop.f32.mrb[0].mxu0
        %v2474 = vadd.f32 0.0, %v2473
        %v2475 = vpop.f32.mrb[0].mxu0
        %2476 = vmatprep.mubr.f32.mxu0 0.0
        %2477 = vmatmul.mubr.f32.gmra.mrb[0].mxu0 %v2332
        %v2478 = vpop.f32.mrb[0].mxu0
        %v2479 = vadd.f32 0.0, %v2478
        %v2480 = vpop.f32.mrb[0].mxu0
        %2481 = vmatprep.mubr.f32.mxu0 0.0
        %2482 = vmatmul.mubr.f32.gmra.mrb[0].mxu0 %v2333
        %v2483 = vpop.f32.mrb[0].mxu0
        %v2484 = vadd.f32 0.0, %v2483
        %v2485 = vpop.f32.mrb[0].mxu0
        %2486 = vmatprep.mubr.f32.mxu0 0.0
        %2487 = vmatmul.mubr.f32.gmra.mrb[0].mxu0 %v2334
        %v2488 = vpop.f32.mrb[0].mxu0
        %v2489 = vadd.f32 0.0, %v2488
        %v2490 = vpop.f32.mrb[0].mxu0
        %2491 = vmatprep.mubr.f32.mxu0 0.0
        %2492 = vmatmul.mubr.f32.gmra.mrb[0].mxu0 %v2335
        %v2493 = vpop.f32.mrb[0].mxu0
        %v2494 = vadd.f32 0.0, %v2493
        %v2495 = vpop.f32.mrb[0].mxu0
        %2496 = vmatprep.mubr.f32.mxu0 0.0
        %2497 = vmatmul.mubr.f32.gmra.mrb[0].mxu0 %v2336
        %v2498 = vpop.f32.mrb[0].mxu0
        %v2499 = vadd.f32 0.0, %v2498
        %v2500 = vpop.f32.mrb[0].mxu0
        %2501 = vmatprep.mubr.f32.mxu0 0.0
        %2502 = vmatmul.mubr.f32.gmra.mrb[0].mxu0 %v2337
        %v2503 = vpop.f32.mrb[0].mxu0
        %v2504 = vadd.f32 0.0, %v2503
        %v2505 = vpop.f32.mrb[0].mxu0
        %2506 = vmatprep.mubr.f32.mxu0 0.0
        %2507 = vmatmul.mubr.f32.gmra.mrb[0].mxu0 %v2338
        %v2508 = vpop.f32.mrb[0].mxu0
        %v2509 = vadd.f32 0.0, %v2508
        %v2510 = vpop.f32.mrb[0].mxu0
        %2511 = vmatprep.mubr.f32.mxu0 0.0
        %2512 = vmatmul.mubr.f32.gmra.mrb[0].mxu0 %v2339
        %v2513 = vpop.f32.mrb[0].mxu0
        %v2514 = vadd.f32 0.0, %v2513
        %v2515 = vpop.f32.mrb[0].mxu0
        %2516 = vmatprep.mubr.f32.mxu0 0.0
        %2517 = vmatmul.mubr.f32.gmra.mrb[0].mxu0 %v2340
        %v2518 = vpop.f32.mrb[0].mxu0
        %v2519 = vadd.f32 0.0, %v2518
        %v2520 = vpop.f32.mrb[0].mxu0
        %2521 = vmatprep.mubr.f32.mxu0 0.0
        %2522 = vmatmul.mubr.f32.gmra.mrb[0].mxu0 %v2341
        %v2523 = vpop.f32.mrb[0].mxu0
        %v2524 = vadd.f32 0.0, %v2523
        %v2525 = vpop.f32.mrb[0].mxu0
        %2526 = vmatprep.mubr.f32.mxu0 0.0
        %2527 = vmatmul.mubr.f32.gmra.mrb[0].mxu0 %v2342
        %v2528 = vpop.f32.mrb[0].mxu0
        %v2529 = vadd.f32 0.0, %v2528
        %v2530 = vpop.f32.mrb[0].mxu0
        %2531 = vmatprep.mubr.f32.mxu0 0.0
        %2532 = vmatmul.mubr.f32.gmra.mrb[0].mxu0 %v2343
        %v2533 = vpop.f32.mrb[0].mxu0
        %v2534 = vadd.f32 0.0, %v2533
        %v2535 = vpop.f32.mrb[0].mxu0
        %2536 = vmatprep.mubr.f32.mxu0 0.0
        %2537 = vmatmul.mubr.f32.gmra.mrb[0].mxu0 %v2344
        %v2538 = vpop.f32.mrb[0].mxu0
        %v2539 = vadd.f32 0.0, %v2538
        %v2540 = vpop.f32.mrb[0].mxu0
        %2541 = vmatprep.mubr.f32.mxu0 0.0
        %2542 = vmatmul.mubr.f32.gmra.mrb[0].mxu0 %v2345
        %v2543 = vpop.f32.mrb[0].mxu0
        %v2544 = vadd.f32 0.0, %v2543
        %v2545 = vpop.f32.mrb[0].mxu0
        %2546 = vmatprep.mubr.f32.mxu0 0.0
        %2547 = vmatmul.mubr.f32.gmra.mrb[0].mxu0 %v2346
        %v2548 = vpop.f32.mrb[0].mxu0
        %v2549 = vadd.f32 0.0, %v2548
        %v2550 = vpop.f32.mrb[0].mxu0
        %2551 = vmatprep.mubr.f32.mxu0 0.0
        %2552 = vmatmul.mubr.f32.gmra.mrb[0].mxu0 %v2347
        %v2553 = vpop.f32.mrb[0].mxu0
        %v2554 = vadd.f32 0.0, %v2553
        %v2555 = vpop.f32.mrb[0].mxu0
        %2556 = vmatprep.mubr.f32.mxu0 0.0
        %2557 = vmatmul.mubr.f32.gmra.mrb[0].mxu0 %v2348
        %v2558 = vpop.f32.mrb[0].mxu0
        %v2559 = vadd.f32 0.0, %v2558
        %v2560 = vpop.f32.mrb[0].mxu0
        %2561 = vmatprep.mubr.f32.mxu0 0.0
        %2562 = vmatmul.mubr.f32.gmra.mrb[0].mxu0 %v2349
        %v2563 = vpop.f32.mrb[0].mxu0
        %v2564 = vadd.f32 0.0, %v2563
        %v2565 = vpop.f32.mrb[0].mxu0
        %2566 = vmatprep.mubr.f32.mxu0 0.0
        %2567 = vmatmul.mubr.f32.gmra.mrb[0].mxu0 %v2350
        %v2568 = vpop.f32.mrb[0].mxu0
        %v2569 = vadd.f32 0.0, %v2568
        %v2570 = vpop.f32.mrb[0].mxu0
        %2571 = vmatprep.mubr.f32.mxu0 0.0
        %2572 = vmatmul.mubr.f32.gmra.mrb[0].mxu0 %v2351
        %v2573 = vpop.f32.mrb[0].mxu0
        %v2574 = vadd.f32 0.0, %v2573
        %v2575 = vpop.f32.mrb[0].mxu0
        %2576 = vmatprep.mubr.f32.mxu0 0.0
        %2577 = vmatmul.mubr.f32.gmra.mrb[0].mxu0 %v2352
        %v2578 = vpop.f32.mrb[0].mxu0
        %v2579 = vadd.f32 0.0, %v2578
        %v2580 = vpop.f32.mrb[0].mxu0
        %2581 = vmatprep.mubr.f32.mxu0 0.0
        %2582 = vmatmul.mubr.f32.gmra.mrb[0].mxu0 %v2353
        %v2583 = vpop.f32.mrb[0].mxu0
        %v2584 = vadd.f32 0.0, %v2583
        %v2585 = vpop.f32.mrb[0].mxu0
        %2586 = vmatprep.mubr.f32.mxu0 0.0
        %2587 = vmatmul.mubr.f32.gmra.mrb[0].mxu0 %v2354
        %v2588 = vpop.f32.mrb[0].mxu0
        %v2589 = vadd.f32 0.0, %v2588
        %v2590 = vpop.f32.mrb[0].mxu0
        %2591 = vmatprep.mubr.f32.mxu0 0.0
        %2592 = vmatmul.mubr.f32.gmra.mrb[0].mxu0 %v2355
        %v2593 = vpop.f32.mrb[0].mxu0
        %v2594 = vadd.f32 0.0, %v2593
        %v2595 = vpop.f32.mrb[0].mxu0
        %2596 = vmatprep.mubr.f32.mxu0 0.0
        %2597 = vmatmul.mubr.f32.gmra.mrb[0].mxu0 %v2356
        %v2598 = vpop.f32.mrb[0].mxu0
        %v2599 = vadd.f32 0.0, %v2598
        %v2600 = vpop.f32.mrb[0].mxu0
        %2601 = vmatprep.mubr.f32.mxu0 0.0
        %2602 = vmatmul.mubr.f32.gmra.mrb[0].mxu0 %v2357
        %v2603 = vpop.f32.mrb[0].mxu0
        %v2604 = vadd.f32 0.0, %v2603
        %v2605 = vpop.f32.mrb[0].mxu0
        %2606 = vmatprep.mubr.f32.mxu0 0.0
        %2607 = vmatmul.mubr.f32.gmra.mrb[0].mxu0 %v2358
        %v2608 = vpop.f32.mrb[0].mxu0
        %v2609 = vadd.f32 0.0, %v2608
        %v2610 = vpop.f32.mrb[0].mxu0
        %2611 = vmatprep.mubr.f32.mxu0 0.0
        %2612 = vmatmul.mubr.f32.gmra.mrb[0].mxu0 %v2359
        %v2613 = vpop.f32.mrb[0].mxu0
        %v2614 = vadd.f32 0.0, %v2613
        %v2615 = vpop.f32.mrb[0].mxu0
        %2616 = vdwg.mxu0
        %v2617 = vmul.f32 %v2459, %v992
        %v2618 = vmul.f32 %v2464, %v998
        %v2619 = vmul.f32 %v2469, %v1004
        %v2620 = vmul.f32 %v2474, %v1010
        %v2621 = vmul.f32 %v2479, %v1016
        %v2622 = vmul.f32 %v2484, %v1022
        %v2623 = vmul.f32 %v2489, %v1028
        %v2624 = vmul.f32 %v2494, %v1034
        %v2625 = vmul.f32 %v2499, %v1040
        %v2626 = vmul.f32 %v2504, %v1046
        %v2627 = vmul.f32 %v2509, %v1052
        %v2628 = vmul.f32 %v2514, %v1058
        %v2629 = vmul.f32 %v2519, %v1064
        %v2630 = vmul.f32 %v2524, %v1070
        %v2631 = vmul.f32 %v2529, %v1076
        %v2632 = vmul.f32 %v2534, %v1082
        %v2633 = vmul.f32 %v2539, %v1088
        %v2634 = vmul.f32 %v2544, %v1094
        %v2635 = vmul.f32 %v2549, %v1100
        %v2636 = vmul.f32 %v2554, %v1106
        %v2637 = vmul.f32 %v2559, %v1112
        %v2638 = vmul.f32 %v2564, %v1118
        %v2639 = vmul.f32 %v2569, %v1124
        %v2640 = vmul.f32 %v2574, %v1130
        %v2641 = vmul.f32 %v2579, %v1136
        %v2642 = vmul.f32 %v2584, %v1142
        %v2643 = vmul.f32 %v2589, %v1148
        %v2644 = vmul.f32 %v2594, %v1154
        %v2645 = vmul.f32 %v2599, %v1160
        %v2646 = vmul.f32 %v2604, %v1166
        %v2647 = vmul.f32 %v2609, %v1172
        %v2648 = vmul.f32 %v2614, %v1178
        %v2649 = vsel %vm305, %v2617, 0.0
        %v2650 = vsel %vm305, %v2618, 0.0
        %v2651 = vadd.f32 %v2649, %v2650
        %v2652 = vrot.slane %v2651, 4
        %v2653 = vadd.f32 %v2651, %v2652
        %v2654 = vrot.slane %v2653, 2
        %v2655 = vadd.f32 %v2653, %v2654
        %v2656 = vrot.slane %v2655, 1
        %v2657 = vadd.f32 %v2655, %v2656
        %v2658 = vsel %vm305, %v2619, 0.0
        %v2659 = vsel %vm305, %v2620, 0.0
        %v2660 = vadd.f32 %v2658, %v2659
        %v2661 = vrot.slane %v2660, 4
        %v2662 = vadd.f32 %v2660, %v2661
        %v2663 = vrot.slane %v2662, 2
        %v2664 = vadd.f32 %v2662, %v2663
        %v2665 = vrot.slane %v2664, 1
        %v2666 = vadd.f32 %v2664, %v2665
        %v2667 = vsel %vm305, %v2621, 0.0
        %v2668 = vsel %vm305, %v2622, 0.0
        %v2669 = vadd.f32 %v2667, %v2668
        %v2670 = vrot.slane %v2669, 4
        %v2671 = vadd.f32 %v2669, %v2670
        %v2672 = vrot.slane %v2671, 2
        %v2673 = vadd.f32 %v2671, %v2672
        %v2674 = vrot.slane %v2673, 1
        %v2675 = vadd.f32 %v2673, %v2674
        %v2676 = vsel %vm305, %v2623, 0.0
        %v2677 = vsel %vm305, %v2624, 0.0
        %v2678 = vadd.f32 %v2676, %v2677
        %v2679 = vrot.slane %v2678, 4
        %v2680 = vadd.f32 %v2678, %v2679
        %v2681 = vrot.slane %v2680, 2
        %v2682 = vadd.f32 %v2680, %v2681
        %v2683 = vrot.slane %v2682, 1
        %v2684 = vadd.f32 %v2682, %v2683
        %v2685 = vsel %vm305, %v2625, 0.0
        %v2686 = vsel %vm305, %v2626, 0.0
        %v2687 = vadd.f32 %v2685, %v2686
        %v2688 = vrot.slane %v2687, 4
        %v2689 = vadd.f32 %v2687, %v2688
        %v2690 = vrot.slane %v2689, 2
        %v2691 = vadd.f32 %v2689, %v2690
        %v2692 = vrot.slane %v2691, 1
        %v2693 = vadd.f32 %v2691, %v2692
        %v2694 = vsel %vm305, %v2627, 0.0
        %v2695 = vsel %vm305, %v2628, 0.0
        %v2696 = vadd.f32 %v2694, %v2695
        %v2697 = vrot.slane %v2696, 4
        %v2698 = vadd.f32 %v2696, %v2697
        %v2699 = vrot.slane %v2698, 2
        %v2700 = vadd.f32 %v2698, %v2699
        %v2701 = vrot.slane %v2700, 1
        %v2702 = vadd.f32 %v2700, %v2701
        %v2703 = vsel %vm305, %v2629, 0.0
        %v2704 = vsel %vm305, %v2630, 0.0
        %v2705 = vadd.f32 %v2703, %v2704
        %v2706 = vrot.slane %v2705, 4
        %v2707 = vadd.f32 %v2705, %v2706
        %v2708 = vrot.slane %v2707, 2
        %v2709 = vadd.f32 %v2707, %v2708
        %v2710 = vrot.slane %v2709, 1
        %v2711 = vadd.f32 %v2709, %v2710
        %v2712 = vsel %vm305, %v2631, 0.0
        %v2713 = vsel %vm305, %v2632, 0.0
        %v2714 = vadd.f32 %v2712, %v2713
        %v2715 = vrot.slane %v2714, 4
        %v2716 = vadd.f32 %v2714, %v2715
        %v2717 = vrot.slane %v2716, 2
        %v2718 = vadd.f32 %v2716, %v2717
        %v2719 = vrot.slane %v2718, 1
        %v2720 = vadd.f32 %v2718, %v2719
        %v2721 = vsel %vm305, %v2633, 0.0
        %v2722 = vsel %vm305, %v2634, 0.0
        %v2723 = vadd.f32 %v2721, %v2722
        %v2724 = vrot.slane %v2723, 4
        %v2725 = vadd.f32 %v2723, %v2724
        %v2726 = vrot.slane %v2725, 2
        %v2727 = vadd.f32 %v2725, %v2726
        %v2728 = vrot.slane %v2727, 1
        %v2729 = vadd.f32 %v2727, %v2728
        %v2730 = vsel %vm305, %v2635, 0.0
        %v2731 = vsel %vm305, %v2636, 0.0
        %v2732 = vadd.f32 %v2730, %v2731
        %v2733 = vrot.slane %v2732, 4
        %v2734 = vadd.f32 %v2732, %v2733
        %v2735 = vrot.slane %v2734, 2
        %v2736 = vadd.f32 %v2734, %v2735
        %v2737 = vrot.slane %v2736, 1
        %v2738 = vadd.f32 %v2736, %v2737
        %v2739 = vsel %vm305, %v2637, 0.0
        %v2740 = vsel %vm305, %v2638, 0.0
        %v2741 = vadd.f32 %v2739, %v2740
        %v2742 = vrot.slane %v2741, 4
        %v2743 = vadd.f32 %v2741, %v2742
        %v2744 = vrot.slane %v2743, 2
        %v2745 = vadd.f32 %v2743, %v2744
        %v2746 = vrot.slane %v2745, 1
        %v2747 = vadd.f32 %v2745, %v2746
        %v2748 = vsel %vm305, %v2639, 0.0
        %v2749 = vsel %vm305, %v2640, 0.0
        %v2750 = vadd.f32 %v2748, %v2749
        %v2751 = vrot.slane %v2750, 4
        %v2752 = vadd.f32 %v2750, %v2751
        %v2753 = vrot.slane %v2752, 2
        %v2754 = vadd.f32 %v2752, %v2753
        %v2755 = vrot.slane %v2754, 1
        %v2756 = vadd.f32 %v2754, %v2755
        %v2757 = vsel %vm305, %v2641, 0.0
        %v2758 = vsel %vm305, %v2642, 0.0
        %v2759 = vadd.f32 %v2757, %v2758
        %v2760 = vrot.slane %v2759, 4
        %v2761 = vadd.f32 %v2759, %v2760
        %v2762 = vrot.slane %v2761, 2
        %v2763 = vadd.f32 %v2761, %v2762
        %v2764 = vrot.slane %v2763, 1
        %v2765 = vadd.f32 %v2763, %v2764
        %v2766 = vsel %vm305, %v2643, 0.0
        %v2767 = vsel %vm305, %v2644, 0.0
        %v2768 = vadd.f32 %v2766, %v2767
        %v2769 = vrot.slane %v2768, 4
        %v2770 = vadd.f32 %v2768, %v2769
        %v2771 = vrot.slane %v2770, 2
        %v2772 = vadd.f32 %v2770, %v2771
        %v2773 = vrot.slane %v2772, 1
        %v2774 = vadd.f32 %v2772, %v2773
        %v2775 = vsel %vm305, %v2645, 0.0
        %v2776 = vsel %vm305, %v2646, 0.0
        %v2777 = vadd.f32 %v2775, %v2776
        %v2778 = vrot.slane %v2777, 4
        %v2779 = vadd.f32 %v2777, %v2778
        %v2780 = vrot.slane %v2779, 2
        %v2781 = vadd.f32 %v2779, %v2780
        %v2782 = vrot.slane %v2781, 1
        %v2783 = vadd.f32 %v2781, %v2782
        %v2784 = vsel %vm305, %v2647, 0.0
        %v2785 = vsel %vm305, %v2648, 0.0
        %v2786 = vadd.f32 %v2784, %v2785
        %v2787 = vrot.slane %v2786, 4
        %v2788 = vadd.f32 %v2786, %v2787
        %v2789 = vrot.slane %v2788, 2
        %v2790 = vadd.f32 %v2788, %v2789
        %v2791 = vrot.slane %v2790, 1
        %v2792 = vadd.f32 %v2790, %v2791
        %vm2809 = vcmask 1041409
        %v2810 = vsel %vm2809, %v2666, %v2657
        %vm2811 = vcmask 1042434
        %v2812 = vsel %vm2811, %v2675, %v2810
        %vm2813 = vcmask 1043459
        %v2814 = vsel %vm2813, %v2684, %v2812
        %vm2815 = vcmask 1044484
        %v2816 = vsel %vm2815, %v2693, %v2814
        %vm2817 = vcmask 1045509
        %v2818 = vsel %vm2817, %v2702, %v2816
        %vm2819 = vcmask 1046534
        %v2820 = vsel %vm2819, %v2711, %v2818
        %vm2821 = vcmask 1047559
        %v2822 = vsel %vm2821, %v2720, %v2820
        %v2823 = vsel %vm2809, %v2738, %v2729
        %v2824 = vsel %vm2811, %v2747, %v2823
        %v2825 = vsel %vm2813, %v2756, %v2824
        %v2826 = vsel %vm2815, %v2765, %v2825
        %v2827 = vsel %vm2817, %v2774, %v2826
        %v2828 = vsel %vm2819, %v2783, %v2827
        %v2829 = vsel %vm2821, %v2792, %v2828
        %2832 = vst.msk [vmem:[%s270] sm:$0xff] %vm305, %v2822
        %2833 = vst.msk [vmem:[%s270 + $0x8] sm:$0xff] %vm305, %v2829
        %s2834 = sand.u32 %s162, 1
        %s2835 = scalar_lea.sflag [#allocation4], %s2834
        %s2836 = sand.u32 %s162, 1
        %s2837 = smul.addr %s2836, 16
        %s2838 = scalar_lea.vmem [#allocation5], %s2837
        // Predicated region
        $region49: #{tpu_custom_call.1} parent=43 // pred_check
          %p2839 = pneg %p172
        $region50: #{tpu_custom_call.1} parent=43 // pred_check_branch
          %2841 = sbr.rel (%p2839) target = $region52
        $region51: #{tpu_custom_call.1} parent=43 // pred_region
          %s2842 = smul.u32 2, %s23
          %s2844 = ssub.s32 256, 256
          %2845 = vsyncadd %s2835, %s2844
          %s2846 = smul.addr %s2842, 128
          %s2847 = scalar_lea.hbm %s6, %s2846
          %s2848 = sshll.u32 %s2838, 4
          %s2849 = int_to_ptr.vmem [resolvable:$true] %s2848
          %2854 = dma.vmem_to_hbm [thread:$0]  %s2849, 256, %s2847, %s2835, 128, 128, 8
        $region52: #{tpu_custom_call.1} parent=43 // pred_fallthru
          _
      $region44: #{tpu_custom_call.1} parent=5 // pred_fallthru
        _
      %p2855 = scmp.le.s32.totalorder 2, %s18
      // Predicated region
      $region53: #{tpu_custom_call.1} parent=5 // pred_check
        %p2856 = pneg %p2855
      $region54: #{tpu_custom_call.1} parent=5 // pred_check_branch
        %2858 = sbr.rel (%p2856) target = $region56
      $region55: #{tpu_custom_call.1} parent=5 // pred_region
        %s2859 = ssub.s32 %s18, 2
        // Predicated region
        $region57: #{tpu_custom_call.1} parent=55 // pred_check
          %p2860 = pneg %p178
        $region58: #{tpu_custom_call.1} parent=55 // pred_check_branch
          %2862 = sbr.rel (%p2860) target = $region60
        $region59: #{tpu_custom_call.1} parent=55 // pred_region
          %s2863 = sand.u32 %s163, 1
          %s2864 = scalar_lea.sflag [#allocation4], %s2863
          %s2865 = sand.u32 %s163, 1
          %s2866 = smul.addr %s2865, 16
          %s2867 = scalar_lea.vmem [#allocation5], %s2866
          %2868 = dma.done %s2864, 256
        $region60: #{tpu_custom_call.1} parent=55 // pred_fallthru
          _
      $region56: #{tpu_custom_call.1} parent=5 // pred_fallthru
        _
    $region6: #{tpu_custom_call.1} parent=1 // loop_footer
      %s22 = sadd.s32 1, %s18
    $region7: #{tpu_custom_call.1} parent=1 // loop_footer_branch
      %17 = sbr.rel target = $region3
    $region8: #{tpu_custom_call.1} parent=1 // loop_exit
      _
    %2869 = vsyncpa [#allocation3], 1
    %s2870 = scalar_lea.sflag [#allocation3], 1
    %2871 = vsyncpa %s2870, 1
    %2872 = vsyncpa [#allocation4], 1
    %s2873 = scalar_lea.sflag [#allocation4], 1
    %2874 = vsyncpa %s2873, 1

</llo_original>
